<compile_context>
chip_gen: v6e
topology: v6e:2x2x1
jax: 0.10.0
libtpu: 0.0.40
codegen_flags: <defaults>
</compile_context>

<pallas_src>
import functools
import math

import jax
import jax.numpy as jnp
from jax import lax
from jax.experimental import pallas as pl
from jax.experimental.pallas import tpu as pltpu


# ------------------------------ kernel helpers -------------------------------

def _layernorm_cf(x, w, b):
    # x: (C, L) channels-first; WithBias LayerNorm over the channel axis (axis 0),
    # eps=1e-5, biased variance (matches WithBias_LayerNorm).
    mu = jnp.mean(x, axis=0, keepdims=True)
    var = jnp.mean(jnp.square(x - mu), axis=0, keepdims=True)
    return (x - mu) * lax.rsqrt(var + 1e-5) * w + b


def _gelu_exact(x):
    # PyTorch F.gelu default (exact erf form).
    return 0.5 * x * (1.0 + lax.erf(x * (1.0 / math.sqrt(2.0))))


def _dwconv3x3_roll(x, w9, b, tap_masks, W, L):
    """Depthwise 3x3 conv (stride 1, pad 1) on a channels-first flattened tile.

    x:         (Cn, L=H*W) f32, row-major flattened spatial axis on lanes.
    w9:        (Cn, 9) per-channel taps (tap = ky*3+kx, input offset (ky-1, kx-1)).
    b:         (Cn, 1).
    tap_masks: (9, L) f32 0/1 validity mask per tap (precomputed in the wrapper,
               shared by both dwconv calls).  Rolls are cyclic over the flat
               spatial axis; every wrapped / cross-row pixel is exactly a pixel
               whose tap is masked to zero, so roll + mask == zero-padded conv.
    """
    # Center tap needs no shift and no mask; fold the bias in here.
    acc = w9[:, 4:5] * x + b
    for dy in (-1, 0, 1):
        for dx in (-1, 0, 1):
            if dy == 0 and dx == 0:
                continue
            tap = (dy + 1) * 3 + (dx + 1)
            s = dy * W + dx                       # neighbor offset in flat layout
            rolled = pltpu.roll(x, (-s) % L, 1)   # rolled[:, p] == x[:, (p+s) % L]
            acc = acc + w9[:, tap:tap + 1] * (rolled * tap_masks[tap:tap + 1, :])
    return acc


# ------------------------------ fused block kernel ---------------------------

def mat_block_kernel(x_ref, masks_ref,
                     ln1_w_ref, ln1_b_ref,
                     qkv_w_ref, qkv_b_ref, qkv_dw_w_ref, qkv_dw_b_ref,
                     temp_ref, attn_bias_ref,
                     proj_w_ref, proj_b_ref,
                     ln2_w_ref, ln2_b_ref,
                     ffn_in_w_ref, ffn_in_b_ref, ffn_dw_w_ref, ffn_dw_b_ref,
                     ffn_out_w_ref, ffn_out_b_ref,
                     o_ref, *, H, W):
    L = H * W
    x = x_ref[0].astype(jnp.float32)                      # (C, L)
    C = x.shape[0]
    masks = masks_ref[...]                                 # (9, L)

    # ------------- x = x + project_out(Attention(LN1(x))) -------------
    y = _layernorm_cf(x, ln1_w_ref[...], ln1_b_ref[...])
    qkv = jnp.dot(qkv_w_ref[...], y,
                  preferred_element_type=jnp.float32) + qkv_b_ref[...]       # (3C, L)
    qkv = _dwconv3x3_roll(qkv, qkv_dw_w_ref[...], qkv_dw_b_ref[...], masks, W, L)

    q = qkv[:C, :]
    k = qkv[C:2 * C, :]
    v = qkv[2 * C:, :]
    # L2-normalize over the spatial axis (matches F.normalize eps=1e-12);
    # per-row, so identical whether done before or after head splitting.
    q = q * lax.rsqrt(jnp.maximum(jnp.sum(q * q, axis=-1, keepdims=True), 1e-24))
    k = k * lax.rsqrt(jnp.maximum(jnp.sum(k * k, axis=-1, keepdims=True), 1e-24))

    # Block-diagonal channel attention: one (C,C) Gram matmul, per-row temperature,
    # additive -1e30 on cross-head blocks, one softmax, one (C,C)@(C,L) for p@v.
    logits = lax.dot_general(q, k, (((1,), (1,)), ((), ())),
                             preferred_element_type=jnp.float32)             # (C, C)
    logits = logits * temp_ref[...] + attn_bias_ref[...]
    logits = logits - jnp.max(logits, axis=-1, keepdims=True)
    e = jnp.exp(logits)
    p = e * pl.reciprocal(jnp.sum(e, axis=-1, keepdims=True), approx=True)
    o = jnp.dot(p, v, preferred_element_type=jnp.float32)                    # (C, L)
    x = x + jnp.dot(proj_w_ref[...], o,
                    preferred_element_type=jnp.float32) + proj_b_ref[...]

    # ------------- x = x + FFN(LN2(x)) -------------
    y = _layernorm_cf(x, ln2_w_ref[...], ln2_b_ref[...])
    hcat = jnp.dot(ffn_in_w_ref[...], y,
                   preferred_element_type=jnp.float32) + ffn_in_b_ref[...]   # (2*hid, L)
    hcat = _dwconv3x3_roll(hcat, ffn_dw_w_ref[...], ffn_dw_b_ref[...], masks, W, L)
    hid = hcat.shape[0] // 2
    g = _gelu_exact(hcat[:hid, :]) * hcat[hid:, :]
    ffn = jnp.dot(ffn_out_w_ref[...], g,
                  preferred_element_type=jnp.float32) + ffn_out_b_ref[...]
    o_ref[0] = (x + ffn).astype(o_ref.dtype)


# ------------------------ TransformerBlock_MAT forward -----------------------

def transformer_block_mat(x_nchw, p, num_heads):
    B, C, H, W = x_nchw.shape
    L = H * W
    hid2 = p['ffn_in_w'].shape[0]          # 2 * hidden
    hid = hid2 // 2
    cH = C // num_heads

    x_cf = x_nchw.reshape(B, C, L)         # NCHW -> channels-first flat, no transpose

    # Precomputed per-tap boundary masks (shared by both dwconvs).
    rows = jnp.arange(H, dtype=jnp.int32)
    cols = jnp.arange(W, dtype=jnp.int32)
    tap_masks = []
    for dy in (-1, 0, 1):
        for dx in (-1, 0, 1):
            mr = jnp.ones((H,), bool)
            mc = jnp.ones((W,), bool)
            if dy < 0:
                mr = rows >= -dy
            elif dy > 0:
                mr = rows < H - dy
            if dx < 0:
                mc = cols >= -dx
            elif dx > 0:
                mc = cols < W - dx
            tap_masks.append((mr[:, None] & mc[None, :]).reshape(L))
    tap_masks = jnp.stack(tap_masks).astype(jnp.float32)          # (9, L)

    # Per-row temperature and block-diagonal additive attention mask.
    temp_row = jnp.repeat(p['temp'].reshape(-1), cH).reshape(C, 1).astype(jnp.float32)
    head_id = jnp.arange(C, dtype=jnp.int32) // cH
    attn_bias = jnp.where(head_id[:, None] == head_id[None, :],
                          0.0, -1e30).astype(jnp.float32)          # (C, C)

    def c1(a):                             # (n,) -> (n, 1) lane-broadcastable column
        return a.reshape(-1, 1)

    full2 = lambda b: (0, 0)
    kernel = functools.partial(mat_block_kernel, H=H, W=W)

    out = pl.pallas_call(
        kernel,
        out_shape=jax.ShapeDtypeStruct((B, C, L), jnp.float32),
        grid=(B,),
        in_specs=[
            pl.BlockSpec((1, C, L), lambda b: (b, 0, 0)),                       # x
            pl.BlockSpec((9, L), full2),                                        # tap masks
            pl.BlockSpec((C, 1), full2), pl.BlockSpec((C, 1), full2),           # ln1 w,b
            pl.BlockSpec((3 * C, C), full2), pl.BlockSpec((3 * C, 1), full2),   # qkv w,b
            pl.BlockSpec((3 * C, 9), full2), pl.BlockSpec((3 * C, 1), full2),   # qkv dw w,b
            pl.BlockSpec((C, 1), full2),                                        # temperature rows
            pl.BlockSpec((C, C), full2),                                        # head-block bias
            pl.BlockSpec((C, C), full2), pl.BlockSpec((C, 1), full2),           # proj w,b
            pl.BlockSpec((C, 1), full2), pl.BlockSpec((C, 1), full2),           # ln2 w,b
            pl.BlockSpec((hid2, C), full2), pl.BlockSpec((hid2, 1), full2),     # ffn_in w,b
            pl.BlockSpec((hid2, 9), full2), pl.BlockSpec((hid2, 1), full2),     # ffn dw w,b
            pl.BlockSpec((C, hid), full2), pl.BlockSpec((C, 1), full2),         # ffn_out w,b
        ],
        out_specs=pl.BlockSpec((1, C, L), lambda b: (b, 0, 0)),
        compiler_params=pltpu.CompilerParams(dimension_semantics=("parallel",)),
    )(
        x_cf, tap_masks,
        c1(p['ln1_w']), c1(p['ln1_b']),
        p['qkv_w'], c1(p['qkv_b']),
        p['qkv_dw_w'], c1(p['qkv_dw_b']),
        temp_row, attn_bias,
        p['proj_w'], c1(p['proj_b']),
        c1(p['ln2_w']), c1(p['ln2_b']),
        p['ffn_in_w'], c1(p['ffn_in_b']),
        p['ffn_dw_w'], c1(p['ffn_dw_b']),
        p['ffn_out_w'], c1(p['ffn_out_b']),
    )
    return out.reshape(B, C, H, W)


# ------------------------------ pure-JAX reference ---------------------------

def reference_forward(x_nchw, p, num_heads):
    B, C, H, W = x_nchw.shape
    L = H * W
    x = x_nchw.reshape(B, C, L).astype(jnp.float32)

    def ln(t, w, b):
        mu = jnp.mean(t, axis=1, keepdims=True)
        var = jnp.var(t, axis=1, keepdims=True)
        return (t - mu) / jnp.sqrt(var + 1e-5) * w[None, :, None] + b[None, :, None]

    def conv1x1(t, w, b):
        return jnp.einsum('oc,bcl->bol', w, t) + b[None, :, None]

    def dwconv(t, w9, b):
        Cn = t.shape[1]
        tt = t.reshape(B, Cn, H, W)
        tp = jnp.pad(tt, ((0, 0), (0, 0), (1, 1), (1, 1)))
        acc = jnp.zeros_like(tt)
        for ky in range(3):
            for kx in range(3):
                acc = acc + tp[:, :, ky:ky + H, kx:kx + W] * w9[None, :, ky * 3 + kx, None, None]
        return (acc + b[None, :, None, None]).reshape(B, Cn, L)

    # attention branch
    y = ln(x, p['ln1_w'], p['ln1_b'])
    qkv = dwconv(conv1x1(y, p['qkv_w'], p['qkv_b']), p['qkv_dw_w'], p['qkv_dw_b'])
    q, k, v = jnp.split(qkv, 3, axis=1)

    def heads(t):
        return t.reshape(B, num_heads, C // num_heads, L)

    q, k, v = heads(q), heads(k), heads(v)
    q = q / jnp.maximum(jnp.linalg.norm(q, axis=-1, keepdims=True), 1e-12)
    k = k / jnp.maximum(jnp.linalg.norm(k, axis=-1, keepdims=True), 1e-12)
    attn = jnp.einsum('bhcl,bhdl->bhcd', q, k) * p['temp'][None, :, None, None]
    attn = jax.nn.softmax(attn, axis=-1)
    o = jnp.einsum('bhcd,bhdl->bhcl', attn, v).reshape(B, C, L)
    x = x + conv1x1(o, p['proj_w'], p['proj_b'])

    # ffn branch
    y = ln(x, p['ln2_w'], p['ln2_b'])
    h2 = dwconv(conv1x1(y, p['ffn_in_w'], p['ffn_in_b']), p['ffn_dw_w'], p['ffn_dw_b'])
    hid = h2.shape[1] // 2
    g = jax.nn.gelu(h2[:, :hid], approximate=False) * h2[:, hid:]
    x = x + conv1x1(g, p['ffn_out_w'], p['ffn_out_b'])
    return x.reshape(B, C, H, W)


# ----------------------------------- main ------------------------------------

if __name__ == "__main__":
    B, C, H, W = 2, 16, 16, 16
    num_heads = 2
    ffn_factor = 2
    hidden = int(C * ffn_factor)           # 32
    hid2 = 2 * hidden                      # 64

    key = jax.random.PRNGKey(0)
    ks = jax.random.split(key, 20)

    def rnd(k, shape, scale=0.2):
        return scale * jax.random.normal(k, shape, jnp.float32)

    params = {
        # LayerNorms (WithBias)
        'ln1_w': 1.0 + rnd(ks[0], (C,), 0.05), 'ln1_b': rnd(ks[1], (C,), 0.05),
        'ln2_w': 1.0 + rnd(ks[2], (C,), 0.05), 'ln2_b': rnd(ks[3], (C,), 0.05),
        # Attention: qkv 1x1 (C -> 3C), depthwise 3x3 over 3C, project_out (C -> C)
        'qkv_w': rnd(ks[4], (3 * C, C)), 'qkv_b': rnd(ks[5], (3 * C,), 0.05),
        'qkv_dw_w': rnd(ks[6], (3 * C, 9)), 'qkv_dw_b': rnd(ks[7], (3 * C,), 0.05),
        'proj_w': rnd(ks[8], (C, C)), 'proj_b': rnd(ks[9], (C,), 0.05),
        'temp': jnp.linspace(0.5, 1.5, num_heads, dtype=jnp.float32),
        # FeedForward: project_in (C -> 2*hidden), dw 3x3 over 2*hidden, project_out
        'ffn_in_w': rnd(ks[10], (hid2, C)), 'ffn_in_b': rnd(ks[11], (hid2,), 0.05),
        'ffn_dw_w': rnd(ks[12], (hid2, 9)), 'ffn_dw_b': rnd(ks[13], (hid2,), 0.05),
        'ffn_out_w': rnd(ks[14], (C, hidden)), 'ffn_out_b': rnd(ks[15], (C,), 0.05),
    }

    x = jax.random.normal(ks[16], (B, C, H, W), jnp.float32)

    out = jax.block_until_ready(transformer_block_mat(x, params, num_heads))
    ref = jax.block_until_ready(reference_forward(x, params, num_heads))

    max_err = float(jnp.max(jnp.abs(out - ref)))
    assert out.shape == (B, C, H, W)
    # f32 math + default-precision MXU passes + EUP approx reciprocal in the
    # softmax denominator; 3e-3 leaves headroom while staying semantically tight.
    assert max_err < 3e-3, f"mismatch vs reference: {max_err}"

    print("KERNEL_OK")
</pallas_src>

<mosaic_0001>
module attributes {stable_mosaic.version = 11 : i64} {
  func.func @mat_block_kernel(%arg0: i32, %arg1: memref<1x16x256xf32, #tpu.memory_space<vmem>>, %arg2: memref<9x256xf32, #tpu.memory_space<vmem>>, %arg3: memref<16x1xf32, #tpu.memory_space<vmem>>, %arg4: memref<16x1xf32, #tpu.memory_space<vmem>>, %arg5: memref<48x16xf32, #tpu.memory_space<vmem>>, %arg6: memref<48x1xf32, #tpu.memory_space<vmem>>, %arg7: memref<48x9xf32, #tpu.memory_space<vmem>>, %arg8: memref<48x1xf32, #tpu.memory_space<vmem>>, %arg9: memref<16x1xf32, #tpu.memory_space<vmem>>, %arg10: memref<16x16xf32, #tpu.memory_space<vmem>>, %arg11: memref<16x16xf32, #tpu.memory_space<vmem>>, %arg12: memref<16x1xf32, #tpu.memory_space<vmem>>, %arg13: memref<16x1xf32, #tpu.memory_space<vmem>>, %arg14: memref<16x1xf32, #tpu.memory_space<vmem>>, %arg15: memref<64x16xf32, #tpu.memory_space<vmem>>, %arg16: memref<64x1xf32, #tpu.memory_space<vmem>>, %arg17: memref<64x9xf32, #tpu.memory_space<vmem>>, %arg18: memref<64x1xf32, #tpu.memory_space<vmem>>, %arg19: memref<16x32xf32, #tpu.memory_space<vmem>>, %arg20: memref<16x1xf32, #tpu.memory_space<vmem>>, %arg21: memref<1x16x256xf32, #tpu.memory_space<vmem>>) attributes {dimension_semantics = [#tpu.dimension_semantics<parallel>], iteration_bounds = array<i64: 2>, scalar_prefetch = 0 : i64, scratch_operands = 0 : i64, tpu.core_type = #tpu.core_type<tc>, window_params = [{transform_indices = @transform_0, window_bounds = array<i64: 1, 16, 256>}, {pipeline_mode = #tpu.pipeline_mode<synchronous>, transform_indices = @transform_1, window_bounds = array<i64: 9, 256>}, {pipeline_mode = #tpu.pipeline_mode<synchronous>, transform_indices = @transform_2, window_bounds = array<i64: 16, 1>}, {pipeline_mode = #tpu.pipeline_mode<synchronous>, transform_indices = @transform_3, window_bounds = array<i64: 16, 1>}, {pipeline_mode = #tpu.pipeline_mode<synchronous>, transform_indices = @transform_4, window_bounds = array<i64: 48, 16>}, {pipeline_mode = #tpu.pipeline_mode<synchronous>, transform_indices = @transform_5, window_bounds = array<i64: 48, 1>}, {pipeline_mode = #tpu.pipeline_mode<synchronous>, transform_indices = @transform_6, window_bounds = array<i64: 48, 9>}, {pipeline_mode = #tpu.pipeline_mode<synchronous>, transform_indices = @transform_7, window_bounds = array<i64: 48, 1>}, {pipeline_mode = #tpu.pipeline_mode<synchronous>, transform_indices = @transform_8, window_bounds = array<i64: 16, 1>}, {pipeline_mode = #tpu.pipeline_mode<synchronous>, transform_indices = @transform_9, window_bounds = array<i64: 16, 16>}, {pipeline_mode = #tpu.pipeline_mode<synchronous>, transform_indices = @transform_10, window_bounds = array<i64: 16, 16>}, {pipeline_mode = #tpu.pipeline_mode<synchronous>, transform_indices = @transform_11, window_bounds = array<i64: 16, 1>}, {pipeline_mode = #tpu.pipeline_mode<synchronous>, transform_indices = @transform_12, window_bounds = array<i64: 16, 1>}, {pipeline_mode = #tpu.pipeline_mode<synchronous>, transform_indices = @transform_13, window_bounds = array<i64: 16, 1>}, {pipeline_mode = #tpu.pipeline_mode<synchronous>, transform_indices = @transform_14, window_bounds = array<i64: 64, 16>}, {pipeline_mode = #tpu.pipeline_mode<synchronous>, transform_indices = @transform_15, window_bounds = array<i64: 64, 1>}, {pipeline_mode = #tpu.pipeline_mode<synchronous>, transform_indices = @transform_16, window_bounds = array<i64: 64, 9>}, {pipeline_mode = #tpu.pipeline_mode<synchronous>, transform_indices = @transform_17, window_bounds = array<i64: 64, 1>}, {pipeline_mode = #tpu.pipeline_mode<synchronous>, transform_indices = @transform_18, window_bounds = array<i64: 16, 32>}, {pipeline_mode = #tpu.pipeline_mode<synchronous>, transform_indices = @transform_19, window_bounds = array<i64: 16, 1>}, {transform_indices = @transform_20, window_bounds = array<i64: 1, 16, 256>}]} {
    %c0 = arith.constant 0 : index
    %c0_0 = arith.constant 0 : index
    %c0_1 = arith.constant 0 : index
    %0 = vector.load %arg1[%c0, %c0_0, %c0_1] : memref<1x16x256xf32, #tpu.memory_space<vmem>>, vector<1x16x256xf32>
    %1 = vector.shape_cast %0 : vector<1x16x256xf32> to vector<16x256xf32>
    %c0_2 = arith.constant 0 : index
    %c0_3 = arith.constant 0 : index
    %2 = vector.load %arg2[%c0_2, %c0_3] : memref<9x256xf32, #tpu.memory_space<vmem>>, vector<9x256xf32>
    %c0_4 = arith.constant 0 : index
    %c0_5 = arith.constant 0 : index
    %3 = vector.load %arg3[%c0_4, %c0_5] : memref<16x1xf32, #tpu.memory_space<vmem>>, vector<16x1xf32>
    %c0_6 = arith.constant 0 : index
    %c0_7 = arith.constant 0 : index
    %4 = vector.load %arg4[%c0_6, %c0_7] : memref<16x1xf32, #tpu.memory_space<vmem>>, vector<16x1xf32>
    %cst = arith.constant dense<0.000000e+00> : vector<256xf32>
    %5 = vector.multi_reduction <add>, %1, %cst [0] : vector<16x256xf32> to vector<256xf32>
    %6 = vector.shape_cast %5 : vector<256xf32> to vector<1x256xf32>
    %cst_8 = arith.constant 1.600000e+01 : f32
    %7 = vector.broadcast %cst_8 : f32 to vector<1x256xf32>
    %8 = arith.divf %6, %7 : vector<1x256xf32>
    %9 = vector.broadcast %8 : vector<1x256xf32> to vector<16x256xf32>
    %10 = arith.subf %1, %9 : vector<16x256xf32>
    %11 = arith.mulf %10, %10 : vector<16x256xf32>
    %cst_9 = arith.constant dense<0.000000e+00> : vector<256xf32>
    %12 = vector.multi_reduction <add>, %11, %cst_9 [0] : vector<16x256xf32> to vector<256xf32>
    %13 = vector.shape_cast %12 : vector<256xf32> to vector<1x256xf32>
    %cst_10 = arith.constant 1.600000e+01 : f32
    %14 = vector.broadcast %cst_10 : f32 to vector<1x256xf32>
    %15 = arith.divf %13, %14 : vector<1x256xf32>
    %16 = vector.broadcast %8 : vector<1x256xf32> to vector<16x256xf32>
    %17 = arith.subf %1, %16 : vector<16x256xf32>
    %cst_11 = arith.constant 9.99999974E-6 : f32
    %18 = vector.broadcast %cst_11 : f32 to vector<1x256xf32>
    %19 = arith.addf %15, %18 : vector<1x256xf32>
    %20 = math.rsqrt %19 : vector<1x256xf32>
    %21 = vector.broadcast %20 : vector<1x256xf32> to vector<16x256xf32>
    %22 = arith.mulf %17, %21 : vector<16x256xf32>
    %23 = vector.broadcast %3 : vector<16x1xf32> to vector<16x256xf32>
    %24 = arith.mulf %22, %23 : vector<16x256xf32>
    %25 = vector.broadcast %4 : vector<16x1xf32> to vector<16x256xf32>
    %26 = arith.addf %24, %25 : vector<16x256xf32>
    %c0_12 = arith.constant 0 : index
    %c0_13 = arith.constant 0 : index
    %27 = vector.load %arg5[%c0_12, %c0_13] : memref<48x16xf32, #tpu.memory_space<vmem>>, vector<48x16xf32>
    %cst_14 = arith.constant dense<0.000000e+00> : vector<48x256xf32>
    %28 = tpu.matmul %27, %26, %cst_14 {dimension_numbers = #tpu.dot_dimension_numbers<[1], [0], [0], [1], [0, 0, 1, 1], [], []>} : vector<48x16xf32>, vector<16x256xf32>, vector<48x256xf32> -> vector<48x256xf32>
    %c0_15 = arith.constant 0 : index
    %c0_16 = arith.constant 0 : index
    %29 = vector.load %arg6[%c0_15, %c0_16] : memref<48x1xf32, #tpu.memory_space<vmem>>, vector<48x1xf32>
    %30 = vector.broadcast %29 : vector<48x1xf32> to vector<48x256xf32>
    %31 = arith.addf %28, %30 : vector<48x256xf32>
    %c0_17 = arith.constant 0 : index
    %c0_18 = arith.constant 0 : index
    %32 = vector.load %arg7[%c0_17, %c0_18] : memref<48x9xf32, #tpu.memory_space<vmem>>, vector<48x9xf32>
    %c0_19 = arith.constant 0 : index
    %c0_20 = arith.constant 0 : index
    %33 = vector.load %arg8[%c0_19, %c0_20] : memref<48x1xf32, #tpu.memory_space<vmem>>, vector<48x1xf32>
    %34 = vector.extract_strided_slice %32 {offsets = [0, 4], sizes = [48, 1], strides = [1, 1]} : vector<48x9xf32> to vector<48x1xf32>
    %35 = vector.broadcast %34 : vector<48x1xf32> to vector<48x256xf32>
    %36 = arith.mulf %35, %31 : vector<48x256xf32>
    %37 = vector.broadcast %33 : vector<48x1xf32> to vector<48x256xf32>
    %38 = arith.addf %36, %37 : vector<48x256xf32>
    %c17_i32 = arith.constant 17 : i32
    %39 = tpu.dynamic_rotate %31 by %c17_i32 dim 1 : vector<48x256xf32>, i32 -> vector<48x256xf32>
    %40 = vector.extract_strided_slice %32 {offsets = [0, 0], sizes = [48, 1], strides = [1, 1]} : vector<48x9xf32> to vector<48x1xf32>
    %41 = vector.extract_strided_slice %2 {offsets = [0, 0], sizes = [1, 256], strides = [1, 1]} : vector<9x256xf32> to vector<1x256xf32>
    %42 = vector.broadcast %41 : vector<1x256xf32> to vector<48x256xf32>
    %43 = arith.mulf %39, %42 : vector<48x256xf32>
    %44 = vector.broadcast %40 : vector<48x1xf32> to vector<48x256xf32>
    %45 = arith.mulf %44, %43 : vector<48x256xf32>
    %46 = arith.addf %38, %45 : vector<48x256xf32>
    %c16_i32 = arith.constant 16 : i32
    %47 = tpu.dynamic_rotate %31 by %c16_i32 dim 1 : vector<48x256xf32>, i32 -> vector<48x256xf32>
    %48 = vector.extract_strided_slice %32 {offsets = [0, 1], sizes = [48, 1], strides = [1, 1]} : vector<48x9xf32> to vector<48x1xf32>
    %49 = vector.extract_strided_slice %2 {offsets = [1, 0], sizes = [1, 256], strides = [1, 1]} : vector<9x256xf32> to vector<1x256xf32>
    %50 = vector.broadcast %49 : vector<1x256xf32> to vector<48x256xf32>
    %51 = arith.mulf %47, %50 : vector<48x256xf32>
    %52 = vector.broadcast %48 : vector<48x1xf32> to vector<48x256xf32>
    %53 = arith.mulf %52, %51 : vector<48x256xf32>
    %54 = arith.addf %46, %53 : vector<48x256xf32>
    %c15_i32 = arith.constant 15 : i32
    %55 = tpu.dynamic_rotate %31 by %c15_i32 dim 1 : vector<48x256xf32>, i32 -> vector<48x256xf32>
    %56 = vector.extract_strided_slice %32 {offsets = [0, 2], sizes = [48, 1], strides = [1, 1]} : vector<48x9xf32> to vector<48x1xf32>
    %57 = vector.extract_strided_slice %2 {offsets = [2, 0], sizes = [1, 256], strides = [1, 1]} : vector<9x256xf32> to vector<1x256xf32>
    %58 = vector.broadcast %57 : vector<1x256xf32> to vector<48x256xf32>
    %59 = arith.mulf %55, %58 : vector<48x256xf32>
    %60 = vector.broadcast %56 : vector<48x1xf32> to vector<48x256xf32>
    %61 = arith.mulf %60, %59 : vector<48x256xf32>
    %62 = arith.addf %54, %61 : vector<48x256xf32>
    %c1_i32 = arith.constant 1 : i32
    %63 = tpu.dynamic_rotate %31 by %c1_i32 dim 1 : vector<48x256xf32>, i32 -> vector<48x256xf32>
    %64 = vector.extract_strided_slice %32 {offsets = [0, 3], sizes = [48, 1], strides = [1, 1]} : vector<48x9xf32> to vector<48x1xf32>
    %65 = vector.extract_strided_slice %2 {offsets = [3, 0], sizes = [1, 256], strides = [1, 1]} : vector<9x256xf32> to vector<1x256xf32>
    %66 = vector.broadcast %65 : vector<1x256xf32> to vector<48x256xf32>
    %67 = arith.mulf %63, %66 : vector<48x256xf32>
    %68 = vector.broadcast %64 : vector<48x1xf32> to vector<48x256xf32>
    %69 = arith.mulf %68, %67 : vector<48x256xf32>
    %70 = arith.addf %62, %69 : vector<48x256xf32>
    %c255_i32 = arith.constant 255 : i32
    %71 = tpu.dynamic_rotate %31 by %c255_i32 dim 1 : vector<48x256xf32>, i32 -> vector<48x256xf32>
    %72 = vector.extract_strided_slice %32 {offsets = [0, 5], sizes = [48, 1], strides = [1, 1]} : vector<48x9xf32> to vector<48x1xf32>
    %73 = vector.extract_strided_slice %2 {offsets = [5, 0], sizes = [1, 256], strides = [1, 1]} : vector<9x256xf32> to vector<1x256xf32>
    %74 = vector.broadcast %73 : vector<1x256xf32> to vector<48x256xf32>
    %75 = arith.mulf %71, %74 : vector<48x256xf32>
    %76 = vector.broadcast %72 : vector<48x1xf32> to vector<48x256xf32>
    %77 = arith.mulf %76, %75 : vector<48x256xf32>
    %78 = arith.addf %70, %77 : vector<48x256xf32>
    %c241_i32 = arith.constant 241 : i32
    %79 = tpu.dynamic_rotate %31 by %c241_i32 dim 1 : vector<48x256xf32>, i32 -> vector<48x256xf32>
    %80 = vector.extract_strided_slice %32 {offsets = [0, 6], sizes = [48, 1], strides = [1, 1]} : vector<48x9xf32> to vector<48x1xf32>
    %81 = vector.extract_strided_slice %2 {offsets = [6, 0], sizes = [1, 256], strides = [1, 1]} : vector<9x256xf32> to vector<1x256xf32>
    %82 = vector.broadcast %81 : vector<1x256xf32> to vector<48x256xf32>
    %83 = arith.mulf %79, %82 : vector<48x256xf32>
    %84 = vector.broadcast %80 : vector<48x1xf32> to vector<48x256xf32>
    %85 = arith.mulf %84, %83 : vector<48x256xf32>
    %86 = arith.addf %78, %85 : vector<48x256xf32>
    %c240_i32 = arith.constant 240 : i32
    %87 = tpu.dynamic_rotate %31 by %c240_i32 dim 1 : vector<48x256xf32>, i32 -> vector<48x256xf32>
    %88 = vector.extract_strided_slice %32 {offsets = [0, 7], sizes = [48, 1], strides = [1, 1]} : vector<48x9xf32> to vector<48x1xf32>
    %89 = vector.extract_strided_slice %2 {offsets = [7, 0], sizes = [1, 256], strides = [1, 1]} : vector<9x256xf32> to vector<1x256xf32>
    %90 = vector.broadcast %89 : vector<1x256xf32> to vector<48x256xf32>
    %91 = arith.mulf %87, %90 : vector<48x256xf32>
    %92 = vector.broadcast %88 : vector<48x1xf32> to vector<48x256xf32>
    %93 = arith.mulf %92, %91 : vector<48x256xf32>
    %94 = arith.addf %86, %93 : vector<48x256xf32>
    %c239_i32 = arith.constant 239 : i32
    %95 = tpu.dynamic_rotate %31 by %c239_i32 dim 1 : vector<48x256xf32>, i32 -> vector<48x256xf32>
    %96 = vector.extract_strided_slice %32 {offsets = [0, 8], sizes = [48, 1], strides = [1, 1]} : vector<48x9xf32> to vector<48x1xf32>
    %97 = vector.extract_strided_slice %2 {offsets = [8, 0], sizes = [1, 256], strides = [1, 1]} : vector<9x256xf32> to vector<1x256xf32>
    %98 = vector.broadcast %97 : vector<1x256xf32> to vector<48x256xf32>
    %99 = arith.mulf %95, %98 : vector<48x256xf32>
    %100 = vector.broadcast %96 : vector<48x1xf32> to vector<48x256xf32>
    %101 = arith.mulf %100, %99 : vector<48x256xf32>
    %102 = arith.addf %94, %101 : vector<48x256xf32>
    %103 = vector.extract_strided_slice %102 {offsets = [0, 0], sizes = [16, 256], strides = [1, 1]} : vector<48x256xf32> to vector<16x256xf32>
    %104 = vector.extract_strided_slice %102 {offsets = [16, 0], sizes = [16, 256], strides = [1, 1]} : vector<48x256xf32> to vector<16x256xf32>
    %105 = vector.extract_strided_slice %102 {offsets = [32, 0], sizes = [16, 256], strides = [1, 1]} : vector<48x256xf32> to vector<16x256xf32>
    %106 = arith.mulf %103, %103 : vector<16x256xf32>
    %cst_21 = arith.constant dense<0.000000e+00> : vector<16xf32>
    %107 = vector.multi_reduction <add>, %106, %cst_21 [1] : vector<16x256xf32> to vector<16xf32>
    %108 = vector.shape_cast %107 : vector<16xf32> to vector<16x1xf32>
    %cst_22 = arith.constant 1.000000e-24 : f32
    %109 = vector.broadcast %cst_22 : f32 to vector<16x1xf32>
    %110 = arith.maximumf %108, %109 : vector<16x1xf32>
    %111 = math.rsqrt %110 : vector<16x1xf32>
    %112 = vector.broadcast %111 : vector<16x1xf32> to vector<16x256xf32>
    %113 = arith.mulf %103, %112 : vector<16x256xf32>
    %114 = arith.mulf %104, %104 : vector<16x256xf32>
    %cst_23 = arith.constant dense<0.000000e+00> : vector<16xf32>
    %115 = vector.multi_reduction <add>, %114, %cst_23 [1] : vector<16x256xf32> to vector<16xf32>
    %116 = vector.shape_cast %115 : vector<16xf32> to vector<16x1xf32>
    %cst_24 = arith.constant 1.000000e-24 : f32
    %117 = vector.broadcast %cst_24 : f32 to vector<16x1xf32>
    %118 = arith.maximumf %116, %117 : vector<16x1xf32>
    %119 = math.rsqrt %118 : vector<16x1xf32>
    %120 = vector.broadcast %119 : vector<16x1xf32> to vector<16x256xf32>
    %121 = arith.mulf %104, %120 : vector<16x256xf32>
    %cst_25 = arith.constant dense<0.000000e+00> : vector<16x16xf32>
    %122 = tpu.matmul %113, %121, %cst_25 {dimension_numbers = #tpu.dot_dimension_numbers<[1], [1], [0], [0], [0, 0, 1, 0], [], []>} : vector<16x256xf32>, vector<16x256xf32>, vector<16x16xf32> -> vector<16x16xf32>
    %c0_26 = arith.constant 0 : index
    %c0_27 = arith.constant 0 : index
    %123 = vector.load %arg9[%c0_26, %c0_27] : memref<16x1xf32, #tpu.memory_space<vmem>>, vector<16x1xf32>
    %124 = vector.broadcast %123 : vector<16x1xf32> to vector<16x16xf32>
    %125 = arith.mulf %122, %124 : vector<16x16xf32>
    %c0_28 = arith.constant 0 : index
    %c0_29 = arith.constant 0 : index
    %126 = vector.load %arg10[%c0_28, %c0_29] : memref<16x16xf32, #tpu.memory_space<vmem>>, vector<16x16xf32>
    %127 = arith.addf %125, %126 : vector<16x16xf32>
    %cst_30 = arith.constant dense<0xFF800000> : vector<16xf32>
    %128 = vector.multi_reduction <maximumf>, %127, %cst_30 [1] : vector<16x16xf32> to vector<16xf32>
    %129 = vector.shape_cast %128 : vector<16xf32> to vector<16x1xf32>
    %130 = vector.broadcast %129 : vector<16x1xf32> to vector<16x16xf32>
    %131 = arith.subf %127, %130 : vector<16x16xf32>
    %132 = math.exp %131 : vector<16x16xf32>
    %cst_31 = arith.constant dense<0.000000e+00> : vector<16xf32>
    %133 = vector.multi_reduction <add>, %132, %cst_31 [1] : vector<16x16xf32> to vector<16xf32>
    %134 = vector.shape_cast %133 : vector<16xf32> to vector<16x1xf32>
    %135 = tpu.reciprocal %134 {approx = true} : vector<16x1xf32> -> vector<16x1xf32>
    %136 = vector.broadcast %135 : vector<16x1xf32> to vector<16x16xf32>
    %137 = arith.mulf %132, %136 : vector<16x16xf32>
    %cst_32 = arith.constant dense<0.000000e+00> : vector<16x256xf32>
    %138 = tpu.matmul %137, %105, %cst_32 {dimension_numbers = #tpu.dot_dimension_numbers<[1], [0], [0], [1], [0, 0, 1, 1], [], []>} : vector<16x16xf32>, vector<16x256xf32>, vector<16x256xf32> -> vector<16x256xf32>
    %c0_33 = arith.constant 0 : index
    %c0_34 = arith.constant 0 : index
    %139 = vector.load %arg11[%c0_33, %c0_34] : memref<16x16xf32, #tpu.memory_space<vmem>>, vector<16x16xf32>
    %cst_35 = arith.constant dense<0.000000e+00> : vector<16x256xf32>
    %140 = tpu.matmul %139, %138, %cst_35 {dimension_numbers = #tpu.dot_dimension_numbers<[1], [0], [0], [1], [0, 0, 1, 1], [], []>} : vector<16x16xf32>, vector<16x256xf32>, vector<16x256xf32> -> vector<16x256xf32>
    %141 = arith.addf %1, %140 : vector<16x256xf32>
    %c0_36 = arith.constant 0 : index
    %c0_37 = arith.constant 0 : index
    %142 = vector.load %arg12[%c0_36, %c0_37] : memref<16x1xf32, #tpu.memory_space<vmem>>, vector<16x1xf32>
    %143 = vector.broadcast %142 : vector<16x1xf32> to vector<16x256xf32>
    %144 = arith.addf %141, %143 : vector<16x256xf32>
    %c0_38 = arith.constant 0 : index
    %c0_39 = arith.constant 0 : index
    %145 = vector.load %arg13[%c0_38, %c0_39] : memref<16x1xf32, #tpu.memory_space<vmem>>, vector<16x1xf32>
    %c0_40 = arith.constant 0 : index
    %c0_41 = arith.constant 0 : index
    %146 = vector.load %arg14[%c0_40, %c0_41] : memref<16x1xf32, #tpu.memory_space<vmem>>, vector<16x1xf32>
    %cst_42 = arith.constant dense<0.000000e+00> : vector<256xf32>
    %147 = vector.multi_reduction <add>, %144, %cst_42 [0] : vector<16x256xf32> to vector<256xf32>
    %148 = vector.shape_cast %147 : vector<256xf32> to vector<1x256xf32>
    %cst_43 = arith.constant 1.600000e+01 : f32
    %149 = vector.broadcast %cst_43 : f32 to vector<1x256xf32>
    %150 = arith.divf %148, %149 : vector<1x256xf32>
    %151 = vector.broadcast %150 : vector<1x256xf32> to vector<16x256xf32>
    %152 = arith.subf %144, %151 : vector<16x256xf32>
    %153 = arith.mulf %152, %152 : vector<16x256xf32>
    %cst_44 = arith.constant dense<0.000000e+00> : vector<256xf32>
    %154 = vector.multi_reduction <add>, %153, %cst_44 [0] : vector<16x256xf32> to vector<256xf32>
    %155 = vector.shape_cast %154 : vector<256xf32> to vector<1x256xf32>
    %cst_45 = arith.constant 1.600000e+01 : f32
    %156 = vector.broadcast %cst_45 : f32 to vector<1x256xf32>
    %157 = arith.divf %155, %156 : vector<1x256xf32>
    %158 = vector.broadcast %150 : vector<1x256xf32> to vector<16x256xf32>
    %159 = arith.subf %144, %158 : vector<16x256xf32>
    %cst_46 = arith.constant 9.99999974E-6 : f32
    %160 = vector.broadcast %cst_46 : f32 to vector<1x256xf32>
    %161 = arith.addf %157, %160 : vector<1x256xf32>
    %162 = math.rsqrt %161 : vector<1x256xf32>
    %163 = vector.broadcast %162 : vector<1x256xf32> to vector<16x256xf32>
    %164 = arith.mulf %159, %163 : vector<16x256xf32>
    %165 = vector.broadcast %145 : vector<16x1xf32> to vector<16x256xf32>
    %166 = arith.mulf %164, %165 : vector<16x256xf32>
    %167 = vector.broadcast %146 : vector<16x1xf32> to vector<16x256xf32>
    %168 = arith.addf %166, %167 : vector<16x256xf32>
    %c0_47 = arith.constant 0 : index
    %c0_48 = arith.constant 0 : index
    %169 = vector.load %arg15[%c0_47, %c0_48] : memref<64x16xf32, #tpu.memory_space<vmem>>, vector<64x16xf32>
    %cst_49 = arith.constant dense<0.000000e+00> : vector<64x256xf32>
    %170 = tpu.matmul %169, %168, %cst_49 {dimension_numbers = #tpu.dot_dimension_numbers<[1], [0], [0], [1], [0, 0, 1, 1], [], []>} : vector<64x16xf32>, vector<16x256xf32>, vector<64x256xf32> -> vector<64x256xf32>
    %c0_50 = arith.constant 0 : index
    %c0_51 = arith.constant 0 : index
    %171 = vector.load %arg16[%c0_50, %c0_51] : memref<64x1xf32, #tpu.memory_space<vmem>>, vector<64x1xf32>
    %172 = vector.broadcast %171 : vector<64x1xf32> to vector<64x256xf32>
    %173 = arith.addf %170, %172 : vector<64x256xf32>
    %c0_52 = arith.constant 0 : index
    %c0_53 = arith.constant 0 : index
    %174 = vector.load %arg17[%c0_52, %c0_53] : memref<64x9xf32, #tpu.memory_space<vmem>>, vector<64x9xf32>
    %c0_54 = arith.constant 0 : index
    %c0_55 = arith.constant 0 : index
    %175 = vector.load %arg18[%c0_54, %c0_55] : memref<64x1xf32, #tpu.memory_space<vmem>>, vector<64x1xf32>
    %176 = vector.extract_strided_slice %174 {offsets = [0, 4], sizes = [64, 1], strides = [1, 1]} : vector<64x9xf32> to vector<64x1xf32>
    %177 = vector.broadcast %176 : vector<64x1xf32> to vector<64x256xf32>
    %178 = arith.mulf %177, %173 : vector<64x256xf32>
    %179 = vector.broadcast %175 : vector<64x1xf32> to vector<64x256xf32>
    %180 = arith.addf %178, %179 : vector<64x256xf32>
    %c17_i32_56 = arith.constant 17 : i32
    %181 = tpu.dynamic_rotate %173 by %c17_i32_56 dim 1 : vector<64x256xf32>, i32 -> vector<64x256xf32>
    %182 = vector.extract_strided_slice %174 {offsets = [0, 0], sizes = [64, 1], strides = [1, 1]} : vector<64x9xf32> to vector<64x1xf32>
    %183 = vector.extract_strided_slice %2 {offsets = [0, 0], sizes = [1, 256], strides = [1, 1]} : vector<9x256xf32> to vector<1x256xf32>
    %184 = vector.broadcast %183 : vector<1x256xf32> to vector<64x256xf32>
    %185 = arith.mulf %181, %184 : vector<64x256xf32>
    %186 = vector.broadcast %182 : vector<64x1xf32> to vector<64x256xf32>
    %187 = arith.mulf %186, %185 : vector<64x256xf32>
    %188 = arith.addf %180, %187 : vector<64x256xf32>
    %c16_i32_57 = arith.constant 16 : i32
    %189 = tpu.dynamic_rotate %173 by %c16_i32_57 dim 1 : vector<64x256xf32>, i32 -> vector<64x256xf32>
    %190 = vector.extract_strided_slice %174 {offsets = [0, 1], sizes = [64, 1], strides = [1, 1]} : vector<64x9xf32> to vector<64x1xf32>
    %191 = vector.extract_strided_slice %2 {offsets = [1, 0], sizes = [1, 256], strides = [1, 1]} : vector<9x256xf32> to vector<1x256xf32>
    %192 = vector.broadcast %191 : vector<1x256xf32> to vector<64x256xf32>
    %193 = arith.mulf %189, %192 : vector<64x256xf32>
    %194 = vector.broadcast %190 : vector<64x1xf32> to vector<64x256xf32>
    %195 = arith.mulf %194, %193 : vector<64x256xf32>
    %196 = arith.addf %188, %195 : vector<64x256xf32>
    %c15_i32_58 = arith.constant 15 : i32
    %197 = tpu.dynamic_rotate %173 by %c15_i32_58 dim 1 : vector<64x256xf32>, i32 -> vector<64x256xf32>
    %198 = vector.extract_strided_slice %174 {offsets = [0, 2], sizes = [64, 1], strides = [1, 1]} : vector<64x9xf32> to vector<64x1xf32>
    %199 = vector.extract_strided_slice %2 {offsets = [2, 0], sizes = [1, 256], strides = [1, 1]} : vector<9x256xf32> to vector<1x256xf32>
    %200 = vector.broadcast %199 : vector<1x256xf32> to vector<64x256xf32>
    %201 = arith.mulf %197, %200 : vector<64x256xf32>
    %202 = vector.broadcast %198 : vector<64x1xf32> to vector<64x256xf32>
    %203 = arith.mulf %202, %201 : vector<64x256xf32>
    %204 = arith.addf %196, %203 : vector<64x256xf32>
    %c1_i32_59 = arith.constant 1 : i32
    %205 = tpu.dynamic_rotate %173 by %c1_i32_59 dim 1 : vector<64x256xf32>, i32 -> vector<64x256xf32>
    %206 = vector.extract_strided_slice %174 {offsets = [0, 3], sizes = [64, 1], strides = [1, 1]} : vector<64x9xf32> to vector<64x1xf32>
    %207 = vector.extract_strided_slice %2 {offsets = [3, 0], sizes = [1, 256], strides = [1, 1]} : vector<9x256xf32> to vector<1x256xf32>
    %208 = vector.broadcast %207 : vector<1x256xf32> to vector<64x256xf32>
    %209 = arith.mulf %205, %208 : vector<64x256xf32>
    %210 = vector.broadcast %206 : vector<64x1xf32> to vector<64x256xf32>
    %211 = arith.mulf %210, %209 : vector<64x256xf32>
    %212 = arith.addf %204, %211 : vector<64x256xf32>
    %c255_i32_60 = arith.constant 255 : i32
    %213 = tpu.dynamic_rotate %173 by %c255_i32_60 dim 1 : vector<64x256xf32>, i32 -> vector<64x256xf32>
    %214 = vector.extract_strided_slice %174 {offsets = [0, 5], sizes = [64, 1], strides = [1, 1]} : vector<64x9xf32> to vector<64x1xf32>
    %215 = vector.extract_strided_slice %2 {offsets = [5, 0], sizes = [1, 256], strides = [1, 1]} : vector<9x256xf32> to vector<1x256xf32>
    %216 = vector.broadcast %215 : vector<1x256xf32> to vector<64x256xf32>
    %217 = arith.mulf %213, %216 : vector<64x256xf32>
    %218 = vector.broadcast %214 : vector<64x1xf32> to vector<64x256xf32>
    %219 = arith.mulf %218, %217 : vector<64x256xf32>
    %220 = arith.addf %212, %219 : vector<64x256xf32>
    %c241_i32_61 = arith.constant 241 : i32
    %221 = tpu.dynamic_rotate %173 by %c241_i32_61 dim 1 : vector<64x256xf32>, i32 -> vector<64x256xf32>
    %222 = vector.extract_strided_slice %174 {offsets = [0, 6], sizes = [64, 1], strides = [1, 1]} : vector<64x9xf32> to vector<64x1xf32>
    %223 = vector.extract_strided_slice %2 {offsets = [6, 0], sizes = [1, 256], strides = [1, 1]} : vector<9x256xf32> to vector<1x256xf32>
    %224 = vector.broadcast %223 : vector<1x256xf32> to vector<64x256xf32>
    %225 = arith.mulf %221, %224 : vector<64x256xf32>
    %226 = vector.broadcast %222 : vector<64x1xf32> to vector<64x256xf32>
    %227 = arith.mulf %226, %225 : vector<64x256xf32>
    %228 = arith.addf %220, %227 : vector<64x256xf32>
    %c240_i32_62 = arith.constant 240 : i32
    %229 = tpu.dynamic_rotate %173 by %c240_i32_62 dim 1 : vector<64x256xf32>, i32 -> vector<64x256xf32>
    %230 = vector.extract_strided_slice %174 {offsets = [0, 7], sizes = [64, 1], strides = [1, 1]} : vector<64x9xf32> to vector<64x1xf32>
    %231 = vector.extract_strided_slice %2 {offsets = [7, 0], sizes = [1, 256], strides = [1, 1]} : vector<9x256xf32> to vector<1x256xf32>
    %232 = vector.broadcast %231 : vector<1x256xf32> to vector<64x256xf32>
    %233 = arith.mulf %229, %232 : vector<64x256xf32>
    %234 = vector.broadcast %230 : vector<64x1xf32> to vector<64x256xf32>
    %235 = arith.mulf %234, %233 : vector<64x256xf32>
    %236 = arith.addf %228, %235 : vector<64x256xf32>
    %c239_i32_63 = arith.constant 239 : i32
    %237 = tpu.dynamic_rotate %173 by %c239_i32_63 dim 1 : vector<64x256xf32>, i32 -> vector<64x256xf32>
    %238 = vector.extract_strided_slice %174 {offsets = [0, 8], sizes = [64, 1], strides = [1, 1]} : vector<64x9xf32> to vector<64x1xf32>
    %239 = vector.extract_strided_slice %2 {offsets = [8, 0], sizes = [1, 256], strides = [1, 1]} : vector<9x256xf32> to vector<1x256xf32>
    %240 = vector.broadcast %239 : vector<1x256xf32> to vector<64x256xf32>
    %241 = arith.mulf %237, %240 : vector<64x256xf32>
    %242 = vector.broadcast %238 : vector<64x1xf32> to vector<64x256xf32>
    %243 = arith.mulf %242, %241 : vector<64x256xf32>
    %244 = arith.addf %236, %243 : vector<64x256xf32>
    %245 = vector.extract_strided_slice %244 {offsets = [0, 0], sizes = [32, 256], strides = [1, 1]} : vector<64x256xf32> to vector<32x256xf32>
    %cst_64 = arith.constant 5.000000e-01 : f32
    %246 = vector.broadcast %cst_64 : f32 to vector<32x256xf32>
    %247 = arith.mulf %246, %245 : vector<32x256xf32>
    %cst_65 = arith.constant 0.707106769 : f32
    %248 = vector.broadcast %cst_65 : f32 to vector<32x256xf32>
    %249 = arith.mulf %245, %248 : vector<32x256xf32>
    %250 = math.erf %249 : vector<32x256xf32>
    %cst_66 = arith.constant 1.000000e+00 : f32
    %251 = vector.broadcast %cst_66 : f32 to vector<32x256xf32>
    %252 = arith.addf %251, %250 : vector<32x256xf32>
    %253 = arith.mulf %247, %252 : vector<32x256xf32>
    %254 = vector.extract_strided_slice %244 {offsets = [32, 0], sizes = [32, 256], strides = [1, 1]} : vector<64x256xf32> to vector<32x256xf32>
    %255 = arith.mulf %253, %254 : vector<32x256xf32>
    %c0_67 = arith.constant 0 : index
    %c0_68 = arith.constant 0 : index
    %256 = vector.load %arg19[%c0_67, %c0_68] : memref<16x32xf32, #tpu.memory_space<vmem>>, vector<16x32xf32>
    %cst_69 = arith.constant dense<0.000000e+00> : vector<16x256xf32>
    %257 = tpu.matmul %256, %255, %cst_69 {dimension_numbers = #tpu.dot_dimension_numbers<[1], [0], [0], [1], [0, 0, 1, 1], [], []>} : vector<16x32xf32>, vector<32x256xf32>, vector<16x256xf32> -> vector<16x256xf32>
    %c0_70 = arith.constant 0 : index
    %c0_71 = arith.constant 0 : index
    %258 = vector.load %arg20[%c0_70, %c0_71] : memref<16x1xf32, #tpu.memory_space<vmem>>, vector<16x1xf32>
    %259 = vector.broadcast %258 : vector<16x1xf32> to vector<16x256xf32>
    %260 = arith.addf %257, %259 : vector<16x256xf32>
    %261 = arith.addf %144, %260 : vector<16x256xf32>
    %c0_72 = arith.constant 0 : index
    %c0_73 = arith.constant 0 : index
    %c0_74 = arith.constant 0 : index
    %262 = vector.load %arg21[%c0_72, %c0_73, %c0_74] : memref<1x16x256xf32, #tpu.memory_space<vmem>>, vector<1x16x256xf32>
    %263 = vector.shape_cast %262 : vector<1x16x256xf32> to vector<16x256xf32>
    %264 = vector.shape_cast %261 : vector<16x256xf32> to vector<1x16x256xf32>
    tpu.vector_store %arg21[%c0_72, %c0_73, %c0_74], %264 {strides = array<i32>} : memref<1x16x256xf32, #tpu.memory_space<vmem>>, vector<1x16x256xf32>,
    return
  }
  func.func @transform_0(%arg0: i32) -> (i32, i32, i32) {
    %c0_i32 = arith.constant 0 : i32
    %c0_i32_0 = arith.constant 0 : i32
    %c0_i32_1 = arith.constant 0 : i32
    return %arg0, %c0_i32, %c0_i32_0 : i32, i32, i32
  }
  func.func @transform_1(%arg0: i32) -> (i32, i32) {
    %c0_i32 = arith.constant 0 : i32
    %c0_i32_0 = arith.constant 0 : i32
    %c0_i32_1 = arith.constant 0 : i32
    return %c0_i32, %c0_i32_0 : i32, i32
  }
  func.func @transform_2(%arg0: i32) -> (i32, i32) {
    %c0_i32 = arith.constant 0 : i32
    %c0_i32_0 = arith.constant 0 : i32
    %c0_i32_1 = arith.constant 0 : i32
    return %c0_i32, %c0_i32_0 : i32, i32
  }
  func.func @transform_3(%arg0: i32) -> (i32, i32) {
    %c0_i32 = arith.constant 0 : i32
    %c0_i32_0 = arith.constant 0 : i32
    %c0_i32_1 = arith.constant 0 : i32
    return %c0_i32, %c0_i32_0 : i32, i32
  }
  func.func @transform_4(%arg0: i32) -> (i32, i32) {
    %c0_i32 = arith.constant 0 : i32
    %c0_i32_0 = arith.constant 0 : i32
    %c0_i32_1 = arith.constant 0 : i32
    return %c0_i32, %c0_i32_0 : i32, i32
  }
  func.func @transform_5(%arg0: i32) -> (i32, i32) {
    %c0_i32 = arith.constant 0 : i32
    %c0_i32_0 = arith.constant 0 : i32
    %c0_i32_1 = arith.constant 0 : i32
    return %c0_i32, %c0_i32_0 : i32, i32
  }
  func.func @transform_6(%arg0: i32) -> (i32, i32) {
    %c0_i32 = arith.constant 0 : i32
    %c0_i32_0 = arith.constant 0 : i32
    %c0_i32_1 = arith.constant 0 : i32
    return %c0_i32, %c0_i32_0 : i32, i32
  }
  func.func @transform_7(%arg0: i32) -> (i32, i32) {
    %c0_i32 = arith.constant 0 : i32
    %c0_i32_0 = arith.constant 0 : i32
    %c0_i32_1 = arith.constant 0 : i32
    return %c0_i32, %c0_i32_0 : i32, i32
  }
  func.func @transform_8(%arg0: i32) -> (i32, i32) {
    %c0_i32 = arith.constant 0 : i32
    %c0_i32_0 = arith.constant 0 : i32
    %c0_i32_1 = arith.constant 0 : i32
    return %c0_i32, %c0_i32_0 : i32, i32
  }
  func.func @transform_9(%arg0: i32) -> (i32, i32) {
    %c0_i32 = arith.constant 0 : i32
    %c0_i32_0 = arith.constant 0 : i32
    %c0_i32_1 = arith.constant 0 : i32
    return %c0_i32, %c0_i32_0 : i32, i32
  }
  func.func @transform_10(%arg0: i32) -> (i32, i32) {
    %c0_i32 = arith.constant 0 : i32
    %c0_i32_0 = arith.constant 0 : i32
    %c0_i32_1 = arith.constant 0 : i32
    return %c0_i32, %c0_i32_0 : i32, i32
  }
  func.func @transform_11(%arg0: i32) -> (i32, i32) {
    %c0_i32 = arith.constant 0 : i32
    %c0_i32_0 = arith.constant 0 : i32
    %c0_i32_1 = arith.constant 0 : i32
    return %c0_i32, %c0_i32_0 : i32, i32
  }
  func.func @transform_12(%arg0: i32) -> (i32, i32) {
    %c0_i32 = arith.constant 0 : i32
    %c0_i32_0 = arith.constant 0 : i32
    %c0_i32_1 = arith.constant 0 : i32
    return %c0_i32, %c0_i32_0 : i32, i32
  }
  func.func @transform_13(%arg0: i32) -> (i32, i32) {
    %c0_i32 = arith.constant 0 : i32
    %c0_i32_0 = arith.constant 0 : i32
    %c0_i32_1 = arith.constant 0 : i32
    return %c0_i32, %c0_i32_0 : i32, i32
  }
  func.func @transform_14(%arg0: i32) -> (i32, i32) {
    %c0_i32 = arith.constant 0 : i32
    %c0_i32_0 = arith.constant 0 : i32
    %c0_i32_1 = arith.constant 0 : i32
    return %c0_i32, %c0_i32_0 : i32, i32
  }
  func.func @transform_15(%arg0: i32) -> (i32, i32) {
    %c0_i32 = arith.constant 0 : i32
    %c0_i32_0 = arith.constant 0 : i32
    %c0_i32_1 = arith.constant 0 : i32
    return %c0_i32, %c0_i32_0 : i32, i32
  }
  func.func @transform_16(%arg0: i32) -> (i32, i32) {
    %c0_i32 = arith.constant 0 : i32
    %c0_i32_0 = arith.constant 0 : i32
    %c0_i32_1 = arith.constant 0 : i32
    return %c0_i32, %c0_i32_0 : i32, i32
  }
  func.func @transform_17(%arg0: i32) -> (i32, i32) {
    %c0_i32 = arith.constant 0 : i32
    %c0_i32_0 = arith.constant 0 : i32
    %c0_i32_1 = arith.constant 0 : i32
    return %c0_i32, %c0_i32_0 : i32, i32
  }
  func.func @transform_18(%arg0: i32) -> (i32, i32) {
    %c0_i32 = arith.constant 0 : i32
    %c0_i32_0 = arith.constant 0 : i32
    %c0_i32_1 = arith.constant 0 : i32
    return %c0_i32, %c0_i32_0 : i32, i32
  }
  func.func @transform_19(%arg0: i32) -> (i32, i32) {
    %c0_i32 = arith.constant 0 : i32
    %c0_i32_0 = arith.constant 0 : i32
    %c0_i32_1 = arith.constant 0 : i32
    return %c0_i32, %c0_i32_0 : i32, i32
  }
  func.func @transform_20(%arg0: i32) -> (i32, i32, i32) {
    %c0_i32 = arith.constant 0 : i32
    %c0_i32_0 = arith.constant 0 : i32
    %c0_i32_1 = arith.constant 0 : i32
    return %arg0, %c0_i32, %c0_i32_0 : i32, i32, i32
  }
}

</mosaic_0001>

<llo_original>
// kernel: tpu_custom_call.1
$region0: #{tpu_custom_call.1}
  #allocation0 [shape = 'u32[]', space=smem, size = 0x4, offset = 0x4, fixed_abs, tag = 'smem constant byte address 0x4 - core index']
  #allocation1 [shape = 'u32[144,128]{1,0:T(1,128)}', space=vmem, size = 0x12000, scoped, tag = 'internal scratch']
  %s0 = inlined_call_operand.vmem [shape: f32[2,16,256], index: 0, kind: input, shape index: {}]
  %s1 = inlined_call_operand.vmem [shape: f32[9,256], index: 1, kind: input, shape index: {}]
  %s2 = inlined_call_operand.vmem [shape: f32[16,1], index: 2, kind: input, shape index: {}]
  %s3 = inlined_call_operand.vmem [shape: f32[16,1], index: 3, kind: input, shape index: {}]
  %s4 = inlined_call_operand.vmem [shape: f32[48,16], index: 4, kind: input, shape index: {}]
  %s5 = inlined_call_operand.vmem [shape: f32[48,1], index: 5, kind: input, shape index: {}]
  %s6 = inlined_call_operand.vmem [shape: f32[48,9], index: 6, kind: input, shape index: {}]
  %s7 = inlined_call_operand.vmem [shape: f32[48,1], index: 7, kind: input, shape index: {}]
  %s8 = inlined_call_operand.vmem [shape: f32[16,1], index: 8, kind: input, shape index: {}]
  %s9 = inlined_call_operand.vmem [shape: f32[16,16], index: 9, kind: input, shape index: {}]
  %s10 = inlined_call_operand.vmem [shape: f32[16,16], index: 10, kind: input, shape index: {}]
  %s11 = inlined_call_operand.vmem [shape: f32[16,1], index: 11, kind: input, shape index: {}]
  %s12 = inlined_call_operand.vmem [shape: f32[16,1], index: 12, kind: input, shape index: {}]
  %s13 = inlined_call_operand.vmem [shape: f32[16,1], index: 13, kind: input, shape index: {}]
  %s14 = inlined_call_operand.vmem [shape: f32[64,16], index: 14, kind: input, shape index: {}]
  %s15 = inlined_call_operand.vmem [shape: f32[64,1], index: 15, kind: input, shape index: {}]
  %s16 = inlined_call_operand.vmem [shape: f32[64,9], index: 16, kind: input, shape index: {}]
  %s17 = inlined_call_operand.vmem [shape: f32[64,1], index: 17, kind: input, shape index: {}]
  %s18 = inlined_call_operand.vmem [shape: f32[16,32], index: 18, kind: input, shape index: {}]
  %s19 = inlined_call_operand.vmem [shape: f32[16,1], index: 19, kind: input, shape index: {}]
  %s20 = inlined_call_operand.hbm [shape: f32[2,16,256], index: 20, kind: output, shape index: {}]
  %s21 = sld [smem:[#allocation0]]
  $region113: #{tpu_custom_call.1} parent=0
    _
  %s23 = ssub.s32 1, %s21
  %s24 = scalar_select 0, %s23, %s21
  $region1: #{tpu_custom_call.1} parent=0
    #allocation2 [shape = 'u8[32768]{0}', space=vmem, size = 0x8000, scoped, tag = 'output window, operand 0']
    #allocation3 [shape = 's32[2]{0}', space=sflag, size = 0x8, scoped, tag = 'scoped memory for tpu_custom_call.1']
    %25 = vsyncpa [#allocation3], 0
    %s26 = scalar_lea.sflag [#allocation3], 1
    %27 = vsyncpa %s26, 0
    loop: start=0, step=1, limit=4
    $region2: #{tpu_custom_call.1} parent=1 // loop_pre_header
      _
    $region3: #{tpu_custom_call.1} parent=1 // loop_header
      %s29 = sphi 0, %s33
      %p30 = scmp.ge.s32.totalorder %s29, 4
      %s39 = sphi 0, %s41
      %s42 = sphi 0, %s39
      %s43 = sphi 0, %s42
      %s59 = sphi 0, %s43
      %s63 = sphi 0, %s63
      %s65 = sphi 0, %s63
      %s66 = sphi 0, %s65
      %s80 = sphi 0, %s66
      %s84 = sphi 0, %s84
      %s86 = sphi 0, %s84
      %s87 = sphi 0, %s86
      %s101 = sphi 0, %s87
      %s105 = sphi 0, %s105
      %s107 = sphi 0, %s105
      %s108 = sphi 0, %s107
      %s122 = sphi 0, %s108
      %s126 = sphi 0, %s126
      %s128 = sphi 0, %s126
      %s129 = sphi 0, %s128
      %s143 = sphi 0, %s129
      %s147 = sphi 0, %s147
      %s149 = sphi 0, %s147
      %s150 = sphi 0, %s149
      %s164 = sphi 0, %s150
      %s168 = sphi 0, %s168
      %s170 = sphi 0, %s168
      %s171 = sphi 0, %s170
      %s185 = sphi 0, %s171
      %s189 = sphi 0, %s189
      %s191 = sphi 0, %s189
      %s192 = sphi 0, %s191
      %s206 = sphi 0, %s192
      %s210 = sphi 0, %s210
      %s212 = sphi 0, %s210
      %s213 = sphi 0, %s212
      %s227 = sphi 0, %s213
      %s231 = sphi 0, %s231
      %s233 = sphi 0, %s231
      %s234 = sphi 0, %s233
      %s248 = sphi 0, %s234
      %s252 = sphi 0, %s252
      %s254 = sphi 0, %s252
      %s255 = sphi 0, %s254
      %s269 = sphi 0, %s255
      %s273 = sphi 0, %s273
      %s275 = sphi 0, %s273
      %s276 = sphi 0, %s275
      %s290 = sphi 0, %s276
      %s294 = sphi 0, %s294
      %s296 = sphi 0, %s294
      %s297 = sphi 0, %s296
      %s311 = sphi 0, %s297
      %s315 = sphi 0, %s315
      %s317 = sphi 0, %s315
      %s318 = sphi 0, %s317
      %s332 = sphi 0, %s318
      %s336 = sphi 0, %s336
      %s338 = sphi 0, %s336
      %s339 = sphi 0, %s338
      %s353 = sphi 0, %s339
      %s357 = sphi 0, %s357
      %s359 = sphi 0, %s357
      %s360 = sphi 0, %s359
      %s374 = sphi 0, %s360
      %s378 = sphi 0, %s378
      %s380 = sphi 0, %s378
      %s381 = sphi 0, %s380
      %s395 = sphi 0, %s381
      %s399 = sphi 0, %s399
      %s401 = sphi 0, %s399
      %s402 = sphi 0, %s401
      %s416 = sphi 0, %s402
      %s420 = sphi 0, %s420
      %s422 = sphi 0, %s420
      %s423 = sphi 0, %s422
      %s437 = sphi 0, %s423
      %s441 = sphi 0, %s441
      %s443 = sphi 0, %s441
      %s444 = sphi 0, %s443
      %s458 = sphi 0, %s444
      %s464 = sphi 0, %s466
      %s467 = sphi 0, %s464
      %s468 = sphi 0, %s467
      %s484 = sphi 0, %s468
    $region4: #{tpu_custom_call.1} parent=1 // loop_header_branch
      %32 = sbr.rel (%p30) target = $region8
    $region5: #{tpu_custom_call.1} parent=1 // loop_body
      %s34 = ssub.s32 %s29, 1
      %s35 = ssub.s32 %s29, 2
      %s36 = sadd.s32 %s29, 1
      %s37 = ssub.s32 %s29, %s36
      %p38 = scmp.eq.s32.totalorder %s37, 0
      %s40 = sadd.s32 %s39, 1
      %s41 = scalar_select %p38, %s39, %s40
      %p44 = pneg %p38
      %p45 = scmp.eq.s32.totalorder %s29, 1
      %p46 = por %p44, %p45
      %p47 = scmp.ne.s32.totalorder %s39, %s42
      %p48 = scmp.eq.s32.totalorder %s29, 0
      %p49 = por %p47, %p48
      %p50 = scmp.ne.s32.totalorder %s39, %s42
      %p51 = scmp.eq.s32.totalorder %s34, 1
      %p52 = por %p50, %p51
      %p53 = scmp.ne.s32.totalorder %s42, %s43
      %p54 = scmp.eq.s32.totalorder %s34, 0
      %p55 = por %p53, %p54
      %p56 = scmp.ne.s32.totalorder %s42, %s43
      %p57 = scmp.eq.s32.totalorder %s35, 1
      %p58 = por %p56, %p57
      %p60 = scmp.ne.s32.totalorder %s43, %s59
      %p61 = scmp.eq.s32.totalorder %s35, 0
      %p62 = por %p60, %p61
      %s64 = sadd.s32 %s63, 1
      %p67 = scmp.eq.s32.totalorder %s29, 1
      %p68 = scmp.ne.s32.totalorder %s63, %s65
      %p69 = scmp.eq.s32.totalorder %s29, 0
      %p70 = por %p68, %p69
      %p71 = scmp.ne.s32.totalorder %s63, %s65
      %p72 = scmp.eq.s32.totalorder %s34, 1
      %p73 = por %p71, %p72
      %p74 = scmp.ne.s32.totalorder %s65, %s66
      %p75 = scmp.eq.s32.totalorder %s34, 0
      %p76 = por %p74, %p75
      %p77 = scmp.ne.s32.totalorder %s65, %s66
      %p78 = scmp.eq.s32.totalorder %s35, 1
      %p79 = por %p77, %p78
      %p81 = scmp.ne.s32.totalorder %s66, %s80
      %p82 = scmp.eq.s32.totalorder %s35, 0
      %p83 = por %p81, %p82
      %s85 = sadd.s32 %s84, 1
      %p88 = scmp.eq.s32.totalorder %s29, 1
      %p89 = scmp.ne.s32.totalorder %s84, %s86
      %p90 = scmp.eq.s32.totalorder %s29, 0
      %p91 = por %p89, %p90
      %p92 = scmp.ne.s32.totalorder %s84, %s86
      %p93 = scmp.eq.s32.totalorder %s34, 1
      %p94 = por %p92, %p93
      %p95 = scmp.ne.s32.totalorder %s86, %s87
      %p96 = scmp.eq.s32.totalorder %s34, 0
      %p97 = por %p95, %p96
      %p98 = scmp.ne.s32.totalorder %s86, %s87
      %p99 = scmp.eq.s32.totalorder %s35, 1
      %p100 = por %p98, %p99
      %p102 = scmp.ne.s32.totalorder %s87, %s101
      %p103 = scmp.eq.s32.totalorder %s35, 0
      %p104 = por %p102, %p103
      %s106 = sadd.s32 %s105, 1
      %p109 = scmp.eq.s32.totalorder %s29, 1
      %p110 = scmp.ne.s32.totalorder %s105, %s107
      %p111 = scmp.eq.s32.totalorder %s29, 0
      %p112 = por %p110, %p111
      %p113 = scmp.ne.s32.totalorder %s105, %s107
      %p114 = scmp.eq.s32.totalorder %s34, 1
      %p115 = por %p113, %p114
      %p116 = scmp.ne.s32.totalorder %s107, %s108
      %p117 = scmp.eq.s32.totalorder %s34, 0
      %p118 = por %p116, %p117
      %p119 = scmp.ne.s32.totalorder %s107, %s108
      %p120 = scmp.eq.s32.totalorder %s35, 1
      %p121 = por %p119, %p120
      %p123 = scmp.ne.s32.totalorder %s108, %s122
      %p124 = scmp.eq.s32.totalorder %s35, 0
      %p125 = por %p123, %p124
      %s127 = sadd.s32 %s126, 1
      %p130 = scmp.eq.s32.totalorder %s29, 1
      %p131 = scmp.ne.s32.totalorder %s126, %s128
      %p132 = scmp.eq.s32.totalorder %s29, 0
      %p133 = por %p131, %p132
      %p134 = scmp.ne.s32.totalorder %s126, %s128
      %p135 = scmp.eq.s32.totalorder %s34, 1
      %p136 = por %p134, %p135
      %p137 = scmp.ne.s32.totalorder %s128, %s129
      %p138 = scmp.eq.s32.totalorder %s34, 0
      %p139 = por %p137, %p138
      %p140 = scmp.ne.s32.totalorder %s128, %s129
      %p141 = scmp.eq.s32.totalorder %s35, 1
      %p142 = por %p140, %p141
      %p144 = scmp.ne.s32.totalorder %s129, %s143
      %p145 = scmp.eq.s32.totalorder %s35, 0
      %p146 = por %p144, %p145
      %s148 = sadd.s32 %s147, 1
      %p151 = scmp.eq.s32.totalorder %s29, 1
      %p152 = scmp.ne.s32.totalorder %s147, %s149
      %p153 = scmp.eq.s32.totalorder %s29, 0
      %p154 = por %p152, %p153
      %p155 = scmp.ne.s32.totalorder %s147, %s149
      %p156 = scmp.eq.s32.totalorder %s34, 1
      %p157 = por %p155, %p156
      %p158 = scmp.ne.s32.totalorder %s149, %s150
      %p159 = scmp.eq.s32.totalorder %s34, 0
      %p160 = por %p158, %p159
      %p161 = scmp.ne.s32.totalorder %s149, %s150
      %p162 = scmp.eq.s32.totalorder %s35, 1
      %p163 = por %p161, %p162
      %p165 = scmp.ne.s32.totalorder %s150, %s164
      %p166 = scmp.eq.s32.totalorder %s35, 0
      %p167 = por %p165, %p166
      %s169 = sadd.s32 %s168, 1
      %p172 = scmp.eq.s32.totalorder %s29, 1
      %p173 = scmp.ne.s32.totalorder %s168, %s170
      %p174 = scmp.eq.s32.totalorder %s29, 0
      %p175 = por %p173, %p174
      %p176 = scmp.ne.s32.totalorder %s168, %s170
      %p177 = scmp.eq.s32.totalorder %s34, 1
      %p178 = por %p176, %p177
      %p179 = scmp.ne.s32.totalorder %s170, %s171
      %p180 = scmp.eq.s32.totalorder %s34, 0
      %p181 = por %p179, %p180
      %p182 = scmp.ne.s32.totalorder %s170, %s171
      %p183 = scmp.eq.s32.totalorder %s35, 1
      %p184 = por %p182, %p183
      %p186 = scmp.ne.s32.totalorder %s171, %s185
      %p187 = scmp.eq.s32.totalorder %s35, 0
      %p188 = por %p186, %p187
      %s190 = sadd.s32 %s189, 1
      %p193 = scmp.eq.s32.totalorder %s29, 1
      %p194 = scmp.ne.s32.totalorder %s189, %s191
      %p195 = scmp.eq.s32.totalorder %s29, 0
      %p196 = por %p194, %p195
      %p197 = scmp.ne.s32.totalorder %s189, %s191
      %p198 = scmp.eq.s32.totalorder %s34, 1
      %p199 = por %p197, %p198
      %p200 = scmp.ne.s32.totalorder %s191, %s192
      %p201 = scmp.eq.s32.totalorder %s34, 0
      %p202 = por %p200, %p201
      %p203 = scmp.ne.s32.totalorder %s191, %s192
      %p204 = scmp.eq.s32.totalorder %s35, 1
      %p205 = por %p203, %p204
      %p207 = scmp.ne.s32.totalorder %s192, %s206
      %p208 = scmp.eq.s32.totalorder %s35, 0
      %p209 = por %p207, %p208
      %s211 = sadd.s32 %s210, 1
      %p214 = scmp.eq.s32.totalorder %s29, 1
      %p215 = scmp.ne.s32.totalorder %s210, %s212
      %p216 = scmp.eq.s32.totalorder %s29, 0
      %p217 = por %p215, %p216
      %p218 = scmp.ne.s32.totalorder %s210, %s212
      %p219 = scmp.eq.s32.totalorder %s34, 1
      %p220 = por %p218, %p219
      %p221 = scmp.ne.s32.totalorder %s212, %s213
      %p222 = scmp.eq.s32.totalorder %s34, 0
      %p223 = por %p221, %p222
      %p224 = scmp.ne.s32.totalorder %s212, %s213
      %p225 = scmp.eq.s32.totalorder %s35, 1
      %p226 = por %p224, %p225
      %p228 = scmp.ne.s32.totalorder %s213, %s227
      %p229 = scmp.eq.s32.totalorder %s35, 0
      %p230 = por %p228, %p229
      %s232 = sadd.s32 %s231, 1
      %p235 = scmp.eq.s32.totalorder %s29, 1
      %p236 = scmp.ne.s32.totalorder %s231, %s233
      %p237 = scmp.eq.s32.totalorder %s29, 0
      %p238 = por %p236, %p237
      %p239 = scmp.ne.s32.totalorder %s231, %s233
      %p240 = scmp.eq.s32.totalorder %s34, 1
      %p241 = por %p239, %p240
      %p242 = scmp.ne.s32.totalorder %s233, %s234
      %p243 = scmp.eq.s32.totalorder %s34, 0
      %p244 = por %p242, %p243
      %p245 = scmp.ne.s32.totalorder %s233, %s234
      %p246 = scmp.eq.s32.totalorder %s35, 1
      %p247 = por %p245, %p246
      %p249 = scmp.ne.s32.totalorder %s234, %s248
      %p250 = scmp.eq.s32.totalorder %s35, 0
      %p251 = por %p249, %p250
      %s253 = sadd.s32 %s252, 1
      %p256 = scmp.eq.s32.totalorder %s29, 1
      %p257 = scmp.ne.s32.totalorder %s252, %s254
      %p258 = scmp.eq.s32.totalorder %s29, 0
      %p259 = por %p257, %p258
      %p260 = scmp.ne.s32.totalorder %s252, %s254
      %p261 = scmp.eq.s32.totalorder %s34, 1
      %p262 = por %p260, %p261
      %p263 = scmp.ne.s32.totalorder %s254, %s255
      %p264 = scmp.eq.s32.totalorder %s34, 0
      %p265 = por %p263, %p264
      %p266 = scmp.ne.s32.totalorder %s254, %s255
      %p267 = scmp.eq.s32.totalorder %s35, 1
      %p268 = por %p266, %p267
      %p270 = scmp.ne.s32.totalorder %s255, %s269
      %p271 = scmp.eq.s32.totalorder %s35, 0
      %p272 = por %p270, %p271
      %s274 = sadd.s32 %s273, 1
      %p277 = scmp.eq.s32.totalorder %s29, 1
      %p278 = scmp.ne.s32.totalorder %s273, %s275
      %p279 = scmp.eq.s32.totalorder %s29, 0
      %p280 = por %p278, %p279
      %p281 = scmp.ne.s32.totalorder %s273, %s275
      %p282 = scmp.eq.s32.totalorder %s34, 1
      %p283 = por %p281, %p282
      %p284 = scmp.ne.s32.totalorder %s275, %s276
      %p285 = scmp.eq.s32.totalorder %s34, 0
      %p286 = por %p284, %p285
      %p287 = scmp.ne.s32.totalorder %s275, %s276
      %p288 = scmp.eq.s32.totalorder %s35, 1
      %p289 = por %p287, %p288
      %p291 = scmp.ne.s32.totalorder %s276, %s290
      %p292 = scmp.eq.s32.totalorder %s35, 0
      %p293 = por %p291, %p292
      %s295 = sadd.s32 %s294, 1
      %p298 = scmp.eq.s32.totalorder %s29, 1
      %p299 = scmp.ne.s32.totalorder %s294, %s296
      %p300 = scmp.eq.s32.totalorder %s29, 0
      %p301 = por %p299, %p300
      %p302 = scmp.ne.s32.totalorder %s294, %s296
      %p303 = scmp.eq.s32.totalorder %s34, 1
      %p304 = por %p302, %p303
      %p305 = scmp.ne.s32.totalorder %s296, %s297
      %p306 = scmp.eq.s32.totalorder %s34, 0
      %p307 = por %p305, %p306
      %p308 = scmp.ne.s32.totalorder %s296, %s297
      %p309 = scmp.eq.s32.totalorder %s35, 1
      %p310 = por %p308, %p309
      %p312 = scmp.ne.s32.totalorder %s297, %s311
      %p313 = scmp.eq.s32.totalorder %s35, 0
      %p314 = por %p312, %p313
      %s316 = sadd.s32 %s315, 1
      %p319 = scmp.eq.s32.totalorder %s29, 1
      %p320 = scmp.ne.s32.totalorder %s315, %s317
      %p321 = scmp.eq.s32.totalorder %s29, 0
      %p322 = por %p320, %p321
      %p323 = scmp.ne.s32.totalorder %s315, %s317
      %p324 = scmp.eq.s32.totalorder %s34, 1
      %p325 = por %p323, %p324
      %p326 = scmp.ne.s32.totalorder %s317, %s318
      %p327 = scmp.eq.s32.totalorder %s34, 0
      %p328 = por %p326, %p327
      %p329 = scmp.ne.s32.totalorder %s317, %s318
      %p330 = scmp.eq.s32.totalorder %s35, 1
      %p331 = por %p329, %p330
      %p333 = scmp.ne.s32.totalorder %s318, %s332
      %p334 = scmp.eq.s32.totalorder %s35, 0
      %p335 = por %p333, %p334
      %s337 = sadd.s32 %s336, 1
      %p340 = scmp.eq.s32.totalorder %s29, 1
      %p341 = scmp.ne.s32.totalorder %s336, %s338
      %p342 = scmp.eq.s32.totalorder %s29, 0
      %p343 = por %p341, %p342
      %p344 = scmp.ne.s32.totalorder %s336, %s338
      %p345 = scmp.eq.s32.totalorder %s34, 1
      %p346 = por %p344, %p345
      %p347 = scmp.ne.s32.totalorder %s338, %s339
      %p348 = scmp.eq.s32.totalorder %s34, 0
      %p349 = por %p347, %p348
      %p350 = scmp.ne.s32.totalorder %s338, %s339
      %p351 = scmp.eq.s32.totalorder %s35, 1
      %p352 = por %p350, %p351
      %p354 = scmp.ne.s32.totalorder %s339, %s353
      %p355 = scmp.eq.s32.totalorder %s35, 0
      %p356 = por %p354, %p355
      %s358 = sadd.s32 %s357, 1
      %p361 = scmp.eq.s32.totalorder %s29, 1
      %p362 = scmp.ne.s32.totalorder %s357, %s359
      %p363 = scmp.eq.s32.totalorder %s29, 0
      %p364 = por %p362, %p363
      %p365 = scmp.ne.s32.totalorder %s357, %s359
      %p366 = scmp.eq.s32.totalorder %s34, 1
      %p367 = por %p365, %p366
      %p368 = scmp.ne.s32.totalorder %s359, %s360
      %p369 = scmp.eq.s32.totalorder %s34, 0
      %p370 = por %p368, %p369
      %p371 = scmp.ne.s32.totalorder %s359, %s360
      %p372 = scmp.eq.s32.totalorder %s35, 1
      %p373 = por %p371, %p372
      %p375 = scmp.ne.s32.totalorder %s360, %s374
      %p376 = scmp.eq.s32.totalorder %s35, 0
      %p377 = por %p375, %p376
      %s379 = sadd.s32 %s378, 1
      %p382 = scmp.eq.s32.totalorder %s29, 1
      %p383 = scmp.ne.s32.totalorder %s378, %s380
      %p384 = scmp.eq.s32.totalorder %s29, 0
      %p385 = por %p383, %p384
      %p386 = scmp.ne.s32.totalorder %s378, %s380
      %p387 = scmp.eq.s32.totalorder %s34, 1
      %p388 = por %p386, %p387
      %p389 = scmp.ne.s32.totalorder %s380, %s381
      %p390 = scmp.eq.s32.totalorder %s34, 0
      %p391 = por %p389, %p390
      %p392 = scmp.ne.s32.totalorder %s380, %s381
      %p393 = scmp.eq.s32.totalorder %s35, 1
      %p394 = por %p392, %p393
      %p396 = scmp.ne.s32.totalorder %s381, %s395
      %p397 = scmp.eq.s32.totalorder %s35, 0
      %p398 = por %p396, %p397
      %s400 = sadd.s32 %s399, 1
      %p403 = scmp.eq.s32.totalorder %s29, 1
      %p404 = scmp.ne.s32.totalorder %s399, %s401
      %p405 = scmp.eq.s32.totalorder %s29, 0
      %p406 = por %p404, %p405
      %p407 = scmp.ne.s32.totalorder %s399, %s401
      %p408 = scmp.eq.s32.totalorder %s34, 1
      %p409 = por %p407, %p408
      %p410 = scmp.ne.s32.totalorder %s401, %s402
      %p411 = scmp.eq.s32.totalorder %s34, 0
      %p412 = por %p410, %p411
      %p413 = scmp.ne.s32.totalorder %s401, %s402
      %p414 = scmp.eq.s32.totalorder %s35, 1
      %p415 = por %p413, %p414
      %p417 = scmp.ne.s32.totalorder %s402, %s416
      %p418 = scmp.eq.s32.totalorder %s35, 0
      %p419 = por %p417, %p418
      %s421 = sadd.s32 %s420, 1
      %p424 = scmp.eq.s32.totalorder %s29, 1
      %p425 = scmp.ne.s32.totalorder %s420, %s422
      %p426 = scmp.eq.s32.totalorder %s29, 0
      %p427 = por %p425, %p426
      %p428 = scmp.ne.s32.totalorder %s420, %s422
      %p429 = scmp.eq.s32.totalorder %s34, 1
      %p430 = por %p428, %p429
      %p431 = scmp.ne.s32.totalorder %s422, %s423
      %p432 = scmp.eq.s32.totalorder %s34, 0
      %p433 = por %p431, %p432
      %p434 = scmp.ne.s32.totalorder %s422, %s423
      %p435 = scmp.eq.s32.totalorder %s35, 1
      %p436 = por %p434, %p435
      %p438 = scmp.ne.s32.totalorder %s423, %s437
      %p439 = scmp.eq.s32.totalorder %s35, 0
      %p440 = por %p438, %p439
      %s442 = sadd.s32 %s441, 1
      %p445 = scmp.eq.s32.totalorder %s29, 1
      %p446 = scmp.ne.s32.totalorder %s441, %s443
      %p447 = scmp.eq.s32.totalorder %s29, 0
      %p448 = por %p446, %p447
      %p449 = scmp.ne.s32.totalorder %s441, %s443
      %p450 = scmp.eq.s32.totalorder %s34, 1
      %p451 = por %p449, %p450
      %p452 = scmp.ne.s32.totalorder %s443, %s444
      %p453 = scmp.eq.s32.totalorder %s34, 0
      %p454 = por %p452, %p453
      %p455 = scmp.ne.s32.totalorder %s443, %s444
      %p456 = scmp.eq.s32.totalorder %s35, 1
      %p457 = por %p455, %p456
      %p459 = scmp.ne.s32.totalorder %s444, %s458
      %p460 = scmp.eq.s32.totalorder %s35, 0
      %p461 = por %p459, %p460
      %s462 = ssub.s32 %s29, %s36
      %p463 = scmp.eq.s32.totalorder %s462, 0
      %s465 = sadd.s32 %s464, 1
      %s466 = scalar_select %p463, %s464, %s465
      %p469 = pneg %p463
      %p470 = scmp.eq.s32.totalorder %s29, 1
      %p471 = por %p469, %p470
      %p472 = scmp.ne.s32.totalorder %s464, %s467
      %p473 = scmp.eq.s32.totalorder %s29, 0
      %p474 = por %p472, %p473
      %p475 = scmp.ne.s32.totalorder %s464, %s467
      %p476 = scmp.eq.s32.totalorder %s34, 1
      %p477 = por %p475, %p476
      %p478 = scmp.ne.s32.totalorder %s467, %s468
      %p479 = scmp.eq.s32.totalorder %s34, 0
      %p480 = por %p478, %p479
      %p481 = scmp.ne.s32.totalorder %s467, %s468
      %p482 = scmp.eq.s32.totalorder %s35, 1
      %p483 = por %p481, %p482
      %p485 = scmp.ne.s32.totalorder %s468, %s484
      %p486 = scmp.eq.s32.totalorder %s35, 0
      %p487 = por %p485, %p486
      %p488 = scmp.le.s32.totalorder 1, %s29
      %p489 = scmp.lt.s32.totalorder %s29, 3
      %p490 = pnand %p488, %p489
      %p491 = pneg %p490
      // Predicated region
      $region9: #{tpu_custom_call.1} parent=5 // pred_check
        _
      $region10: #{tpu_custom_call.1} parent=5 // pred_check_branch
        %493 = sbr.rel (%p490) target = $region12
      $region11: #{tpu_custom_call.1} parent=5 // pred_region
        %s494 = ssub.s32 %s29, 1
        // Predicated region
        $region13: #{tpu_custom_call.1} parent=11 // pred_check
          %p495 = pneg %p76
        $region14: #{tpu_custom_call.1} parent=11 // pred_check_branch
          %497 = sbr.rel (%p495) target = $region16
        $region15: #{tpu_custom_call.1} parent=11 // pred_region
          _
        $region16: #{tpu_custom_call.1} parent=11 // pred_fallthru
          _
        // Predicated region
        $region17: #{tpu_custom_call.1} parent=11 // pred_check
          %p498 = pneg %p97
        $region18: #{tpu_custom_call.1} parent=11 // pred_check_branch
          %500 = sbr.rel (%p498) target = $region20
        $region19: #{tpu_custom_call.1} parent=11 // pred_region
          _
        $region20: #{tpu_custom_call.1} parent=11 // pred_fallthru
          _
        // Predicated region
        $region21: #{tpu_custom_call.1} parent=11 // pred_check
          %p501 = pneg %p118
        $region22: #{tpu_custom_call.1} parent=11 // pred_check_branch
          %503 = sbr.rel (%p501) target = $region24
        $region23: #{tpu_custom_call.1} parent=11 // pred_region
          _
        $region24: #{tpu_custom_call.1} parent=11 // pred_fallthru
          _
        // Predicated region
        $region25: #{tpu_custom_call.1} parent=11 // pred_check
          %p504 = pneg %p139
        $region26: #{tpu_custom_call.1} parent=11 // pred_check_branch
          %506 = sbr.rel (%p504) target = $region28
        $region27: #{tpu_custom_call.1} parent=11 // pred_region
          _
        $region28: #{tpu_custom_call.1} parent=11 // pred_fallthru
          _
        // Predicated region
        $region29: #{tpu_custom_call.1} parent=11 // pred_check
          %p507 = pneg %p160
        $region30: #{tpu_custom_call.1} parent=11 // pred_check_branch
          %509 = sbr.rel (%p507) target = $region32
        $region31: #{tpu_custom_call.1} parent=11 // pred_region
          _
        $region32: #{tpu_custom_call.1} parent=11 // pred_fallthru
          _
        // Predicated region
        $region33: #{tpu_custom_call.1} parent=11 // pred_check
          %p510 = pneg %p181
        $region34: #{tpu_custom_call.1} parent=11 // pred_check_branch
          %512 = sbr.rel (%p510) target = $region36
        $region35: #{tpu_custom_call.1} parent=11 // pred_region
          _
        $region36: #{tpu_custom_call.1} parent=11 // pred_fallthru
          _
        // Predicated region
        $region37: #{tpu_custom_call.1} parent=11 // pred_check
          %p513 = pneg %p202
        $region38: #{tpu_custom_call.1} parent=11 // pred_check_branch
          %515 = sbr.rel (%p513) target = $region40
        $region39: #{tpu_custom_call.1} parent=11 // pred_region
          _
        $region40: #{tpu_custom_call.1} parent=11 // pred_fallthru
          _
        // Predicated region
        $region41: #{tpu_custom_call.1} parent=11 // pred_check
          %p516 = pneg %p223
        $region42: #{tpu_custom_call.1} parent=11 // pred_check_branch
          %518 = sbr.rel (%p516) target = $region44
        $region43: #{tpu_custom_call.1} parent=11 // pred_region
          _
        $region44: #{tpu_custom_call.1} parent=11 // pred_fallthru
          _
        // Predicated region
        $region45: #{tpu_custom_call.1} parent=11 // pred_check
          %p519 = pneg %p244
        $region46: #{tpu_custom_call.1} parent=11 // pred_check_branch
          %521 = sbr.rel (%p519) target = $region48
        $region47: #{tpu_custom_call.1} parent=11 // pred_region
          _
        $region48: #{tpu_custom_call.1} parent=11 // pred_fallthru
          _
        // Predicated region
        $region49: #{tpu_custom_call.1} parent=11 // pred_check
          %p522 = pneg %p265
        $region50: #{tpu_custom_call.1} parent=11 // pred_check_branch
          %524 = sbr.rel (%p522) target = $region52
        $region51: #{tpu_custom_call.1} parent=11 // pred_region
          _
        $region52: #{tpu_custom_call.1} parent=11 // pred_fallthru
          _
        // Predicated region
        $region53: #{tpu_custom_call.1} parent=11 // pred_check
          %p525 = pneg %p286
        $region54: #{tpu_custom_call.1} parent=11 // pred_check_branch
          %527 = sbr.rel (%p525) target = $region56
        $region55: #{tpu_custom_call.1} parent=11 // pred_region
          _
        $region56: #{tpu_custom_call.1} parent=11 // pred_fallthru
          _
        // Predicated region
        $region57: #{tpu_custom_call.1} parent=11 // pred_check
          %p528 = pneg %p307
        $region58: #{tpu_custom_call.1} parent=11 // pred_check_branch
          %530 = sbr.rel (%p528) target = $region60
        $region59: #{tpu_custom_call.1} parent=11 // pred_region
          _
        $region60: #{tpu_custom_call.1} parent=11 // pred_fallthru
          _
        // Predicated region
        $region61: #{tpu_custom_call.1} parent=11 // pred_check
          %p531 = pneg %p328
        $region62: #{tpu_custom_call.1} parent=11 // pred_check_branch
          %533 = sbr.rel (%p531) target = $region64
        $region63: #{tpu_custom_call.1} parent=11 // pred_region
          _
        $region64: #{tpu_custom_call.1} parent=11 // pred_fallthru
          _
        // Predicated region
        $region65: #{tpu_custom_call.1} parent=11 // pred_check
          %p534 = pneg %p349
        $region66: #{tpu_custom_call.1} parent=11 // pred_check_branch
          %536 = sbr.rel (%p534) target = $region68
        $region67: #{tpu_custom_call.1} parent=11 // pred_region
          _
        $region68: #{tpu_custom_call.1} parent=11 // pred_fallthru
          _
        // Predicated region
        $region69: #{tpu_custom_call.1} parent=11 // pred_check
          %p537 = pneg %p370
        $region70: #{tpu_custom_call.1} parent=11 // pred_check_branch
          %539 = sbr.rel (%p537) target = $region72
        $region71: #{tpu_custom_call.1} parent=11 // pred_region
          _
        $region72: #{tpu_custom_call.1} parent=11 // pred_fallthru
          _
        // Predicated region
        $region73: #{tpu_custom_call.1} parent=11 // pred_check
          %p540 = pneg %p391
        $region74: #{tpu_custom_call.1} parent=11 // pred_check_branch
          %542 = sbr.rel (%p540) target = $region76
        $region75: #{tpu_custom_call.1} parent=11 // pred_region
          _
        $region76: #{tpu_custom_call.1} parent=11 // pred_fallthru
          _
        // Predicated region
        $region77: #{tpu_custom_call.1} parent=11 // pred_check
          %p543 = pneg %p412
        $region78: #{tpu_custom_call.1} parent=11 // pred_check_branch
          %545 = sbr.rel (%p543) target = $region80
        $region79: #{tpu_custom_call.1} parent=11 // pred_region
          _
        $region80: #{tpu_custom_call.1} parent=11 // pred_fallthru
          _
        // Predicated region
        $region81: #{tpu_custom_call.1} parent=11 // pred_check
          %p546 = pneg %p433
        $region82: #{tpu_custom_call.1} parent=11 // pred_check_branch
          %548 = sbr.rel (%p546) target = $region84
        $region83: #{tpu_custom_call.1} parent=11 // pred_region
          _
        $region84: #{tpu_custom_call.1} parent=11 // pred_fallthru
          _
        // Predicated region
        $region85: #{tpu_custom_call.1} parent=11 // pred_check
          %p549 = pneg %p454
        $region86: #{tpu_custom_call.1} parent=11 // pred_check_branch
          %551 = sbr.rel (%p549) target = $region88
        $region87: #{tpu_custom_call.1} parent=11 // pred_region
          _
        $region88: #{tpu_custom_call.1} parent=11 // pred_fallthru
          _
      $region12: #{tpu_custom_call.1} parent=5 // pred_fallthru
        _
      %p552 = scmp.lt.s32.totalorder %s29, 2
      // Predicated region
      $region89: #{tpu_custom_call.1} parent=5 // pred_check
        %p553 = pneg %p552
      $region90: #{tpu_custom_call.1} parent=5 // pred_check_branch
        %555 = sbr.rel (%p553) target = $region92
      $region91: #{tpu_custom_call.1} parent=5 // pred_region
        // Predicated region
        $region93: #{tpu_custom_call.1} parent=91 // pred_check
          %p556 = pneg %p49
        $region94: #{tpu_custom_call.1} parent=91 // pred_check_branch
          %558 = sbr.rel (%p556) target = $region96
        $region95: #{tpu_custom_call.1} parent=91 // pred_region
          %p559 = scmp.lt.s32.totalorder %s29, 1
          %s560 = scalar_select %p559, %s29, 1
          %s561 = smul.addr %s560, 4
          %s562 = smul.addr %s561, 8
          %s563 = scalar_lea.vmem %s0, %s562
        $region96: #{tpu_custom_call.1} parent=91 // pred_fallthru
          _
      $region92: #{tpu_custom_call.1} parent=5 // pred_fallthru
        _
      %p564 = scmp.le.s32.totalorder 1, %s29
      %p565 = scmp.lt.s32.totalorder %s29, 3
      %p566 = pnand %p564, %p565
      %p567 = pneg %p566
      // Predicated region
      $region97: #{tpu_custom_call.1} parent=5 // pred_check
        _
      $region98: #{tpu_custom_call.1} parent=5 // pred_check_branch
        %569 = sbr.rel (%p566) target = $region100
      $region99: #{tpu_custom_call.1} parent=5 // pred_region
        %s570 = ssub.s32 %s29, 1
        %p571 = scmp.lt.s32.totalorder %s34, 1
        %s572 = scalar_select %p571, %s34, 1
        %s573 = smul.addr %s572, 4
        %s574 = smul.addr %s573, 8
        %s575 = scalar_lea.vmem %s0, %s574
        %p576 = pneg %p55
        %p577 = pneg %p52
        %p578 = pneg %p76
        %p579 = pneg %p73
        %p580 = pneg %p97
        %p581 = pneg %p94
        %p582 = pneg %p118
        %p583 = pneg %p115
        %p584 = pneg %p139
        %p585 = pneg %p136
        %p586 = pneg %p160
        %p587 = pneg %p157
        %p588 = pneg %p181
        %p589 = pneg %p178
        %p590 = pneg %p202
        %p591 = pneg %p199
        %p592 = pneg %p223
        %p593 = pneg %p220
        %p594 = pneg %p244
        %p595 = pneg %p241
        %p596 = pneg %p265
        %p597 = pneg %p262
        %p598 = pneg %p286
        %p599 = pneg %p283
        %p600 = pneg %p307
        %p601 = pneg %p304
        %p602 = pneg %p328
        %p603 = pneg %p325
        %p604 = pneg %p349
        %p605 = pneg %p346
        %p606 = pneg %p370
        %p607 = pneg %p367
        %p608 = pneg %p391
        %p609 = pneg %p388
        %p610 = pneg %p412
        %p611 = pneg %p409
        %p612 = pneg %p433
        %p613 = pneg %p430
        %p614 = pneg %p454
        %p615 = pneg %p451
        %p616 = pneg %p480
        %p617 = pneg %p477
        %s618 = sand.u32 %s467, 1
        %s619 = scalar_lea.sflag [#allocation3], %s618
        %s620 = sand.u32 %s467, 1
        %s621 = smul.addr %s620, 32
        %s622 = scalar_lea.vmem [#allocation2], %s621
        %p623 = scmp.lt.s32.totalorder %s34, 1
        %s624 = scalar_select %p623, %s34, 1
        %s625 = smul.addr %s624, 4
        %s626 = smul.addr %s625, 8
        %s627 = scalar_lea.vmem %s0, %s626
        %v628 = vld [vmem:[%s627] sm:$0xff]
        %v629 = vld [vmem:[%s627 + $0x8] sm:$0xff]
        %v630 = vld [vmem:[%s627 + $0x10] sm:$0xff]
        %v631 = vld [vmem:[%s627 + $0x18] sm:$0xff]
        %v632 = vld [vmem:[%s1] sm:$0xff]
        %v633 = vld [vmem:[%s1 + $0x8] sm:$0xff]
        %v634 = vld [vmem:[%s1 + $0x10] sm:$0x1]
        %v635 = vld [vmem:[%s1 + $0x18] sm:$0x1]
        %v636 = vld [vmem:[%s2] sm:$0xff]
        %v637 = vld [vmem:[%s2 + $0x8] sm:$0xff]
        %v638 = vld [vmem:[%s3] sm:$0xff]
        %v639 = vld [vmem:[%s3 + $0x8] sm:$0xff]
        %v640 = vadd.f32 %v628, %v630
        %v641 = vrot.slane %v640, 4
        %v642 = vadd.f32 %v640, %v641
        %v643 = vrot.slane %v642, 2
        %v644 = vadd.f32 %v642, %v643
        %v645 = vrot.slane %v644, 1
        %v646 = vadd.f32 %v644, %v645
        %v647 = vadd.f32 %v629, %v631
        %v648 = vrot.slane %v647, 4
        %v649 = vadd.f32 %v647, %v648
        %v650 = vrot.slane %v649, 2
        %v651 = vadd.f32 %v649, %v650
        %v652 = vrot.slane %v651, 1
        %v653 = vadd.f32 %v651, %v652
        %v654 = vrcp.pop 16.0
        %v655 = vmul.f32 %v646, %v654
        %v656 = vmul.f32 %v653, %v654
        %v657 = vsub.f32 %v628, %v655
        %v658 = vsub.f32 %v629, %v656
        %v659 = vsub.f32 %v630, %v655
        %v660 = vsub.f32 %v631, %v656
        %v661 = vmul.f32 %v657, %v657
        %v662 = vmul.f32 %v658, %v658
        %v663 = vmul.f32 %v659, %v659
        %v664 = vmul.f32 %v660, %v660
        %v665 = vadd.f32 %v661, %v663
        %v666 = vrot.slane %v665, 4
        %v667 = vadd.f32 %v665, %v666
        %v668 = vrot.slane %v667, 2
        %v669 = vadd.f32 %v667, %v668
        %v670 = vrot.slane %v669, 1
        %v671 = vadd.f32 %v669, %v670
        %v672 = vadd.f32 %v662, %v664
        %v673 = vrot.slane %v672, 4
        %v674 = vadd.f32 %v672, %v673
        %v675 = vrot.slane %v674, 2
        %v676 = vadd.f32 %v674, %v675
        %v677 = vrot.slane %v676, 1
        %v678 = vadd.f32 %v676, %v677
        %v679 = vmul.f32 %v671, %v654
        %v680 = vmul.f32 %v678, %v654
        %v681 = vadd.f32 %v679, 1e-05
        %v682 = vadd.f32 %v680, 1e-05
        %v683 = vrsqrt.pop %v681
        %v684 = vrsqrt.pop %v682
        %v685 = vmul.f32 %v657, %v683
        %v686 = vmul.f32 %v658, %v684
        %v687 = vmul.f32 %v659, %v683
        %v688 = vmul.f32 %v660, %v684
        %690 = vset.pattern.permute.xlu0 0
        %691 = vperm.xlu0 %690, %v636
        %v692 = vpop.permute.xlu0 %691
        %695 = vset.pattern.permute.xlu0 0
        %696 = vperm.xlu0 %695, %v637
        %v697 = vpop.permute.xlu0 %696
        %v699 = vmul.f32 %v685, %v692
        %v700 = vmul.f32 %v686, %v692
        %v701 = vmul.f32 %v687, %v697
        %v702 = vmul.f32 %v688, %v697
        %704 = vset.pattern.permute.xlu0 0
        %705 = vperm.xlu0 %704, %v638
        %v706 = vpop.permute.xlu0 %705
        %709 = vset.pattern.permute.xlu0 0
        %710 = vperm.xlu0 %709, %v639
        %v711 = vpop.permute.xlu0 %710
        %v713 = vadd.f32 %v699, %v706
        %v714 = vadd.f32 %v700, %v706
        %v715 = vadd.f32 %v701, %v711
        %v716 = vadd.f32 %v702, %v711
        %v717 = vld [vmem:[%s4] sm:$0xff]
        %v718 = vld [vmem:[%s4 + $0x8] sm:$0xff]
        %v719 = vld [vmem:[%s4 + $0x10] sm:$0xff]
        %v720 = vld [vmem:[%s4 + $0x18] sm:$0xff]
        %v721 = vld [vmem:[%s4 + $0x20] sm:$0xff]
        %v722 = vld [vmem:[%s4 + $0x28] sm:$0xff]
        %v723 = vld [vmem:[%s5] sm:$0xff]
        %v724 = vld [vmem:[%s5 + $0x8] sm:$0xff]
        %v725 = vld [vmem:[%s5 + $0x10] sm:$0xff]
        %v726 = vld [vmem:[%s5 + $0x18] sm:$0xff]
        %v727 = vld [vmem:[%s5 + $0x20] sm:$0xff]
        %v728 = vld [vmem:[%s5 + $0x28] sm:$0xff]
        %730 = vset.pattern.permute.xlu0 0
        %731 = vperm.xlu0 %730, %v723
        %v732 = vpop.permute.xlu0 %731
        %735 = vset.pattern.permute.xlu0 0
        %736 = vperm.xlu0 %735, %v724
        %v737 = vpop.permute.xlu0 %736
        %740 = vset.pattern.permute.xlu0 0
        %741 = vperm.xlu0 %740, %v725
        %v742 = vpop.permute.xlu0 %741
        %745 = vset.pattern.permute.xlu0 0
        %746 = vperm.xlu0 %745, %v726
        %v747 = vpop.permute.xlu0 %746
        %750 = vset.pattern.permute.xlu0 0
        %751 = vperm.xlu0 %750, %v727
        %v752 = vpop.permute.xlu0 %751
        %755 = vset.pattern.permute.xlu0 0
        %756 = vperm.xlu0 %755, %v728
        %v757 = vpop.permute.xlu0 %756
        %vm759 = vcmask 130048
        %v761 = vsel %vm759, %v717, 0
        %v764 = vsel %vm759, %v718, 0
        %v767 = vsel %vm759, %v719, 0
        %v770 = vsel %vm759, %v720, 0
        %v773 = vsel %vm759, %v721, 0
        %v776 = vsel %vm759, %v722, 0
        %778 = vmatprep.subr.mxu0 0.0
        %779 = vmatpush1.msra.mxu0 0.0
        %780 = vmatprep.subr.mxu0 0.0
        %781 = vmatpush1.msra.mxu0 0.0
        %782 = vmatprep.subr.mxu0 0.0
        %783 = vmatpush1.msra.mxu0 0.0
        %784 = vmatprep.subr.mxu0 0.0
        %785 = vmatpush1.msra.mxu0 0.0
        %786 = vmatprep.subr.mxu0 0.0
        %787 = vmatpush1.msra.mxu0 0.0
        %788 = vmatprep.subr.mxu0 0.0
        %789 = vmatpush1.msra.mxu0 0.0
        %790 = vmatprep.subr.mxu0 0.0
        %791 = vmatpush1.msra.mxu0 0.0
        %792 = vmatprep.subr.mxu0 0.0
        %793 = vmatpush1.msra.mxu0 0.0
        %794 = vmatprep.subr.mxu0 0.0
        %795 = vmatpush1.msra.mxu0 0.0
        %796 = vmatprep.subr.mxu0 0.0
        %797 = vmatpush1.msra.mxu0 0.0
        %798 = vmatprep.subr.mxu0 0.0
        %799 = vmatpush1.msra.mxu0 0.0
        %800 = vmatprep.subr.mxu0 0.0
        %801 = vmatpush1.msra.mxu0 0.0
        %802 = vmatprep.subr.mxu0 0.0
        %803 = vmatpush1.msra.mxu0 0.0
        %804 = vmatprep.subr.mxu0 0.0
        %805 = vmatpush1.msra.mxu0 0.0
        %806 = vmatprep.subr.mxu0 %v716
        %807 = vmatpush1.msra.mxu0 %v715
        %808 = vmatprep.subr.mxu0 %v714
        %809 = vmatpush1.msra.mxu0 %v713
        %810 = vmatprep.subr.mxu0 0.0
        %811 = vmatpush2.msra.mxu0 0.0
        %812 = vmatprep.subr.mxu0 0.0
        %813 = vmatpush2.msra.mxu0 0.0
        %814 = vmatprep.subr.mxu0 0.0
        %815 = vmatpush2.msra.mxu0 0.0
        %816 = vmatprep.subr.mxu0 0.0
        %817 = vmatpush2.msra.mxu0 0.0
        %818 = vmatprep.subr.mxu0 0.0
        %819 = vmatpush2.msra.mxu0 0.0
        %820 = vmatprep.subr.mxu0 0.0
        %821 = vmatpush2.msra.mxu0 0.0
        %822 = vmatprep.subr.mxu0 0.0
        %823 = vmatpush2.msra.mxu0 0.0
        %824 = vmatprep.subr.mxu0 0.0
        %825 = vmatpush2.msra.mxu0 0.0
        %826 = vmatprep.subr.mxu0 0.0
        %827 = vmatpush2.msra.mxu0 0.0
        %828 = vmatprep.subr.mxu0 0.0
        %829 = vmatpush2.msra.mxu0 0.0
        %830 = vmatprep.subr.mxu0 0.0
        %831 = vmatpush2.msra.mxu0 0.0
        %832 = vmatprep.subr.mxu0 0.0
        %833 = vmatpush2.msra.mxu0 0.0
        %834 = vmatprep.subr.mxu0 0.0
        %835 = vmatpush2.msra.mxu0 0.0
        %836 = vmatprep.subr.mxu0 0.0
        %837 = vmatpush2.msra.mxu0 0.0
        %838 = vmatprep.subr.mxu0 0.0
        %839 = vmatpush2.msra.mxu0 0.0
        %840 = vmatprep.subr.mxu0 0.0
        %841 = vmatpush2.msra.mxu0 0.0
        %842 = vmatprep.mubr.f32.mxu0 0.0
        %843 = vmatmul.mubr.f32.gmra.mxu0 %v761
        %v844 = vpop.f32.mrf.mxu0
        %v845 = vadd.f32 %v732, %v844
        %v846 = vpop.f32.mrf.mxu0
        %v847 = vadd.f32 %v732, %v846
        %848 = vmatprep.mubr.f32.mxu0 0.0
        %849 = vmatmul.mubr.f32.gmra.mxu0 %v764
        %v850 = vpop.f32.mrf.mxu0
        %v851 = vadd.f32 %v737, %v850
        %v852 = vpop.f32.mrf.mxu0
        %v853 = vadd.f32 %v737, %v852
        %854 = vmatprep.mubr.f32.mxu0 0.0
        %855 = vmatmul.mubr.f32.gmra.mxu0 %v767
        %v856 = vpop.f32.mrf.mxu0
        %v857 = vadd.f32 %v742, %v856
        %v858 = vpop.f32.mrf.mxu0
        %v859 = vadd.f32 %v742, %v858
        %860 = vmatprep.mubr.f32.mxu0 0.0
        %861 = vmatmul.mubr.f32.gmra.mxu0 %v770
        %v862 = vpop.f32.mrf.mxu0
        %v863 = vadd.f32 %v747, %v862
        %v864 = vpop.f32.mrf.mxu0
        %v865 = vadd.f32 %v747, %v864
        %866 = vmatprep.mubr.f32.mxu0 0.0
        %867 = vmatmul.mubr.f32.gmra.mxu0 %v773
        %v868 = vpop.f32.mrf.mxu0
        %v869 = vadd.f32 %v752, %v868
        %v870 = vpop.f32.mrf.mxu0
        %v871 = vadd.f32 %v752, %v870
        %872 = vmatprep.mubr.f32.mxu0 0.0
        %873 = vmatmul.mubr.f32.gmra.mxu0 %v776
        %v874 = vpop.f32.mrf.mxu0
        %v875 = vadd.f32 %v757, %v874
        %v876 = vpop.f32.mrf.mxu0
        %v877 = vadd.f32 %v757, %v876
        %878 = vdwg.mxu0
        %v879 = vld [vmem:[%s6] sm:$0xff]
        %v880 = vld [vmem:[%s6 + $0x8] sm:$0xff]
        %v881 = vld [vmem:[%s6 + $0x10] sm:$0xff]
        %v882 = vld [vmem:[%s6 + $0x18] sm:$0xff]
        %v883 = vld [vmem:[%s6 + $0x20] sm:$0xff]
        %v884 = vld [vmem:[%s6 + $0x28] sm:$0xff]
        %v885 = vld [vmem:[%s7] sm:$0xff]
        %v886 = vld [vmem:[%s7 + $0x8] sm:$0xff]
        %v887 = vld [vmem:[%s7 + $0x10] sm:$0xff]
        %v888 = vld [vmem:[%s7 + $0x18] sm:$0xff]
        %v889 = vld [vmem:[%s7 + $0x20] sm:$0xff]
        %v890 = vld [vmem:[%s7 + $0x28] sm:$0xff]
        %892 = vset.pattern.permute.xlu0 4
        %893 = vperm.xlu0 %892, %v879
        %v894 = vpop.permute.xlu0 %893
        %897 = vset.pattern.permute.xlu0 4
        %898 = vperm.xlu0 %897, %v880
        %v899 = vpop.permute.xlu0 %898
        %902 = vset.pattern.permute.xlu0 4
        %903 = vperm.xlu0 %902, %v881
        %v904 = vpop.permute.xlu0 %903
        %907 = vset.pattern.permute.xlu0 4
        %908 = vperm.xlu0 %907, %v882
        %v909 = vpop.permute.xlu0 %908
        %912 = vset.pattern.permute.xlu0 4
        %913 = vperm.xlu0 %912, %v883
        %v914 = vpop.permute.xlu0 %913
        %917 = vset.pattern.permute.xlu0 4
        %918 = vperm.xlu0 %917, %v884
        %v919 = vpop.permute.xlu0 %918
        %v921 = vmul.f32 %v894, %v845
        %v922 = vmul.f32 %v894, %v847
        %v923 = vmul.f32 %v899, %v851
        %v924 = vmul.f32 %v899, %v853
        %v925 = vmul.f32 %v904, %v857
        %v926 = vmul.f32 %v904, %v859
        %v927 = vmul.f32 %v909, %v863
        %v928 = vmul.f32 %v909, %v865
        %v929 = vmul.f32 %v914, %v869
        %v930 = vmul.f32 %v914, %v871
        %v931 = vmul.f32 %v919, %v875
        %v932 = vmul.f32 %v919, %v877
        %934 = vset.pattern.permute.xlu0 0
        %935 = vperm.xlu0 %934, %v885
        %v936 = vpop.permute.xlu0 %935
        %939 = vset.pattern.permute.xlu0 0
        %940 = vperm.xlu0 %939, %v886
        %v941 = vpop.permute.xlu0 %940
        %944 = vset.pattern.permute.xlu0 0
        %945 = vperm.xlu0 %944, %v887
        %v946 = vpop.permute.xlu0 %945
        %949 = vset.pattern.permute.xlu0 0
        %950 = vperm.xlu0 %949, %v888
        %v951 = vpop.permute.xlu0 %950
        %954 = vset.pattern.permute.xlu0 0
        %955 = vperm.xlu0 %954, %v889
        %v956 = vpop.permute.xlu0 %955
        %959 = vset.pattern.permute.xlu0 0
        %960 = vperm.xlu0 %959, %v890
        %v961 = vpop.permute.xlu0 %960
        %v963 = vadd.f32 %v921, %v936
        %v964 = vadd.f32 %v922, %v936
        %v965 = vadd.f32 %v923, %v941
        %v966 = vadd.f32 %v924, %v941
        %v967 = vadd.f32 %v925, %v946
        %v968 = vadd.f32 %v926, %v946
        %v969 = vadd.f32 %v927, %v951
        %v970 = vadd.f32 %v928, %v951
        %v971 = vadd.f32 %v929, %v956
        %v972 = vadd.f32 %v930, %v956
        %v973 = vadd.f32 %v931, %v961
        %v974 = vadd.f32 %v932, %v961
        %975 = vrot.lane.b32.xlu0 %v845, 17
        %v976 = vpop.permute.xlu0 %975
        %977 = vrot.lane.b32.xlu0 %v851, 17
        %v978 = vpop.permute.xlu0 %977
        %979 = vrot.lane.b32.xlu0 %v857, 17
        %v980 = vpop.permute.xlu0 %979
        %981 = vrot.lane.b32.xlu0 %v863, 17
        %v982 = vpop.permute.xlu0 %981
        %983 = vrot.lane.b32.xlu0 %v869, 17
        %v984 = vpop.permute.xlu0 %983
        %985 = vrot.lane.b32.xlu0 %v875, 17
        %v986 = vpop.permute.xlu0 %985
        %987 = vrot.lane.b32.xlu0 %v847, 17
        %v988 = vpop.permute.xlu0 %987
        %989 = vrot.lane.b32.xlu0 %v853, 17
        %v990 = vpop.permute.xlu0 %989
        %991 = vrot.lane.b32.xlu0 %v859, 17
        %v992 = vpop.permute.xlu0 %991
        %993 = vrot.lane.b32.xlu0 %v865, 17
        %v994 = vpop.permute.xlu0 %993
        %995 = vrot.lane.b32.xlu0 %v871, 17
        %v996 = vpop.permute.xlu0 %995
        %997 = vrot.lane.b32.xlu0 %v877, 17
        %v998 = vpop.permute.xlu0 %997
        %v999 = vlaneseq
        %v1000 = vand.u32 %v999, 127
        %vm1001 = vcmp.lt.s32.totalorder %v1000, 17
        %v1002 = vsel %vm1001, %v976, %v988
        %v1003 = vsel %vm1001, %v978, %v990
        %v1004 = vsel %vm1001, %v980, %v992
        %v1005 = vsel %vm1001, %v982, %v994
        %v1006 = vsel %vm1001, %v984, %v996
        %v1007 = vsel %vm1001, %v986, %v998
        %v1008 = vsel %vm1001, %v988, %v976
        %v1009 = vsel %vm1001, %v990, %v978
        %v1010 = vsel %vm1001, %v992, %v980
        %v1011 = vsel %vm1001, %v994, %v982
        %v1012 = vsel %vm1001, %v996, %v984
        %v1013 = vsel %vm1001, %v998, %v986
        %v1014 = vlaneseq
        %v1015 = vshrl.u32 %v1014, 7
        %v1016 = vsub.s32 0, %v1015
        %v1017 = vrot.slane %v632, %v1016
        %v1018 = vlaneseq
        %v1019 = vshrl.u32 %v1018, 7
        %v1020 = vsub.s32 0, %v1019
        %v1021 = vrot.slane %v633, %v1020
        %v1022 = vmul.f32 %v1008, %v1017
        %v1023 = vmul.f32 %v1002, %v1021
        %v1024 = vmul.f32 %v1009, %v1017
        %v1025 = vmul.f32 %v1003, %v1021
        %v1026 = vmul.f32 %v1010, %v1017
        %v1027 = vmul.f32 %v1004, %v1021
        %v1028 = vmul.f32 %v1011, %v1017
        %v1029 = vmul.f32 %v1005, %v1021
        %v1030 = vmul.f32 %v1012, %v1017
        %v1031 = vmul.f32 %v1006, %v1021
        %v1032 = vmul.f32 %v1013, %v1017
        %v1033 = vmul.f32 %v1007, %v1021
        %1034 = vset.pattern.permute.xlu0 0
        %1035 = vperm.xlu0 %1034, %v879
        %v1036 = vpop.permute.xlu0 %1035
        %1038 = vset.pattern.permute.xlu0 0
        %1039 = vperm.xlu0 %1038, %v880
        %v1040 = vpop.permute.xlu0 %1039
        %1042 = vset.pattern.permute.xlu0 0
        %1043 = vperm.xlu0 %1042, %v881
        %v1044 = vpop.permute.xlu0 %1043
        %1046 = vset.pattern.permute.xlu0 0
        %1047 = vperm.xlu0 %1046, %v882
        %v1048 = vpop.permute.xlu0 %1047
        %1050 = vset.pattern.permute.xlu0 0
        %1051 = vperm.xlu0 %1050, %v883
        %v1052 = vpop.permute.xlu0 %1051
        %1054 = vset.pattern.permute.xlu0 0
        %1055 = vperm.xlu0 %1054, %v884
        %v1056 = vpop.permute.xlu0 %1055
        %v1058 = vmul.f32 %v1036, %v1022
        %v1059 = vmul.f32 %v1036, %v1023
        %v1060 = vmul.f32 %v1040, %v1024
        %v1061 = vmul.f32 %v1040, %v1025
        %v1062 = vmul.f32 %v1044, %v1026
        %v1063 = vmul.f32 %v1044, %v1027
        %v1064 = vmul.f32 %v1048, %v1028
        %v1065 = vmul.f32 %v1048, %v1029
        %v1066 = vmul.f32 %v1052, %v1030
        %v1067 = vmul.f32 %v1052, %v1031
        %v1068 = vmul.f32 %v1056, %v1032
        %v1069 = vmul.f32 %v1056, %v1033
        %v1070 = vadd.f32 %v963, %v1058
        %v1071 = vadd.f32 %v964, %v1059
        %v1072 = vadd.f32 %v965, %v1060
        %v1073 = vadd.f32 %v966, %v1061
        %v1074 = vadd.f32 %v967, %v1062
        %v1075 = vadd.f32 %v968, %v1063
        %v1076 = vadd.f32 %v969, %v1064
        %v1077 = vadd.f32 %v970, %v1065
        %v1078 = vadd.f32 %v971, %v1066
        %v1079 = vadd.f32 %v972, %v1067
        %v1080 = vadd.f32 %v973, %v1068
        %v1081 = vadd.f32 %v974, %v1069
        %1082 = vrot.lane.b32.xlu0 %v845, 16
        %v1083 = vpop.permute.xlu0 %1082
        %1084 = vrot.lane.b32.xlu0 %v851, 16
        %v1085 = vpop.permute.xlu0 %1084
        %1086 = vrot.lane.b32.xlu0 %v857, 16
        %v1087 = vpop.permute.xlu0 %1086
        %1088 = vrot.lane.b32.xlu0 %v863, 16
        %v1089 = vpop.permute.xlu0 %1088
        %1090 = vrot.lane.b32.xlu0 %v869, 16
        %v1091 = vpop.permute.xlu0 %1090
        %1092 = vrot.lane.b32.xlu0 %v875, 16
        %v1093 = vpop.permute.xlu0 %1092
        %1094 = vrot.lane.b32.xlu0 %v847, 16
        %v1095 = vpop.permute.xlu0 %1094
        %1096 = vrot.lane.b32.xlu0 %v853, 16
        %v1097 = vpop.permute.xlu0 %1096
        %1098 = vrot.lane.b32.xlu0 %v859, 16
        %v1099 = vpop.permute.xlu0 %1098
        %1100 = vrot.lane.b32.xlu0 %v865, 16
        %v1101 = vpop.permute.xlu0 %1100
        %1102 = vrot.lane.b32.xlu0 %v871, 16
        %v1103 = vpop.permute.xlu0 %1102
        %1104 = vrot.lane.b32.xlu0 %v877, 16
        %v1105 = vpop.permute.xlu0 %1104
        %vm1106 = vcmp.lt.s32.totalorder %v1000, 16
        %v1107 = vsel %vm1106, %v1083, %v1095
        %v1108 = vsel %vm1106, %v1085, %v1097
        %v1109 = vsel %vm1106, %v1087, %v1099
        %v1110 = vsel %vm1106, %v1089, %v1101
        %v1111 = vsel %vm1106, %v1091, %v1103
        %v1112 = vsel %vm1106, %v1093, %v1105
        %v1113 = vsel %vm1106, %v1095, %v1083
        %v1114 = vsel %vm1106, %v1097, %v1085
        %v1115 = vsel %vm1106, %v1099, %v1087
        %v1116 = vsel %vm1106, %v1101, %v1089
        %v1117 = vsel %vm1106, %v1103, %v1091
        %v1118 = vsel %vm1106, %v1105, %v1093
        %v1119 = vlaneseq
        %v1120 = vshrl.u32 %v1119, 7
        %v1121 = vsub.s32 1, %v1120
        %v1122 = vrot.slane %v632, %v1121
        %v1123 = vlaneseq
        %v1124 = vshrl.u32 %v1123, 7
        %v1125 = vsub.s32 1, %v1124
        %v1126 = vrot.slane %v633, %v1125
        %v1127 = vmul.f32 %v1113, %v1122
        %v1128 = vmul.f32 %v1107, %v1126
        %v1129 = vmul.f32 %v1114, %v1122
        %v1130 = vmul.f32 %v1108, %v1126
        %v1131 = vmul.f32 %v1115, %v1122
        %v1132 = vmul.f32 %v1109, %v1126
        %v1133 = vmul.f32 %v1116, %v1122
        %v1134 = vmul.f32 %v1110, %v1126
        %v1135 = vmul.f32 %v1117, %v1122
        %v1136 = vmul.f32 %v1111, %v1126
        %v1137 = vmul.f32 %v1118, %v1122
        %v1138 = vmul.f32 %v1112, %v1126
        %1139 = vset.pattern.permute.xlu0 1
        %1140 = vperm.xlu0 %1139, %v879
        %v1141 = vpop.permute.xlu0 %1140
        %1143 = vset.pattern.permute.xlu0 1
        %1144 = vperm.xlu0 %1143, %v880
        %v1145 = vpop.permute.xlu0 %1144
        %1147 = vset.pattern.permute.xlu0 1
        %1148 = vperm.xlu0 %1147, %v881
        %v1149 = vpop.permute.xlu0 %1148
        %1151 = vset.pattern.permute.xlu0 1
        %1152 = vperm.xlu0 %1151, %v882
        %v1153 = vpop.permute.xlu0 %1152
        %1155 = vset.pattern.permute.xlu0 1
        %1156 = vperm.xlu0 %1155, %v883
        %v1157 = vpop.permute.xlu0 %1156
        %1159 = vset.pattern.permute.xlu0 1
        %1160 = vperm.xlu0 %1159, %v884
        %v1161 = vpop.permute.xlu0 %1160
        %v1163 = vmul.f32 %v1141, %v1127
        %v1164 = vmul.f32 %v1141, %v1128
        %v1165 = vmul.f32 %v1145, %v1129
        %v1166 = vmul.f32 %v1145, %v1130
        %v1167 = vmul.f32 %v1149, %v1131
        %v1168 = vmul.f32 %v1149, %v1132
        %v1169 = vmul.f32 %v1153, %v1133
        %v1170 = vmul.f32 %v1153, %v1134
        %v1171 = vmul.f32 %v1157, %v1135
        %v1172 = vmul.f32 %v1157, %v1136
        %v1173 = vmul.f32 %v1161, %v1137
        %v1174 = vmul.f32 %v1161, %v1138
        %v1175 = vadd.f32 %v1070, %v1163
        %v1176 = vadd.f32 %v1071, %v1164
        %v1177 = vadd.f32 %v1072, %v1165
        %v1178 = vadd.f32 %v1073, %v1166
        %v1179 = vadd.f32 %v1074, %v1167
        %v1180 = vadd.f32 %v1075, %v1168
        %v1181 = vadd.f32 %v1076, %v1169
        %v1182 = vadd.f32 %v1077, %v1170
        %v1183 = vadd.f32 %v1078, %v1171
        %v1184 = vadd.f32 %v1079, %v1172
        %v1185 = vadd.f32 %v1080, %v1173
        %v1186 = vadd.f32 %v1081, %v1174
        %1187 = vrot.lane.b32.xlu0 %v845, 15
        %v1188 = vpop.permute.xlu0 %1187
        %1189 = vrot.lane.b32.xlu0 %v851, 15
        %v1190 = vpop.permute.xlu0 %1189
        %1191 = vrot.lane.b32.xlu0 %v857, 15
        %v1192 = vpop.permute.xlu0 %1191
        %1193 = vrot.lane.b32.xlu0 %v863, 15
        %v1194 = vpop.permute.xlu0 %1193
        %1195 = vrot.lane.b32.xlu0 %v869, 15
        %v1196 = vpop.permute.xlu0 %1195
        %1197 = vrot.lane.b32.xlu0 %v875, 15
        %v1198 = vpop.permute.xlu0 %1197
        %1199 = vrot.lane.b32.xlu0 %v847, 15
        %v1200 = vpop.permute.xlu0 %1199
        %1201 = vrot.lane.b32.xlu0 %v853, 15
        %v1202 = vpop.permute.xlu0 %1201
        %1203 = vrot.lane.b32.xlu0 %v859, 15
        %v1204 = vpop.permute.xlu0 %1203
        %1205 = vrot.lane.b32.xlu0 %v865, 15
        %v1206 = vpop.permute.xlu0 %1205
        %1207 = vrot.lane.b32.xlu0 %v871, 15
        %v1208 = vpop.permute.xlu0 %1207
        %1209 = vrot.lane.b32.xlu0 %v877, 15
        %v1210 = vpop.permute.xlu0 %1209
        %vm1211 = vcmp.lt.s32.totalorder %v1000, 15
        %v1212 = vsel %vm1211, %v1188, %v1200
        %v1213 = vsel %vm1211, %v1190, %v1202
        %v1214 = vsel %vm1211, %v1192, %v1204
        %v1215 = vsel %vm1211, %v1194, %v1206
        %v1216 = vsel %vm1211, %v1196, %v1208
        %v1217 = vsel %vm1211, %v1198, %v1210
        %v1218 = vsel %vm1211, %v1200, %v1188
        %v1219 = vsel %vm1211, %v1202, %v1190
        %v1220 = vsel %vm1211, %v1204, %v1192
        %v1221 = vsel %vm1211, %v1206, %v1194
        %v1222 = vsel %vm1211, %v1208, %v1196
        %v1223 = vsel %vm1211, %v1210, %v1198
        %v1224 = vlaneseq
        %v1225 = vshrl.u32 %v1224, 7
        %v1226 = vsub.s32 2, %v1225
        %v1227 = vrot.slane %v632, %v1226
        %v1228 = vlaneseq
        %v1229 = vshrl.u32 %v1228, 7
        %v1230 = vsub.s32 2, %v1229
        %v1231 = vrot.slane %v633, %v1230
        %v1232 = vmul.f32 %v1218, %v1227
        %v1233 = vmul.f32 %v1212, %v1231
        %v1234 = vmul.f32 %v1219, %v1227
        %v1235 = vmul.f32 %v1213, %v1231
        %v1236 = vmul.f32 %v1220, %v1227
        %v1237 = vmul.f32 %v1214, %v1231
        %v1238 = vmul.f32 %v1221, %v1227
        %v1239 = vmul.f32 %v1215, %v1231
        %v1240 = vmul.f32 %v1222, %v1227
        %v1241 = vmul.f32 %v1216, %v1231
        %v1242 = vmul.f32 %v1223, %v1227
        %v1243 = vmul.f32 %v1217, %v1231
        %1244 = vset.pattern.permute.xlu0 2
        %1245 = vperm.xlu0 %1244, %v879
        %v1246 = vpop.permute.xlu0 %1245
        %1248 = vset.pattern.permute.xlu0 2
        %1249 = vperm.xlu0 %1248, %v880
        %v1250 = vpop.permute.xlu0 %1249
        %1252 = vset.pattern.permute.xlu0 2
        %1253 = vperm.xlu0 %1252, %v881
        %v1254 = vpop.permute.xlu0 %1253
        %1256 = vset.pattern.permute.xlu0 2
        %1257 = vperm.xlu0 %1256, %v882
        %v1258 = vpop.permute.xlu0 %1257
        %1260 = vset.pattern.permute.xlu0 2
        %1261 = vperm.xlu0 %1260, %v883
        %v1262 = vpop.permute.xlu0 %1261
        %1264 = vset.pattern.permute.xlu0 2
        %1265 = vperm.xlu0 %1264, %v884
        %v1266 = vpop.permute.xlu0 %1265
        %v1268 = vmul.f32 %v1246, %v1232
        %v1269 = vmul.f32 %v1246, %v1233
        %v1270 = vmul.f32 %v1250, %v1234
        %v1271 = vmul.f32 %v1250, %v1235
        %v1272 = vmul.f32 %v1254, %v1236
        %v1273 = vmul.f32 %v1254, %v1237
        %v1274 = vmul.f32 %v1258, %v1238
        %v1275 = vmul.f32 %v1258, %v1239
        %v1276 = vmul.f32 %v1262, %v1240
        %v1277 = vmul.f32 %v1262, %v1241
        %v1278 = vmul.f32 %v1266, %v1242
        %v1279 = vmul.f32 %v1266, %v1243
        %v1280 = vadd.f32 %v1175, %v1268
        %v1281 = vadd.f32 %v1176, %v1269
        %v1282 = vadd.f32 %v1177, %v1270
        %v1283 = vadd.f32 %v1178, %v1271
        %v1284 = vadd.f32 %v1179, %v1272
        %v1285 = vadd.f32 %v1180, %v1273
        %v1286 = vadd.f32 %v1181, %v1274
        %v1287 = vadd.f32 %v1182, %v1275
        %v1288 = vadd.f32 %v1183, %v1276
        %v1289 = vadd.f32 %v1184, %v1277
        %v1290 = vadd.f32 %v1185, %v1278
        %v1291 = vadd.f32 %v1186, %v1279
        %1292 = vrot.lane.b32.xlu0 %v845, 1
        %v1293 = vpop.permute.xlu0 %1292
        %1294 = vrot.lane.b32.xlu0 %v851, 1
        %v1295 = vpop.permute.xlu0 %1294
        %1296 = vrot.lane.b32.xlu0 %v857, 1
        %v1297 = vpop.permute.xlu0 %1296
        %1298 = vrot.lane.b32.xlu0 %v863, 1
        %v1299 = vpop.permute.xlu0 %1298
        %1300 = vrot.lane.b32.xlu0 %v869, 1
        %v1301 = vpop.permute.xlu0 %1300
        %1302 = vrot.lane.b32.xlu0 %v875, 1
        %v1303 = vpop.permute.xlu0 %1302
        %1304 = vrot.lane.b32.xlu0 %v847, 1
        %v1305 = vpop.permute.xlu0 %1304
        %1306 = vrot.lane.b32.xlu0 %v853, 1
        %v1307 = vpop.permute.xlu0 %1306
        %1308 = vrot.lane.b32.xlu0 %v859, 1
        %v1309 = vpop.permute.xlu0 %1308
        %1310 = vrot.lane.b32.xlu0 %v865, 1
        %v1311 = vpop.permute.xlu0 %1310
        %1312 = vrot.lane.b32.xlu0 %v871, 1
        %v1313 = vpop.permute.xlu0 %1312
        %1314 = vrot.lane.b32.xlu0 %v877, 1
        %v1315 = vpop.permute.xlu0 %1314
        %vm1316 = vcmp.lt.s32.totalorder %v1000, 1
        %v1317 = vsel %vm1316, %v1293, %v1305
        %v1318 = vsel %vm1316, %v1295, %v1307
        %v1319 = vsel %vm1316, %v1297, %v1309
        %v1320 = vsel %vm1316, %v1299, %v1311
        %v1321 = vsel %vm1316, %v1301, %v1313
        %v1322 = vsel %vm1316, %v1303, %v1315
        %v1323 = vsel %vm1316, %v1305, %v1293
        %v1324 = vsel %vm1316, %v1307, %v1295
        %v1325 = vsel %vm1316, %v1309, %v1297
        %v1326 = vsel %vm1316, %v1311, %v1299
        %v1327 = vsel %vm1316, %v1313, %v1301
        %v1328 = vsel %vm1316, %v1315, %v1303
        %v1329 = vlaneseq
        %v1330 = vshrl.u32 %v1329, 7
        %v1331 = vsub.s32 3, %v1330
        %v1332 = vrot.slane %v632, %v1331
        %v1333 = vlaneseq
        %v1334 = vshrl.u32 %v1333, 7
        %v1335 = vsub.s32 3, %v1334
        %v1336 = vrot.slane %v633, %v1335
        %v1337 = vmul.f32 %v1323, %v1332
        %v1338 = vmul.f32 %v1317, %v1336
        %v1339 = vmul.f32 %v1324, %v1332
        %v1340 = vmul.f32 %v1318, %v1336
        %v1341 = vmul.f32 %v1325, %v1332
        %v1342 = vmul.f32 %v1319, %v1336
        %v1343 = vmul.f32 %v1326, %v1332
        %v1344 = vmul.f32 %v1320, %v1336
        %v1345 = vmul.f32 %v1327, %v1332
        %v1346 = vmul.f32 %v1321, %v1336
        %v1347 = vmul.f32 %v1328, %v1332
        %v1348 = vmul.f32 %v1322, %v1336
        %1349 = vset.pattern.permute.xlu0 3
        %1350 = vperm.xlu0 %1349, %v879
        %v1351 = vpop.permute.xlu0 %1350
        %1353 = vset.pattern.permute.xlu0 3
        %1354 = vperm.xlu0 %1353, %v880
        %v1355 = vpop.permute.xlu0 %1354
        %1357 = vset.pattern.permute.xlu0 3
        %1358 = vperm.xlu0 %1357, %v881
        %v1359 = vpop.permute.xlu0 %1358
        %1361 = vset.pattern.permute.xlu0 3
        %1362 = vperm.xlu0 %1361, %v882
        %v1363 = vpop.permute.xlu0 %1362
        %1365 = vset.pattern.permute.xlu0 3
        %1366 = vperm.xlu0 %1365, %v883
        %v1367 = vpop.permute.xlu0 %1366
        %1369 = vset.pattern.permute.xlu0 3
        %1370 = vperm.xlu0 %1369, %v884
        %v1371 = vpop.permute.xlu0 %1370
        %v1373 = vmul.f32 %v1351, %v1337
        %v1374 = vmul.f32 %v1351, %v1338
        %v1375 = vmul.f32 %v1355, %v1339
        %v1376 = vmul.f32 %v1355, %v1340
        %v1377 = vmul.f32 %v1359, %v1341
        %v1378 = vmul.f32 %v1359, %v1342
        %v1379 = vmul.f32 %v1363, %v1343
        %v1380 = vmul.f32 %v1363, %v1344
        %v1381 = vmul.f32 %v1367, %v1345
        %v1382 = vmul.f32 %v1367, %v1346
        %v1383 = vmul.f32 %v1371, %v1347
        %v1384 = vmul.f32 %v1371, %v1348
        %v1385 = vadd.f32 %v1280, %v1373
        %v1386 = vadd.f32 %v1281, %v1374
        %v1387 = vadd.f32 %v1282, %v1375
        %v1388 = vadd.f32 %v1283, %v1376
        %v1389 = vadd.f32 %v1284, %v1377
        %v1390 = vadd.f32 %v1285, %v1378
        %v1391 = vadd.f32 %v1286, %v1379
        %v1392 = vadd.f32 %v1287, %v1380
        %v1393 = vadd.f32 %v1288, %v1381
        %v1394 = vadd.f32 %v1289, %v1382
        %v1395 = vadd.f32 %v1290, %v1383
        %v1396 = vadd.f32 %v1291, %v1384
        %1397 = vrot.lane.b32.xlu0 %v845, 127
        %v1398 = vpop.permute.xlu0 %1397
        %1399 = vrot.lane.b32.xlu0 %v851, 127
        %v1400 = vpop.permute.xlu0 %1399
        %1401 = vrot.lane.b32.xlu0 %v857, 127
        %v1402 = vpop.permute.xlu0 %1401
        %1403 = vrot.lane.b32.xlu0 %v863, 127
        %v1404 = vpop.permute.xlu0 %1403
        %1405 = vrot.lane.b32.xlu0 %v869, 127
        %v1406 = vpop.permute.xlu0 %1405
        %1407 = vrot.lane.b32.xlu0 %v875, 127
        %v1408 = vpop.permute.xlu0 %1407
        %1409 = vrot.lane.b32.xlu0 %v847, 127
        %v1410 = vpop.permute.xlu0 %1409
        %1411 = vrot.lane.b32.xlu0 %v853, 127
        %v1412 = vpop.permute.xlu0 %1411
        %1413 = vrot.lane.b32.xlu0 %v859, 127
        %v1414 = vpop.permute.xlu0 %1413
        %1415 = vrot.lane.b32.xlu0 %v865, 127
        %v1416 = vpop.permute.xlu0 %1415
        %1417 = vrot.lane.b32.xlu0 %v871, 127
        %v1418 = vpop.permute.xlu0 %1417
        %1419 = vrot.lane.b32.xlu0 %v877, 127
        %v1420 = vpop.permute.xlu0 %1419
        %vm1421 = vcmp.lt.s32.totalorder %v1000, 127
        %v1422 = vsel %vm1421, %v1398, %v1410
        %v1423 = vsel %vm1421, %v1400, %v1412
        %v1424 = vsel %vm1421, %v1402, %v1414
        %v1425 = vsel %vm1421, %v1404, %v1416
        %v1426 = vsel %vm1421, %v1406, %v1418
        %v1427 = vsel %vm1421, %v1408, %v1420
        %v1428 = vsel %vm1421, %v1410, %v1398
        %v1429 = vsel %vm1421, %v1412, %v1400
        %v1430 = vsel %vm1421, %v1414, %v1402
        %v1431 = vsel %vm1421, %v1416, %v1404
        %v1432 = vsel %vm1421, %v1418, %v1406
        %v1433 = vsel %vm1421, %v1420, %v1408
        %v1434 = vlaneseq
        %v1435 = vshrl.u32 %v1434, 7
        %v1436 = vsub.s32 5, %v1435
        %v1437 = vrot.slane %v632, %v1436
        %v1438 = vlaneseq
        %v1439 = vshrl.u32 %v1438, 7
        %v1440 = vsub.s32 5, %v1439
        %v1441 = vrot.slane %v633, %v1440
        %v1442 = vmul.f32 %v1422, %v1437
        %v1443 = vmul.f32 %v1428, %v1441
        %v1444 = vmul.f32 %v1423, %v1437
        %v1445 = vmul.f32 %v1429, %v1441
        %v1446 = vmul.f32 %v1424, %v1437
        %v1447 = vmul.f32 %v1430, %v1441
        %v1448 = vmul.f32 %v1425, %v1437
        %v1449 = vmul.f32 %v1431, %v1441
        %v1450 = vmul.f32 %v1426, %v1437
        %v1451 = vmul.f32 %v1432, %v1441
        %v1452 = vmul.f32 %v1427, %v1437
        %v1453 = vmul.f32 %v1433, %v1441
        %1454 = vset.pattern.permute.xlu0 5
        %1455 = vperm.xlu0 %1454, %v879
        %v1456 = vpop.permute.xlu0 %1455
        %1458 = vset.pattern.permute.xlu0 5
        %1459 = vperm.xlu0 %1458, %v880
        %v1460 = vpop.permute.xlu0 %1459
        %1462 = vset.pattern.permute.xlu0 5
        %1463 = vperm.xlu0 %1462, %v881
        %v1464 = vpop.permute.xlu0 %1463
        %1466 = vset.pattern.permute.xlu0 5
        %1467 = vperm.xlu0 %1466, %v882
        %v1468 = vpop.permute.xlu0 %1467
        %1470 = vset.pattern.permute.xlu0 5
        %1471 = vperm.xlu0 %1470, %v883
        %v1472 = vpop.permute.xlu0 %1471
        %1474 = vset.pattern.permute.xlu0 5
        %1475 = vperm.xlu0 %1474, %v884
        %v1476 = vpop.permute.xlu0 %1475
        %v1478 = vmul.f32 %v1456, %v1442
        %v1479 = vmul.f32 %v1456, %v1443
        %v1480 = vmul.f32 %v1460, %v1444
        %v1481 = vmul.f32 %v1460, %v1445
        %v1482 = vmul.f32 %v1464, %v1446
        %v1483 = vmul.f32 %v1464, %v1447
        %v1484 = vmul.f32 %v1468, %v1448
        %v1485 = vmul.f32 %v1468, %v1449
        %v1486 = vmul.f32 %v1472, %v1450
        %v1487 = vmul.f32 %v1472, %v1451
        %v1488 = vmul.f32 %v1476, %v1452
        %v1489 = vmul.f32 %v1476, %v1453
        %v1490 = vadd.f32 %v1385, %v1478
        %v1491 = vadd.f32 %v1386, %v1479
        %v1492 = vadd.f32 %v1387, %v1480
        %v1493 = vadd.f32 %v1388, %v1481
        %v1494 = vadd.f32 %v1389, %v1482
        %v1495 = vadd.f32 %v1390, %v1483
        %v1496 = vadd.f32 %v1391, %v1484
        %v1497 = vadd.f32 %v1392, %v1485
        %v1498 = vadd.f32 %v1393, %v1486
        %v1499 = vadd.f32 %v1394, %v1487
        %v1500 = vadd.f32 %v1395, %v1488
        %v1501 = vadd.f32 %v1396, %v1489
        %1502 = vrot.lane.b32.xlu0 %v845, 113
        %v1503 = vpop.permute.xlu0 %1502
        %1504 = vrot.lane.b32.xlu0 %v851, 113
        %v1505 = vpop.permute.xlu0 %1504
        %1506 = vrot.lane.b32.xlu0 %v857, 113
        %v1507 = vpop.permute.xlu0 %1506
        %1508 = vrot.lane.b32.xlu0 %v863, 113
        %v1509 = vpop.permute.xlu0 %1508
        %1510 = vrot.lane.b32.xlu0 %v869, 113
        %v1511 = vpop.permute.xlu0 %1510
        %1512 = vrot.lane.b32.xlu0 %v875, 113
        %v1513 = vpop.permute.xlu0 %1512
        %1514 = vrot.lane.b32.xlu0 %v847, 113
        %v1515 = vpop.permute.xlu0 %1514
        %1516 = vrot.lane.b32.xlu0 %v853, 113
        %v1517 = vpop.permute.xlu0 %1516
        %1518 = vrot.lane.b32.xlu0 %v859, 113
        %v1519 = vpop.permute.xlu0 %1518
        %1520 = vrot.lane.b32.xlu0 %v865, 113
        %v1521 = vpop.permute.xlu0 %1520
        %1522 = vrot.lane.b32.xlu0 %v871, 113
        %v1523 = vpop.permute.xlu0 %1522
        %1524 = vrot.lane.b32.xlu0 %v877, 113
        %v1525 = vpop.permute.xlu0 %1524
        %vm1526 = vcmp.lt.s32.totalorder %v1000, 113
        %v1527 = vsel %vm1526, %v1503, %v1515
        %v1528 = vsel %vm1526, %v1505, %v1517
        %v1529 = vsel %vm1526, %v1507, %v1519
        %v1530 = vsel %vm1526, %v1509, %v1521
        %v1531 = vsel %vm1526, %v1511, %v1523
        %v1532 = vsel %vm1526, %v1513, %v1525
        %v1533 = vsel %vm1526, %v1515, %v1503
        %v1534 = vsel %vm1526, %v1517, %v1505
        %v1535 = vsel %vm1526, %v1519, %v1507
        %v1536 = vsel %vm1526, %v1521, %v1509
        %v1537 = vsel %vm1526, %v1523, %v1511
        %v1538 = vsel %vm1526, %v1525, %v1513
        %v1539 = vlaneseq
        %v1540 = vshrl.u32 %v1539, 7
        %v1541 = vsub.s32 6, %v1540
        %v1542 = vrot.slane %v632, %v1541
        %v1543 = vlaneseq
        %v1544 = vshrl.u32 %v1543, 7
        %v1545 = vsub.s32 6, %v1544
        %v1546 = vrot.slane %v633, %v1545
        %v1547 = vmul.f32 %v1527, %v1542
        %v1548 = vmul.f32 %v1533, %v1546
        %v1549 = vmul.f32 %v1528, %v1542
        %v1550 = vmul.f32 %v1534, %v1546
        %v1551 = vmul.f32 %v1529, %v1542
        %v1552 = vmul.f32 %v1535, %v1546
        %v1553 = vmul.f32 %v1530, %v1542
        %v1554 = vmul.f32 %v1536, %v1546
        %v1555 = vmul.f32 %v1531, %v1542
        %v1556 = vmul.f32 %v1537, %v1546
        %v1557 = vmul.f32 %v1532, %v1542
        %v1558 = vmul.f32 %v1538, %v1546
        %1559 = vset.pattern.permute.xlu0 6
        %1560 = vperm.xlu0 %1559, %v879
        %v1561 = vpop.permute.xlu0 %1560
        %1563 = vset.pattern.permute.xlu0 6
        %1564 = vperm.xlu0 %1563, %v880
        %v1565 = vpop.permute.xlu0 %1564
        %1567 = vset.pattern.permute.xlu0 6
        %1568 = vperm.xlu0 %1567, %v881
        %v1569 = vpop.permute.xlu0 %1568
        %1571 = vset.pattern.permute.xlu0 6
        %1572 = vperm.xlu0 %1571, %v882
        %v1573 = vpop.permute.xlu0 %1572
        %1575 = vset.pattern.permute.xlu0 6
        %1576 = vperm.xlu0 %1575, %v883
        %v1577 = vpop.permute.xlu0 %1576
        %1579 = vset.pattern.permute.xlu0 6
        %1580 = vperm.xlu0 %1579, %v884
        %v1581 = vpop.permute.xlu0 %1580
        %v1583 = vmul.f32 %v1561, %v1547
        %v1584 = vmul.f32 %v1561, %v1548
        %v1585 = vmul.f32 %v1565, %v1549
        %v1586 = vmul.f32 %v1565, %v1550
        %v1587 = vmul.f32 %v1569, %v1551
        %v1588 = vmul.f32 %v1569, %v1552
        %v1589 = vmul.f32 %v1573, %v1553
        %v1590 = vmul.f32 %v1573, %v1554
        %v1591 = vmul.f32 %v1577, %v1555
        %v1592 = vmul.f32 %v1577, %v1556
        %v1593 = vmul.f32 %v1581, %v1557
        %v1594 = vmul.f32 %v1581, %v1558
        %v1595 = vadd.f32 %v1490, %v1583
        %v1596 = vadd.f32 %v1491, %v1584
        %v1597 = vadd.f32 %v1492, %v1585
        %v1598 = vadd.f32 %v1493, %v1586
        %v1599 = vadd.f32 %v1494, %v1587
        %v1600 = vadd.f32 %v1495, %v1588
        %v1601 = vadd.f32 %v1496, %v1589
        %v1602 = vadd.f32 %v1497, %v1590
        %v1603 = vadd.f32 %v1498, %v1591
        %v1604 = vadd.f32 %v1499, %v1592
        %v1605 = vadd.f32 %v1500, %v1593
        %v1606 = vadd.f32 %v1501, %v1594
        %1607 = vrot.lane.b32.xlu0 %v845, 112
        %v1608 = vpop.permute.xlu0 %1607
        %1609 = vrot.lane.b32.xlu0 %v851, 112
        %v1610 = vpop.permute.xlu0 %1609
        %1611 = vrot.lane.b32.xlu0 %v857, 112
        %v1612 = vpop.permute.xlu0 %1611
        %1613 = vrot.lane.b32.xlu0 %v863, 112
        %v1614 = vpop.permute.xlu0 %1613
        %1615 = vrot.lane.b32.xlu0 %v869, 112
        %v1616 = vpop.permute.xlu0 %1615
        %1617 = vrot.lane.b32.xlu0 %v875, 112
        %v1618 = vpop.permute.xlu0 %1617
        %1619 = vrot.lane.b32.xlu0 %v847, 112
        %v1620 = vpop.permute.xlu0 %1619
        %1621 = vrot.lane.b32.xlu0 %v853, 112
        %v1622 = vpop.permute.xlu0 %1621
        %1623 = vrot.lane.b32.xlu0 %v859, 112
        %v1624 = vpop.permute.xlu0 %1623
        %1625 = vrot.lane.b32.xlu0 %v865, 112
        %v1626 = vpop.permute.xlu0 %1625
        %1627 = vrot.lane.b32.xlu0 %v871, 112
        %v1628 = vpop.permute.xlu0 %1627
        %1629 = vrot.lane.b32.xlu0 %v877, 112
        %v1630 = vpop.permute.xlu0 %1629
        %vm1631 = vcmp.lt.s32.totalorder %v1000, 112
        %v1632 = vsel %vm1631, %v1608, %v1620
        %v1633 = vsel %vm1631, %v1610, %v1622
        %v1634 = vsel %vm1631, %v1612, %v1624
        %v1635 = vsel %vm1631, %v1614, %v1626
        %v1636 = vsel %vm1631, %v1616, %v1628
        %v1637 = vsel %vm1631, %v1618, %v1630
        %v1638 = vsel %vm1631, %v1620, %v1608
        %v1639 = vsel %vm1631, %v1622, %v1610
        %v1640 = vsel %vm1631, %v1624, %v1612
        %v1641 = vsel %vm1631, %v1626, %v1614
        %v1642 = vsel %vm1631, %v1628, %v1616
        %v1643 = vsel %vm1631, %v1630, %v1618
        %v1644 = vlaneseq
        %v1645 = vshrl.u32 %v1644, 7
        %v1646 = vsub.s32 7, %v1645
        %v1647 = vrot.slane %v632, %v1646
        %v1648 = vlaneseq
        %v1649 = vshrl.u32 %v1648, 7
        %v1650 = vsub.s32 7, %v1649
        %v1651 = vrot.slane %v633, %v1650
        %v1652 = vmul.f32 %v1632, %v1647
        %v1653 = vmul.f32 %v1638, %v1651
        %v1654 = vmul.f32 %v1633, %v1647
        %v1655 = vmul.f32 %v1639, %v1651
        %v1656 = vmul.f32 %v1634, %v1647
        %v1657 = vmul.f32 %v1640, %v1651
        %v1658 = vmul.f32 %v1635, %v1647
        %v1659 = vmul.f32 %v1641, %v1651
        %v1660 = vmul.f32 %v1636, %v1647
        %v1661 = vmul.f32 %v1642, %v1651
        %v1662 = vmul.f32 %v1637, %v1647
        %v1663 = vmul.f32 %v1643, %v1651
        %1664 = vset.pattern.permute.xlu0 7
        %1665 = vperm.xlu0 %1664, %v879
        %v1666 = vpop.permute.xlu0 %1665
        %1668 = vset.pattern.permute.xlu0 7
        %1669 = vperm.xlu0 %1668, %v880
        %v1670 = vpop.permute.xlu0 %1669
        %1672 = vset.pattern.permute.xlu0 7
        %1673 = vperm.xlu0 %1672, %v881
        %v1674 = vpop.permute.xlu0 %1673
        %1676 = vset.pattern.permute.xlu0 7
        %1677 = vperm.xlu0 %1676, %v882
        %v1678 = vpop.permute.xlu0 %1677
        %1680 = vset.pattern.permute.xlu0 7
        %1681 = vperm.xlu0 %1680, %v883
        %v1682 = vpop.permute.xlu0 %1681
        %1684 = vset.pattern.permute.xlu0 7
        %1685 = vperm.xlu0 %1684, %v884
        %v1686 = vpop.permute.xlu0 %1685
        %v1688 = vmul.f32 %v1666, %v1652
        %v1689 = vmul.f32 %v1666, %v1653
        %v1690 = vmul.f32 %v1670, %v1654
        %v1691 = vmul.f32 %v1670, %v1655
        %v1692 = vmul.f32 %v1674, %v1656
        %v1693 = vmul.f32 %v1674, %v1657
        %v1694 = vmul.f32 %v1678, %v1658
        %v1695 = vmul.f32 %v1678, %v1659
        %v1696 = vmul.f32 %v1682, %v1660
        %v1697 = vmul.f32 %v1682, %v1661
        %v1698 = vmul.f32 %v1686, %v1662
        %v1699 = vmul.f32 %v1686, %v1663
        %v1700 = vadd.f32 %v1595, %v1688
        %v1701 = vadd.f32 %v1596, %v1689
        %v1702 = vadd.f32 %v1597, %v1690
        %v1703 = vadd.f32 %v1598, %v1691
        %v1704 = vadd.f32 %v1599, %v1692
        %v1705 = vadd.f32 %v1600, %v1693
        %v1706 = vadd.f32 %v1601, %v1694
        %v1707 = vadd.f32 %v1602, %v1695
        %v1708 = vadd.f32 %v1603, %v1696
        %v1709 = vadd.f32 %v1604, %v1697
        %v1710 = vadd.f32 %v1605, %v1698
        %v1711 = vadd.f32 %v1606, %v1699
        %1712 = vrot.lane.b32.xlu0 %v845, 111
        %v1713 = vpop.permute.xlu0 %1712
        %1714 = vrot.lane.b32.xlu0 %v851, 111
        %v1715 = vpop.permute.xlu0 %1714
        %1716 = vrot.lane.b32.xlu0 %v857, 111
        %v1717 = vpop.permute.xlu0 %1716
        %1718 = vrot.lane.b32.xlu0 %v863, 111
        %v1719 = vpop.permute.xlu0 %1718
        %1720 = vrot.lane.b32.xlu0 %v869, 111
        %v1721 = vpop.permute.xlu0 %1720
        %1722 = vrot.lane.b32.xlu0 %v875, 111
        %v1723 = vpop.permute.xlu0 %1722
        %1724 = vrot.lane.b32.xlu0 %v847, 111
        %v1725 = vpop.permute.xlu0 %1724
        %1726 = vrot.lane.b32.xlu0 %v853, 111
        %v1727 = vpop.permute.xlu0 %1726
        %1728 = vrot.lane.b32.xlu0 %v859, 111
        %v1729 = vpop.permute.xlu0 %1728
        %1730 = vrot.lane.b32.xlu0 %v865, 111
        %v1731 = vpop.permute.xlu0 %1730
        %1732 = vrot.lane.b32.xlu0 %v871, 111
        %v1733 = vpop.permute.xlu0 %1732
        %1734 = vrot.lane.b32.xlu0 %v877, 111
        %v1735 = vpop.permute.xlu0 %1734
        %vm1736 = vcmp.lt.s32.totalorder %v1000, 111
        %v1737 = vsel %vm1736, %v1713, %v1725
        %v1738 = vsel %vm1736, %v1715, %v1727
        %v1739 = vsel %vm1736, %v1717, %v1729
        %v1740 = vsel %vm1736, %v1719, %v1731
        %v1741 = vsel %vm1736, %v1721, %v1733
        %v1742 = vsel %vm1736, %v1723, %v1735
        %v1743 = vsel %vm1736, %v1725, %v1713
        %v1744 = vsel %vm1736, %v1727, %v1715
        %v1745 = vsel %vm1736, %v1729, %v1717
        %v1746 = vsel %vm1736, %v1731, %v1719
        %v1747 = vsel %vm1736, %v1733, %v1721
        %v1748 = vsel %vm1736, %v1735, %v1723
        %v1749 = vlaneseq
        %v1750 = vshrl.u32 %v1749, 7
        %v1751 = vsub.s32 0, %v1750
        %v1752 = vrot.slane %v634, %v1751
        %v1753 = vlaneseq
        %v1754 = vshrl.u32 %v1753, 7
        %v1755 = vsub.s32 0, %v1754
        %v1756 = vrot.slane %v635, %v1755
        %v1757 = vmul.f32 %v1737, %v1752
        %v1758 = vmul.f32 %v1743, %v1756
        %v1759 = vmul.f32 %v1738, %v1752
        %v1760 = vmul.f32 %v1744, %v1756
        %v1761 = vmul.f32 %v1739, %v1752
        %v1762 = vmul.f32 %v1745, %v1756
        %v1763 = vmul.f32 %v1740, %v1752
        %v1764 = vmul.f32 %v1746, %v1756
        %v1765 = vmul.f32 %v1741, %v1752
        %v1766 = vmul.f32 %v1747, %v1756
        %v1767 = vmul.f32 %v1742, %v1752
        %v1768 = vmul.f32 %v1748, %v1756
        %1769 = vset.pattern.permute.xlu0 8
        %1770 = vperm.xlu0 %1769, %v879
        %v1771 = vpop.permute.xlu0 %1770
        %1773 = vset.pattern.permute.xlu0 8
        %1774 = vperm.xlu0 %1773, %v880
        %v1775 = vpop.permute.xlu0 %1774
        %1777 = vset.pattern.permute.xlu0 8
        %1778 = vperm.xlu0 %1777, %v881
        %v1779 = vpop.permute.xlu0 %1778
        %1781 = vset.pattern.permute.xlu0 8
        %1782 = vperm.xlu0 %1781, %v882
        %v1783 = vpop.permute.xlu0 %1782
        %1785 = vset.pattern.permute.xlu0 8
        %1786 = vperm.xlu0 %1785, %v883
        %v1787 = vpop.permute.xlu0 %1786
        %1789 = vset.pattern.permute.xlu0 8
        %1790 = vperm.xlu0 %1789, %v884
        %v1791 = vpop.permute.xlu0 %1790
        %v1793 = vmul.f32 %v1771, %v1757
        %v1794 = vmul.f32 %v1771, %v1758
        %v1795 = vmul.f32 %v1775, %v1759
        %v1796 = vmul.f32 %v1775, %v1760
        %v1797 = vmul.f32 %v1779, %v1761
        %v1798 = vmul.f32 %v1779, %v1762
        %v1799 = vmul.f32 %v1783, %v1763
        %v1800 = vmul.f32 %v1783, %v1764
        %v1801 = vmul.f32 %v1787, %v1765
        %v1802 = vmul.f32 %v1787, %v1766
        %v1803 = vmul.f32 %v1791, %v1767
        %v1804 = vmul.f32 %v1791, %v1768
        %v1805 = vadd.f32 %v1700, %v1793
        %v1806 = vadd.f32 %v1701, %v1794
        %v1807 = vadd.f32 %v1702, %v1795
        %v1808 = vadd.f32 %v1703, %v1796
        %v1809 = vadd.f32 %v1704, %v1797
        %v1810 = vadd.f32 %v1705, %v1798
        %v1811 = vadd.f32 %v1706, %v1799
        %v1812 = vadd.f32 %v1707, %v1800
        %v1813 = vadd.f32 %v1708, %v1801
        %v1814 = vadd.f32 %v1709, %v1802
        %v1815 = vadd.f32 %v1710, %v1803
        %v1816 = vadd.f32 %v1711, %v1804
        %v1817 = vmul.f32 %v1805, %v1805
        %v1818 = vmul.f32 %v1806, %v1806
        %v1819 = vmul.f32 %v1807, %v1807
        %v1820 = vmul.f32 %v1808, %v1808
        %v1821 = vadd.f32 %v1817, %v1818
        %1822 = vadd.xlane.f32.xlu0 %v1821
        %v1823 = vpop.xlane.xlu0 %1822
        %v1824 = vadd.f32 %v1819, %v1820
        %1825 = vadd.xlane.f32.xlu0 %v1824
        %v1826 = vpop.xlane.xlu0 %1825
        %v1827 = vmax.f32 %v1823, 1e-24
        %v1828 = vmax.f32 %v1826, 1e-24
        %v1829 = vrsqrt.pop %v1827
        %v1830 = vrsqrt.pop %v1828
        %v1831 = vmul.f32 %v1805, %v1829
        %v1832 = vmul.f32 %v1806, %v1829
        %v1833 = vmul.f32 %v1807, %v1830
        %v1834 = vmul.f32 %v1808, %v1830
        %v1835 = vmul.f32 %v1809, %v1809
        %v1836 = vmul.f32 %v1810, %v1810
        %v1837 = vmul.f32 %v1811, %v1811
        %v1838 = vmul.f32 %v1812, %v1812
        %v1839 = vadd.f32 %v1835, %v1836
        %1840 = vadd.xlane.f32.xlu0 %v1839
        %v1841 = vpop.xlane.xlu0 %1840
        %v1842 = vadd.f32 %v1837, %v1838
        %1843 = vadd.xlane.f32.xlu0 %v1842
        %v1844 = vpop.xlane.xlu0 %1843
        %v1845 = vmax.f32 %v1841, 1e-24
        %v1846 = vmax.f32 %v1844, 1e-24
        %v1847 = vrsqrt.pop %v1845
        %v1848 = vrsqrt.pop %v1846
        %v1849 = vmul.f32 %v1809, %v1847
        %v1850 = vmul.f32 %v1810, %v1847
        %v1851 = vmul.f32 %v1811, %v1848
        %v1852 = vmul.f32 %v1812, %v1848
        %1853 = vmatprep.subr.mxu0 0.0
        %1854 = vmatpush1.xpose.msra.mxu0 0.0
        %1855 = vmatprep.subr.mxu0 0.0
        %1856 = vmatpush1.xpose.msra.mxu0 0.0
        %1857 = vmatprep.subr.mxu0 0.0
        %1858 = vmatpush1.xpose.msra.mxu0 0.0
        %1859 = vmatprep.subr.mxu0 0.0
        %1860 = vmatpush1.xpose.msra.mxu0 0.0
        %1861 = vmatprep.subr.mxu0 0.0
        %1862 = vmatpush1.xpose.msra.mxu0 0.0
        %1863 = vmatprep.subr.mxu0 0.0
        %1864 = vmatpush1.xpose.msra.mxu0 0.0
        %1865 = vmatprep.subr.mxu0 0.0
        %1866 = vmatpush1.xpose.msra.mxu0 0.0
        %1867 = vmatprep.subr.mxu0 0.0
        %1868 = vmatpush1.xpose.msra.mxu0 0.0
        %1869 = vmatprep.subr.mxu0 0.0
        %1870 = vmatpush1.xpose.msra.mxu0 0.0
        %1871 = vmatprep.subr.mxu0 0.0
        %1872 = vmatpush1.xpose.msra.mxu0 0.0
        %1873 = vmatprep.subr.mxu0 0.0
        %1874 = vmatpush1.xpose.msra.mxu0 0.0
        %1875 = vmatprep.subr.mxu0 0.0
        %1876 = vmatpush1.xpose.msra.mxu0 0.0
        %1877 = vmatprep.subr.mxu0 0.0
        %1878 = vmatpush1.xpose.msra.mxu0 0.0
        %1879 = vmatprep.subr.mxu0 0.0
        %1880 = vmatpush1.xpose.msra.mxu0 0.0
        %1881 = vmatprep.subr.mxu0 %v1852
        %1882 = vmatpush1.xpose.msra.mxu0 %v1851
        %1883 = vmatprep.subr.mxu0 %v1850
        %1884 = vmatpush1.xpose.msra.mxu0 %v1849
        %1885 = vmatprep.subr.mxu0 0.0
        %1886 = vmatpush2.xpose.msra.mxu0 0.0
        %1887 = vmatprep.subr.mxu0 0.0
        %1888 = vmatpush2.xpose.msra.mxu0 0.0
        %1889 = vmatprep.subr.mxu0 0.0
        %1890 = vmatpush2.xpose.msra.mxu0 0.0
        %1891 = vmatprep.subr.mxu0 0.0
        %1892 = vmatpush2.xpose.msra.mxu0 0.0
        %1893 = vmatprep.subr.mxu0 0.0
        %1894 = vmatpush2.xpose.msra.mxu0 0.0
        %1895 = vmatprep.subr.mxu0 0.0
        %1896 = vmatpush2.xpose.msra.mxu0 0.0
        %1897 = vmatprep.subr.mxu0 0.0
        %1898 = vmatpush2.xpose.msra.mxu0 0.0
        %1899 = vmatprep.subr.mxu0 0.0
        %1900 = vmatpush2.xpose.msra.mxu0 0.0
        %1901 = vmatprep.subr.mxu0 0.0
        %1902 = vmatpush2.xpose.msra.mxu0 0.0
        %1903 = vmatprep.subr.mxu0 0.0
        %1904 = vmatpush2.xpose.msra.mxu0 0.0
        %1905 = vmatprep.subr.mxu0 0.0
        %1906 = vmatpush2.xpose.msra.mxu0 0.0
        %1907 = vmatprep.subr.mxu0 0.0
        %1908 = vmatpush2.xpose.msra.mxu0 0.0
        %1909 = vmatprep.subr.mxu0 0.0
        %1910 = vmatpush2.xpose.msra.mxu0 0.0
        %1911 = vmatprep.subr.mxu0 0.0
        %1912 = vmatpush2.xpose.msra.mxu0 0.0
        %1913 = vmatprep.subr.mxu0 0.0
        %1914 = vmatpush2.xpose.msra.mxu0 0.0
        %1915 = vmatprep.subr.mxu0 0.0
        %1916 = vmatpush2.xpose.msra.mxu0 0.0
        %1917 = vmatprep.mubr.f32.mxu0 %v1832
        %1918 = vmatmul.mubr.f32.gmra.mxu0 %v1831
        %v1919 = vpop.f32.mrf.mxu0
        %v1920 = vadd.f32 0.0, %v1919
        %v1921 = vpop.f32.mrf.mxu0
        %1922 = vmatprep.mubr.f32.mxu0 %v1834
        %1923 = vmatmul.mubr.f32.gmra.mxu0 %v1833
        %v1924 = vpop.f32.mrf.mxu0
        %v1925 = vadd.f32 0.0, %v1924
        %v1926 = vpop.f32.mrf.mxu0
        %1927 = vdwg.mxu0
        %v1928 = vld [vmem:[%s8] sm:$0xff]
        %v1929 = vld [vmem:[%s8 + $0x8] sm:$0xff]
        %1931 = vset.pattern.permute.xlu0 0
        %1932 = vperm.xlu0 %1931, %v1928
        %v1933 = vpop.permute.xlu0 %1932
        %1936 = vset.pattern.permute.xlu0 0
        %1937 = vperm.xlu0 %1936, %v1929
        %v1938 = vpop.permute.xlu0 %1937
        %v1940 = vmul.f32 %v1920, %v1933
        %v1941 = vmul.f32 %v1925, %v1938
        %v1942 = vld [vmem:[%s9] sm:$0xff]
        %v1943 = vld [vmem:[%s9 + $0x8] sm:$0xff]
        %v1944 = vadd.f32 %v1940, %v1942
        %v1945 = vadd.f32 %v1941, %v1943
        %v1946 = vsel %vm759, %v1944, -inf
        %1947 = vmax.xlane.f32.xlu0 %v1946
        %v1948 = vpop.xlane.xlu0 %1947
        %v1949 = vsel %vm759, %v1945, -inf
        %1950 = vmax.xlane.f32.xlu0 %v1949
        %v1951 = vpop.xlane.xlu0 %1950
        %v1952 = vsub.f32 %v1944, %v1948
        %v1953 = vsub.f32 %v1945, %v1951
        %v1954 = vmul.f32 %v1952, 1.442695
        %v1955 = vpow.pop %v1954
        %v1956 = vmul.f32 %v1953, 1.442695
        %v1957 = vpow.pop %v1956
        %v1958 = vsel %vm759, %v1955, 0.0
        %1959 = vadd.xlane.f32.xlu0 %v1958
        %v1960 = vpop.xlane.xlu0 %1959
        %v1961 = vsel %vm759, %v1957, 0.0
        %1962 = vadd.xlane.f32.xlu0 %v1961
        %v1963 = vpop.xlane.xlu0 %1962
        %v1964 = vrcp.pop %v1960
        %v1965 = vrcp.pop %v1963
        %v1966 = vmul.f32 %v1955, %v1964
        %v1967 = vmul.f32 %v1957, %v1965
        %v1969 = vsel %vm759, %v1966, 0
        %v1972 = vsel %vm759, %v1967, 0
        %1974 = vmatprep.subr.mxu0 0.0
        %1975 = vmatpush1.msra.mxu0 0.0
        %1976 = vmatprep.subr.mxu0 0.0
        %1977 = vmatpush1.msra.mxu0 0.0
        %1978 = vmatprep.subr.mxu0 0.0
        %1979 = vmatpush1.msra.mxu0 0.0
        %1980 = vmatprep.subr.mxu0 0.0
        %1981 = vmatpush1.msra.mxu0 0.0
        %1982 = vmatprep.subr.mxu0 0.0
        %1983 = vmatpush1.msra.mxu0 0.0
        %1984 = vmatprep.subr.mxu0 0.0
        %1985 = vmatpush1.msra.mxu0 0.0
        %1986 = vmatprep.subr.mxu0 0.0
        %1987 = vmatpush1.msra.mxu0 0.0
        %1988 = vmatprep.subr.mxu0 0.0
        %1989 = vmatpush1.msra.mxu0 0.0
        %1990 = vmatprep.subr.mxu0 0.0
        %1991 = vmatpush1.msra.mxu0 0.0
        %1992 = vmatprep.subr.mxu0 0.0
        %1993 = vmatpush1.msra.mxu0 0.0
        %1994 = vmatprep.subr.mxu0 0.0
        %1995 = vmatpush1.msra.mxu0 0.0
        %1996 = vmatprep.subr.mxu0 0.0
        %1997 = vmatpush1.msra.mxu0 0.0
        %1998 = vmatprep.subr.mxu0 0.0
        %1999 = vmatpush1.msra.mxu0 0.0
        %2000 = vmatprep.subr.mxu0 0.0
        %2001 = vmatpush1.msra.mxu0 0.0
        %2002 = vmatprep.subr.mxu0 %v1816
        %2003 = vmatpush1.msra.mxu0 %v1815
        %2004 = vmatprep.subr.mxu0 %v1814
        %2005 = vmatpush1.msra.mxu0 %v1813
        %2006 = vmatprep.subr.mxu0 0.0
        %2007 = vmatpush2.msra.mxu0 0.0
        %2008 = vmatprep.subr.mxu0 0.0
        %2009 = vmatpush2.msra.mxu0 0.0
        %2010 = vmatprep.subr.mxu0 0.0
        %2011 = vmatpush2.msra.mxu0 0.0
        %2012 = vmatprep.subr.mxu0 0.0
        %2013 = vmatpush2.msra.mxu0 0.0
        %2014 = vmatprep.subr.mxu0 0.0
        %2015 = vmatpush2.msra.mxu0 0.0
        %2016 = vmatprep.subr.mxu0 0.0
        %2017 = vmatpush2.msra.mxu0 0.0
        %2018 = vmatprep.subr.mxu0 0.0
        %2019 = vmatpush2.msra.mxu0 0.0
        %2020 = vmatprep.subr.mxu0 0.0
        %2021 = vmatpush2.msra.mxu0 0.0
        %2022 = vmatprep.subr.mxu0 0.0
        %2023 = vmatpush2.msra.mxu0 0.0
        %2024 = vmatprep.subr.mxu0 0.0
        %2025 = vmatpush2.msra.mxu0 0.0
        %2026 = vmatprep.subr.mxu0 0.0
        %2027 = vmatpush2.msra.mxu0 0.0
        %2028 = vmatprep.subr.mxu0 0.0
        %2029 = vmatpush2.msra.mxu0 0.0
        %2030 = vmatprep.subr.mxu0 0.0
        %2031 = vmatpush2.msra.mxu0 0.0
        %2032 = vmatprep.subr.mxu0 0.0
        %2033 = vmatpush2.msra.mxu0 0.0
        %2034 = vmatprep.subr.mxu0 0.0
        %2035 = vmatpush2.msra.mxu0 0.0
        %2036 = vmatprep.subr.mxu0 0.0
        %2037 = vmatpush2.msra.mxu0 0.0
        %2038 = vmatprep.mubr.f32.mxu0 0.0
        %2039 = vmatmul.mubr.f32.gmra.mxu0 %v1969
        %v2040 = vpop.f32.mrf.mxu0
        %v2041 = vadd.f32 0.0, %v2040
        %v2042 = vpop.f32.mrf.mxu0
        %v2043 = vadd.f32 0.0, %v2042
        %2044 = vmatprep.mubr.f32.mxu0 0.0
        %2045 = vmatmul.mubr.f32.gmra.mxu0 %v1972
        %v2046 = vpop.f32.mrf.mxu0
        %v2047 = vadd.f32 0.0, %v2046
        %v2048 = vpop.f32.mrf.mxu0
        %v2049 = vadd.f32 0.0, %v2048
        %2050 = vdwg.mxu0
        %v2051 = vld [vmem:[%s10] sm:$0xff]
        %v2052 = vld [vmem:[%s10 + $0x8] sm:$0xff]
        %v2054 = vsel %vm759, %v2051, 0
        %v2057 = vsel %vm759, %v2052, 0
        %2059 = vmatprep.subr.mxu0 0.0
        %2060 = vmatpush1.msra.mxu0 0.0
        %2061 = vmatprep.subr.mxu0 0.0
        %2062 = vmatpush1.msra.mxu0 0.0
        %2063 = vmatprep.subr.mxu0 0.0
        %2064 = vmatpush1.msra.mxu0 0.0
        %2065 = vmatprep.subr.mxu0 0.0
        %2066 = vmatpush1.msra.mxu0 0.0
        %2067 = vmatprep.subr.mxu0 0.0
        %2068 = vmatpush1.msra.mxu0 0.0
        %2069 = vmatprep.subr.mxu0 0.0
        %2070 = vmatpush1.msra.mxu0 0.0
        %2071 = vmatprep.subr.mxu0 0.0
        %2072 = vmatpush1.msra.mxu0 0.0
        %2073 = vmatprep.subr.mxu0 0.0
        %2074 = vmatpush1.msra.mxu0 0.0
        %2075 = vmatprep.subr.mxu0 0.0
        %2076 = vmatpush1.msra.mxu0 0.0
        %2077 = vmatprep.subr.mxu0 0.0
        %2078 = vmatpush1.msra.mxu0 0.0
        %2079 = vmatprep.subr.mxu0 0.0
        %2080 = vmatpush1.msra.mxu0 0.0
        %2081 = vmatprep.subr.mxu0 0.0
        %2082 = vmatpush1.msra.mxu0 0.0
        %2083 = vmatprep.subr.mxu0 0.0
        %2084 = vmatpush1.msra.mxu0 0.0
        %2085 = vmatprep.subr.mxu0 0.0
        %2086 = vmatpush1.msra.mxu0 0.0
        %2087 = vmatprep.subr.mxu0 %v2049
        %2088 = vmatpush1.msra.mxu0 %v2047
        %2089 = vmatprep.subr.mxu0 %v2043
        %2090 = vmatpush1.msra.mxu0 %v2041
        %2091 = vmatprep.subr.mxu0 0.0
        %2092 = vmatpush2.msra.mxu0 0.0
        %2093 = vmatprep.subr.mxu0 0.0
        %2094 = vmatpush2.msra.mxu0 0.0
        %2095 = vmatprep.subr.mxu0 0.0
        %2096 = vmatpush2.msra.mxu0 0.0
        %2097 = vmatprep.subr.mxu0 0.0
        %2098 = vmatpush2.msra.mxu0 0.0
        %2099 = vmatprep.subr.mxu0 0.0
        %2100 = vmatpush2.msra.mxu0 0.0
        %2101 = vmatprep.subr.mxu0 0.0
        %2102 = vmatpush2.msra.mxu0 0.0
        %2103 = vmatprep.subr.mxu0 0.0
        %2104 = vmatpush2.msra.mxu0 0.0
        %2105 = vmatprep.subr.mxu0 0.0
        %2106 = vmatpush2.msra.mxu0 0.0
        %2107 = vmatprep.subr.mxu0 0.0
        %2108 = vmatpush2.msra.mxu0 0.0
        %2109 = vmatprep.subr.mxu0 0.0
        %2110 = vmatpush2.msra.mxu0 0.0
        %2111 = vmatprep.subr.mxu0 0.0
        %2112 = vmatpush2.msra.mxu0 0.0
        %2113 = vmatprep.subr.mxu0 0.0
        %2114 = vmatpush2.msra.mxu0 0.0
        %2115 = vmatprep.subr.mxu0 0.0
        %2116 = vmatpush2.msra.mxu0 0.0
        %2117 = vmatprep.subr.mxu0 0.0
        %2118 = vmatpush2.msra.mxu0 0.0
        %2119 = vmatprep.subr.mxu0 0.0
        %2120 = vmatpush2.msra.mxu0 0.0
        %2121 = vmatprep.subr.mxu0 0.0
        %2122 = vmatpush2.msra.mxu0 0.0
        %2123 = vmatprep.mubr.f32.mxu0 0.0
        %2124 = vmatmul.mubr.f32.gmra.mxu0 %v2054
        %v2125 = vpop.f32.mrf.mxu0
        %v2126 = vadd.f32 0.0, %v2125
        %v2127 = vpop.f32.mrf.mxu0
        %v2128 = vadd.f32 0.0, %v2127
        %2129 = vmatprep.mubr.f32.mxu0 0.0
        %2130 = vmatmul.mubr.f32.gmra.mxu0 %v2057
        %v2131 = vpop.f32.mrf.mxu0
        %v2132 = vadd.f32 0.0, %v2131
        %v2133 = vpop.f32.mrf.mxu0
        %v2134 = vadd.f32 0.0, %v2133
        %2135 = vdwg.mxu0
        %v2136 = vadd.f32 %v628, %v2126
        %v2137 = vadd.f32 %v629, %v2128
        %v2138 = vadd.f32 %v630, %v2132
        %v2139 = vadd.f32 %v631, %v2134
        %v2140 = vld [vmem:[%s11] sm:$0xff]
        %v2141 = vld [vmem:[%s11 + $0x8] sm:$0xff]
        %2143 = vset.pattern.permute.xlu0 0
        %2144 = vperm.xlu0 %2143, %v2140
        %v2145 = vpop.permute.xlu0 %2144
        %2148 = vset.pattern.permute.xlu0 0
        %2149 = vperm.xlu0 %2148, %v2141
        %v2150 = vpop.permute.xlu0 %2149
        %v2152 = vadd.f32 %v2136, %v2145
        %v2153 = vadd.f32 %v2137, %v2145
        %v2154 = vadd.f32 %v2138, %v2150
        %v2155 = vadd.f32 %v2139, %v2150
        %v2156 = vld [vmem:[%s12] sm:$0xff]
        %v2157 = vld [vmem:[%s12 + $0x8] sm:$0xff]
        %v2158 = vld [vmem:[%s13] sm:$0xff]
        %v2159 = vld [vmem:[%s13 + $0x8] sm:$0xff]
        %v2160 = vadd.f32 %v2152, %v2154
        %v2161 = vrot.slane %v2160, 4
        %v2162 = vadd.f32 %v2160, %v2161
        %v2163 = vrot.slane %v2162, 2
        %v2164 = vadd.f32 %v2162, %v2163
        %v2165 = vrot.slane %v2164, 1
        %v2166 = vadd.f32 %v2164, %v2165
        %v2167 = vadd.f32 %v2153, %v2155
        %v2168 = vrot.slane %v2167, 4
        %v2169 = vadd.f32 %v2167, %v2168
        %v2170 = vrot.slane %v2169, 2
        %v2171 = vadd.f32 %v2169, %v2170
        %v2172 = vrot.slane %v2171, 1
        %v2173 = vadd.f32 %v2171, %v2172
        %v2174 = vmul.f32 %v2166, %v654
        %v2175 = vmul.f32 %v2173, %v654
        %v2176 = vsub.f32 %v2152, %v2174
        %v2177 = vsub.f32 %v2153, %v2175
        %v2178 = vsub.f32 %v2154, %v2174
        %v2179 = vsub.f32 %v2155, %v2175
        %v2180 = vmul.f32 %v2176, %v2176
        %v2181 = vmul.f32 %v2177, %v2177
        %v2182 = vmul.f32 %v2178, %v2178
        %v2183 = vmul.f32 %v2179, %v2179
        %v2184 = vadd.f32 %v2180, %v2182
        %v2185 = vrot.slane %v2184, 4
        %v2186 = vadd.f32 %v2184, %v2185
        %v2187 = vrot.slane %v2186, 2
        %v2188 = vadd.f32 %v2186, %v2187
        %v2189 = vrot.slane %v2188, 1
        %v2190 = vadd.f32 %v2188, %v2189
        %v2191 = vadd.f32 %v2181, %v2183
        %v2192 = vrot.slane %v2191, 4
        %v2193 = vadd.f32 %v2191, %v2192
        %v2194 = vrot.slane %v2193, 2
        %v2195 = vadd.f32 %v2193, %v2194
        %v2196 = vrot.slane %v2195, 1
        %v2197 = vadd.f32 %v2195, %v2196
        %v2198 = vmul.f32 %v2190, %v654
        %v2199 = vmul.f32 %v2197, %v654
        %v2200 = vadd.f32 %v2198, 1e-05
        %v2201 = vadd.f32 %v2199, 1e-05
        %v2202 = vrsqrt.pop %v2200
        %v2203 = vrsqrt.pop %v2201
        %v2204 = vmul.f32 %v2176, %v2202
        %v2205 = vmul.f32 %v2177, %v2203
        %v2206 = vmul.f32 %v2178, %v2202
        %v2207 = vmul.f32 %v2179, %v2203
        %2209 = vset.pattern.permute.xlu0 0
        %2210 = vperm.xlu0 %2209, %v2156
        %v2211 = vpop.permute.xlu0 %2210
        %2214 = vset.pattern.permute.xlu0 0
        %2215 = vperm.xlu0 %2214, %v2157
        %v2216 = vpop.permute.xlu0 %2215
        %v2218 = vmul.f32 %v2204, %v2211
        %v2219 = vmul.f32 %v2205, %v2211
        %v2220 = vmul.f32 %v2206, %v2216
        %v2221 = vmul.f32 %v2207, %v2216
        %2223 = vset.pattern.permute.xlu0 0
        %2224 = vperm.xlu0 %2223, %v2158
        %v2225 = vpop.permute.xlu0 %2224
        %2228 = vset.pattern.permute.xlu0 0
        %2229 = vperm.xlu0 %2228, %v2159
        %v2230 = vpop.permute.xlu0 %2229
        %v2232 = vadd.f32 %v2218, %v2225
        %v2233 = vadd.f32 %v2219, %v2225
        %v2234 = vadd.f32 %v2220, %v2230
        %v2235 = vadd.f32 %v2221, %v2230
        %v2236 = vld [vmem:[%s14] sm:$0xff]
        %v2237 = vld [vmem:[%s14 + $0x8] sm:$0xff]
        %v2238 = vld [vmem:[%s14 + $0x10] sm:$0xff]
        %v2239 = vld [vmem:[%s14 + $0x18] sm:$0xff]
        %v2240 = vld [vmem:[%s14 + $0x20] sm:$0xff]
        %v2241 = vld [vmem:[%s14 + $0x28] sm:$0xff]
        %v2242 = vld [vmem:[%s14 + $0x30] sm:$0xff]
        %v2243 = vld [vmem:[%s14 + $0x38] sm:$0xff]
        %v2244 = vld [vmem:[%s15] sm:$0xff]
        %v2245 = vld [vmem:[%s15 + $0x8] sm:$0xff]
        %v2246 = vld [vmem:[%s15 + $0x10] sm:$0xff]
        %v2247 = vld [vmem:[%s15 + $0x18] sm:$0xff]
        %v2248 = vld [vmem:[%s15 + $0x20] sm:$0xff]
        %v2249 = vld [vmem:[%s15 + $0x28] sm:$0xff]
        %v2250 = vld [vmem:[%s15 + $0x30] sm:$0xff]
        %v2251 = vld [vmem:[%s15 + $0x38] sm:$0xff]
        %2253 = vset.pattern.permute.xlu0 0
        %2254 = vperm.xlu0 %2253, %v2244
        %v2255 = vpop.permute.xlu0 %2254
        %2258 = vset.pattern.permute.xlu0 0
        %2259 = vperm.xlu0 %2258, %v2245
        %v2260 = vpop.permute.xlu0 %2259
        %2263 = vset.pattern.permute.xlu0 0
        %2264 = vperm.xlu0 %2263, %v2246
        %v2265 = vpop.permute.xlu0 %2264
        %2268 = vset.pattern.permute.xlu0 0
        %2269 = vperm.xlu0 %2268, %v2247
        %v2270 = vpop.permute.xlu0 %2269
        %2273 = vset.pattern.permute.xlu0 0
        %2274 = vperm.xlu0 %2273, %v2248
        %v2275 = vpop.permute.xlu0 %2274
        %2278 = vset.pattern.permute.xlu0 0
        %2279 = vperm.xlu0 %2278, %v2249
        %v2280 = vpop.permute.xlu0 %2279
        %2283 = vset.pattern.permute.xlu0 0
        %2284 = vperm.xlu0 %2283, %v2250
        %v2285 = vpop.permute.xlu0 %2284
        %2288 = vset.pattern.permute.xlu0 0
        %2289 = vperm.xlu0 %2288, %v2251
        %v2290 = vpop.permute.xlu0 %2289
        %v2293 = vsel %vm759, %v2236, 0
        %v2296 = vsel %vm759, %v2237, 0
        %v2299 = vsel %vm759, %v2238, 0
        %v2302 = vsel %vm759, %v2239, 0
        %v2305 = vsel %vm759, %v2240, 0
        %v2308 = vsel %vm759, %v2241, 0
        %v2311 = vsel %vm759, %v2242, 0
        %v2314 = vsel %vm759, %v2243, 0
        %2316 = vmatprep.subr.mxu0 0.0
        %2317 = vmatpush1.msra.mxu0 0.0
        %2318 = vmatprep.subr.mxu0 0.0
        %2319 = vmatpush1.msra.mxu0 0.0
        %2320 = vmatprep.subr.mxu0 0.0
        %2321 = vmatpush1.msra.mxu0 0.0
        %2322 = vmatprep.subr.mxu0 0.0
        %2323 = vmatpush1.msra.mxu0 0.0
        %2324 = vmatprep.subr.mxu0 0.0
        %2325 = vmatpush1.msra.mxu0 0.0
        %2326 = vmatprep.subr.mxu0 0.0
        %2327 = vmatpush1.msra.mxu0 0.0
        %2328 = vmatprep.subr.mxu0 0.0
        %2329 = vmatpush1.msra.mxu0 0.0
        %2330 = vmatprep.subr.mxu0 0.0
        %2331 = vmatpush1.msra.mxu0 0.0
        %2332 = vmatprep.subr.mxu0 0.0
        %2333 = vmatpush1.msra.mxu0 0.0
        %2334 = vmatprep.subr.mxu0 0.0
        %2335 = vmatpush1.msra.mxu0 0.0
        %2336 = vmatprep.subr.mxu0 0.0
        %2337 = vmatpush1.msra.mxu0 0.0
        %2338 = vmatprep.subr.mxu0 0.0
        %2339 = vmatpush1.msra.mxu0 0.0
        %2340 = vmatprep.subr.mxu0 0.0
        %2341 = vmatpush1.msra.mxu0 0.0
        %2342 = vmatprep.subr.mxu0 0.0
        %2343 = vmatpush1.msra.mxu0 0.0
        %2344 = vmatprep.subr.mxu0 %v2235
        %2345 = vmatpush1.msra.mxu0 %v2234
        %2346 = vmatprep.subr.mxu0 %v2233
        %2347 = vmatpush1.msra.mxu0 %v2232
        %2348 = vmatprep.subr.mxu0 0.0
        %2349 = vmatpush2.msra.mxu0 0.0
        %2350 = vmatprep.subr.mxu0 0.0
        %2351 = vmatpush2.msra.mxu0 0.0
        %2352 = vmatprep.subr.mxu0 0.0
        %2353 = vmatpush2.msra.mxu0 0.0
        %2354 = vmatprep.subr.mxu0 0.0
        %2355 = vmatpush2.msra.mxu0 0.0
        %2356 = vmatprep.subr.mxu0 0.0
        %2357 = vmatpush2.msra.mxu0 0.0
        %2358 = vmatprep.subr.mxu0 0.0
        %2359 = vmatpush2.msra.mxu0 0.0
        %2360 = vmatprep.subr.mxu0 0.0
        %2361 = vmatpush2.msra.mxu0 0.0
        %2362 = vmatprep.subr.mxu0 0.0
        %2363 = vmatpush2.msra.mxu0 0.0
        %2364 = vmatprep.subr.mxu0 0.0
        %2365 = vmatpush2.msra.mxu0 0.0
        %2366 = vmatprep.subr.mxu0 0.0
        %2367 = vmatpush2.msra.mxu0 0.0
        %2368 = vmatprep.subr.mxu0 0.0
        %2369 = vmatpush2.msra.mxu0 0.0
        %2370 = vmatprep.subr.mxu0 0.0
        %2371 = vmatpush2.msra.mxu0 0.0
        %2372 = vmatprep.subr.mxu0 0.0
        %2373 = vmatpush2.msra.mxu0 0.0
        %2374 = vmatprep.subr.mxu0 0.0
        %2375 = vmatpush2.msra.mxu0 0.0
        %2376 = vmatprep.subr.mxu0 0.0
        %2377 = vmatpush2.msra.mxu0 0.0
        %2378 = vmatprep.subr.mxu0 0.0
        %2379 = vmatpush2.msra.mxu0 0.0
        %2380 = vmatprep.mubr.f32.mxu0 0.0
        %2381 = vmatmul.mubr.f32.gmra.mxu0 %v2293
        %v2382 = vpop.f32.mrf.mxu0
        %v2383 = vadd.f32 %v2255, %v2382
        %v2384 = vpop.f32.mrf.mxu0
        %v2385 = vadd.f32 %v2255, %v2384
        %2386 = vmatprep.mubr.f32.mxu0 0.0
        %2387 = vmatmul.mubr.f32.gmra.mxu0 %v2296
        %v2388 = vpop.f32.mrf.mxu0
        %v2389 = vadd.f32 %v2260, %v2388
        %v2390 = vpop.f32.mrf.mxu0
        %v2391 = vadd.f32 %v2260, %v2390
        %2392 = vmatprep.mubr.f32.mxu0 0.0
        %2393 = vmatmul.mubr.f32.gmra.mxu0 %v2299
        %v2394 = vpop.f32.mrf.mxu0
        %v2395 = vadd.f32 %v2265, %v2394
        %v2396 = vpop.f32.mrf.mxu0
        %v2397 = vadd.f32 %v2265, %v2396
        %2398 = vmatprep.mubr.f32.mxu0 0.0
        %2399 = vmatmul.mubr.f32.gmra.mxu0 %v2302
        %v2400 = vpop.f32.mrf.mxu0
        %v2401 = vadd.f32 %v2270, %v2400
        %v2402 = vpop.f32.mrf.mxu0
        %v2403 = vadd.f32 %v2270, %v2402
        %2404 = vmatprep.mubr.f32.mxu0 0.0
        %2405 = vmatmul.mubr.f32.gmra.mxu0 %v2305
        %v2406 = vpop.f32.mrf.mxu0
        %v2407 = vadd.f32 %v2275, %v2406
        %v2408 = vpop.f32.mrf.mxu0
        %v2409 = vadd.f32 %v2275, %v2408
        %2410 = vmatprep.mubr.f32.mxu0 0.0
        %2411 = vmatmul.mubr.f32.gmra.mxu0 %v2308
        %v2412 = vpop.f32.mrf.mxu0
        %v2413 = vadd.f32 %v2280, %v2412
        %v2414 = vpop.f32.mrf.mxu0
        %v2415 = vadd.f32 %v2280, %v2414
        %2416 = vmatprep.mubr.f32.mxu0 0.0
        %2417 = vmatmul.mubr.f32.gmra.mxu0 %v2311
        %v2418 = vpop.f32.mrf.mxu0
        %v2419 = vadd.f32 %v2285, %v2418
        %v2420 = vpop.f32.mrf.mxu0
        %v2421 = vadd.f32 %v2285, %v2420
        %2422 = vmatprep.mubr.f32.mxu0 0.0
        %2423 = vmatmul.mubr.f32.gmra.mxu0 %v2314
        %v2424 = vpop.f32.mrf.mxu0
        %v2425 = vadd.f32 %v2290, %v2424
        %v2426 = vpop.f32.mrf.mxu0
        %v2427 = vadd.f32 %v2290, %v2426
        %2428 = vdwg.mxu0
        %v2429 = vld [vmem:[%s16] sm:$0xff]
        %v2430 = vld [vmem:[%s16 + $0x8] sm:$0xff]
        %v2431 = vld [vmem:[%s16 + $0x10] sm:$0xff]
        %v2432 = vld [vmem:[%s16 + $0x18] sm:$0xff]
        %v2433 = vld [vmem:[%s16 + $0x20] sm:$0xff]
        %v2434 = vld [vmem:[%s16 + $0x28] sm:$0xff]
        %v2435 = vld [vmem:[%s16 + $0x30] sm:$0xff]
        %v2436 = vld [vmem:[%s16 + $0x38] sm:$0xff]
        %v2437 = vld [vmem:[%s17] sm:$0xff]
        %v2438 = vld [vmem:[%s17 + $0x8] sm:$0xff]
        %v2439 = vld [vmem:[%s17 + $0x10] sm:$0xff]
        %v2440 = vld [vmem:[%s17 + $0x18] sm:$0xff]
        %v2441 = vld [vmem:[%s17 + $0x20] sm:$0xff]
        %v2442 = vld [vmem:[%s17 + $0x28] sm:$0xff]
        %v2443 = vld [vmem:[%s17 + $0x30] sm:$0xff]
        %v2444 = vld [vmem:[%s17 + $0x38] sm:$0xff]
        %2446 = vset.pattern.permute.xlu0 4
        %2447 = vperm.xlu0 %2446, %v2429
        %v2448 = vpop.permute.xlu0 %2447
        %2451 = vset.pattern.permute.xlu0 4
        %2452 = vperm.xlu0 %2451, %v2430
        %v2453 = vpop.permute.xlu0 %2452
        %2456 = vset.pattern.permute.xlu0 4
        %2457 = vperm.xlu0 %2456, %v2431
        %v2458 = vpop.permute.xlu0 %2457
        %2461 = vset.pattern.permute.xlu0 4
        %2462 = vperm.xlu0 %2461, %v2432
        %v2463 = vpop.permute.xlu0 %2462
        %2466 = vset.pattern.permute.xlu0 4
        %2467 = vperm.xlu0 %2466, %v2433
        %v2468 = vpop.permute.xlu0 %2467
        %2471 = vset.pattern.permute.xlu0 4
        %2472 = vperm.xlu0 %2471, %v2434
        %v2473 = vpop.permute.xlu0 %2472
        %2476 = vset.pattern.permute.xlu0 4
        %2477 = vperm.xlu0 %2476, %v2435
        %v2478 = vpop.permute.xlu0 %2477
        %2481 = vset.pattern.permute.xlu0 4
        %2482 = vperm.xlu0 %2481, %v2436
        %v2483 = vpop.permute.xlu0 %2482
        %v2485 = vmul.f32 %v2448, %v2383
        %v2486 = vmul.f32 %v2448, %v2385
        %v2487 = vmul.f32 %v2453, %v2389
        %v2488 = vmul.f32 %v2453, %v2391
        %v2489 = vmul.f32 %v2458, %v2395
        %v2490 = vmul.f32 %v2458, %v2397
        %v2491 = vmul.f32 %v2463, %v2401
        %v2492 = vmul.f32 %v2463, %v2403
        %v2493 = vmul.f32 %v2468, %v2407
        %v2494 = vmul.f32 %v2468, %v2409
        %v2495 = vmul.f32 %v2473, %v2413
        %v2496 = vmul.f32 %v2473, %v2415
        %v2497 = vmul.f32 %v2478, %v2419
        %v2498 = vmul.f32 %v2478, %v2421
        %v2499 = vmul.f32 %v2483, %v2425
        %v2500 = vmul.f32 %v2483, %v2427
        %2502 = vset.pattern.permute.xlu0 0
        %2503 = vperm.xlu0 %2502, %v2437
        %v2504 = vpop.permute.xlu0 %2503
        %2507 = vset.pattern.permute.xlu0 0
        %2508 = vperm.xlu0 %2507, %v2438
        %v2509 = vpop.permute.xlu0 %2508
        %2512 = vset.pattern.permute.xlu0 0
        %2513 = vperm.xlu0 %2512, %v2439
        %v2514 = vpop.permute.xlu0 %2513
        %2517 = vset.pattern.permute.xlu0 0
        %2518 = vperm.xlu0 %2517, %v2440
        %v2519 = vpop.permute.xlu0 %2518
        %2522 = vset.pattern.permute.xlu0 0
        %2523 = vperm.xlu0 %2522, %v2441
        %v2524 = vpop.permute.xlu0 %2523
        %2527 = vset.pattern.permute.xlu0 0
        %2528 = vperm.xlu0 %2527, %v2442
        %v2529 = vpop.permute.xlu0 %2528
        %2532 = vset.pattern.permute.xlu0 0
        %2533 = vperm.xlu0 %2532, %v2443
        %v2534 = vpop.permute.xlu0 %2533
        %2537 = vset.pattern.permute.xlu0 0
        %2538 = vperm.xlu0 %2537, %v2444
        %v2539 = vpop.permute.xlu0 %2538
        %v2541 = vadd.f32 %v2485, %v2504
        %v2542 = vadd.f32 %v2486, %v2504
        %v2543 = vadd.f32 %v2487, %v2509
        %v2544 = vadd.f32 %v2488, %v2509
        %v2545 = vadd.f32 %v2489, %v2514
        %v2546 = vadd.f32 %v2490, %v2514
        %v2547 = vadd.f32 %v2491, %v2519
        %v2548 = vadd.f32 %v2492, %v2519
        %v2549 = vadd.f32 %v2493, %v2524
        %v2550 = vadd.f32 %v2494, %v2524
        %v2551 = vadd.f32 %v2495, %v2529
        %v2552 = vadd.f32 %v2496, %v2529
        %v2553 = vadd.f32 %v2497, %v2534
        %v2554 = vadd.f32 %v2498, %v2534
        %v2555 = vadd.f32 %v2499, %v2539
        %v2556 = vadd.f32 %v2500, %v2539
        %2557 = vrot.lane.b32.xlu0 %v2383, 17
        %v2558 = vpop.permute.xlu0 %2557
        %2559 = vrot.lane.b32.xlu0 %v2389, 17
        %v2560 = vpop.permute.xlu0 %2559
        %2561 = vrot.lane.b32.xlu0 %v2395, 17
        %v2562 = vpop.permute.xlu0 %2561
        %2563 = vrot.lane.b32.xlu0 %v2401, 17
        %v2564 = vpop.permute.xlu0 %2563
        %2565 = vrot.lane.b32.xlu0 %v2407, 17
        %v2566 = vpop.permute.xlu0 %2565
        %2567 = vrot.lane.b32.xlu0 %v2413, 17
        %v2568 = vpop.permute.xlu0 %2567
        %2569 = vrot.lane.b32.xlu0 %v2419, 17
        %v2570 = vpop.permute.xlu0 %2569
        %2571 = vrot.lane.b32.xlu0 %v2425, 17
        %v2572 = vpop.permute.xlu0 %2571
        %2573 = vrot.lane.b32.xlu0 %v2385, 17
        %v2574 = vpop.permute.xlu0 %2573
        %2575 = vrot.lane.b32.xlu0 %v2391, 17
        %v2576 = vpop.permute.xlu0 %2575
        %2577 = vrot.lane.b32.xlu0 %v2397, 17
        %v2578 = vpop.permute.xlu0 %2577
        %2579 = vrot.lane.b32.xlu0 %v2403, 17
        %v2580 = vpop.permute.xlu0 %2579
        %2581 = vrot.lane.b32.xlu0 %v2409, 17
        %v2582 = vpop.permute.xlu0 %2581
        %2583 = vrot.lane.b32.xlu0 %v2415, 17
        %v2584 = vpop.permute.xlu0 %2583
        %2585 = vrot.lane.b32.xlu0 %v2421, 17
        %v2586 = vpop.permute.xlu0 %2585
        %2587 = vrot.lane.b32.xlu0 %v2427, 17
        %v2588 = vpop.permute.xlu0 %2587
        %v2589 = vsel %vm1001, %v2558, %v2574
        %v2590 = vsel %vm1001, %v2560, %v2576
        %v2591 = vsel %vm1001, %v2562, %v2578
        %v2592 = vsel %vm1001, %v2564, %v2580
        %v2593 = vsel %vm1001, %v2566, %v2582
        %v2594 = vsel %vm1001, %v2568, %v2584
        %v2595 = vsel %vm1001, %v2570, %v2586
        %v2596 = vsel %vm1001, %v2572, %v2588
        %v2597 = vsel %vm1001, %v2574, %v2558
        %v2598 = vsel %vm1001, %v2576, %v2560
        %v2599 = vsel %vm1001, %v2578, %v2562
        %v2600 = vsel %vm1001, %v2580, %v2564
        %v2601 = vsel %vm1001, %v2582, %v2566
        %v2602 = vsel %vm1001, %v2584, %v2568
        %v2603 = vsel %vm1001, %v2586, %v2570
        %v2604 = vsel %vm1001, %v2588, %v2572
        %v2605 = vmul.f32 %v2597, %v1017
        %v2606 = vmul.f32 %v2589, %v1021
        %v2607 = vmul.f32 %v2598, %v1017
        %v2608 = vmul.f32 %v2590, %v1021
        %v2609 = vmul.f32 %v2599, %v1017
        %v2610 = vmul.f32 %v2591, %v1021
        %v2611 = vmul.f32 %v2600, %v1017
        %v2612 = vmul.f32 %v2592, %v1021
        %v2613 = vmul.f32 %v2601, %v1017
        %v2614 = vmul.f32 %v2593, %v1021
        %v2615 = vmul.f32 %v2602, %v1017
        %v2616 = vmul.f32 %v2594, %v1021
        %v2617 = vmul.f32 %v2603, %v1017
        %v2618 = vmul.f32 %v2595, %v1021
        %v2619 = vmul.f32 %v2604, %v1017
        %v2620 = vmul.f32 %v2596, %v1021
        %2621 = vset.pattern.permute.xlu0 0
        %2622 = vperm.xlu0 %2621, %v2429
        %v2623 = vpop.permute.xlu0 %2622
        %2625 = vset.pattern.permute.xlu0 0
        %2626 = vperm.xlu0 %2625, %v2430
        %v2627 = vpop.permute.xlu0 %2626
        %2629 = vset.pattern.permute.xlu0 0
        %2630 = vperm.xlu0 %2629, %v2431
        %v2631 = vpop.permute.xlu0 %2630
        %2633 = vset.pattern.permute.xlu0 0
        %2634 = vperm.xlu0 %2633, %v2432
        %v2635 = vpop.permute.xlu0 %2634
        %2637 = vset.pattern.permute.xlu0 0
        %2638 = vperm.xlu0 %2637, %v2433
        %v2639 = vpop.permute.xlu0 %2638
        %2641 = vset.pattern.permute.xlu0 0
        %2642 = vperm.xlu0 %2641, %v2434
        %v2643 = vpop.permute.xlu0 %2642
        %2645 = vset.pattern.permute.xlu0 0
        %2646 = vperm.xlu0 %2645, %v2435
        %v2647 = vpop.permute.xlu0 %2646
        %2649 = vset.pattern.permute.xlu0 0
        %2650 = vperm.xlu0 %2649, %v2436
        %v2651 = vpop.permute.xlu0 %2650
        %v2653 = vmul.f32 %v2623, %v2605
        %v2654 = vmul.f32 %v2623, %v2606
        %v2655 = vmul.f32 %v2627, %v2607
        %v2656 = vmul.f32 %v2627, %v2608
        %v2657 = vmul.f32 %v2631, %v2609
        %v2658 = vmul.f32 %v2631, %v2610
        %v2659 = vmul.f32 %v2635, %v2611
        %v2660 = vmul.f32 %v2635, %v2612
        %v2661 = vmul.f32 %v2639, %v2613
        %v2662 = vmul.f32 %v2639, %v2614
        %v2663 = vmul.f32 %v2643, %v2615
        %v2664 = vmul.f32 %v2643, %v2616
        %v2665 = vmul.f32 %v2647, %v2617
        %v2666 = vmul.f32 %v2647, %v2618
        %v2667 = vmul.f32 %v2651, %v2619
        %v2668 = vmul.f32 %v2651, %v2620
        %v2669 = vadd.f32 %v2541, %v2653
        %v2670 = vadd.f32 %v2542, %v2654
        %v2671 = vadd.f32 %v2543, %v2655
        %v2672 = vadd.f32 %v2544, %v2656
        %v2673 = vadd.f32 %v2545, %v2657
        %v2674 = vadd.f32 %v2546, %v2658
        %v2675 = vadd.f32 %v2547, %v2659
        %v2676 = vadd.f32 %v2548, %v2660
        %v2677 = vadd.f32 %v2549, %v2661
        %v2678 = vadd.f32 %v2550, %v2662
        %v2679 = vadd.f32 %v2551, %v2663
        %v2680 = vadd.f32 %v2552, %v2664
        %v2681 = vadd.f32 %v2553, %v2665
        %v2682 = vadd.f32 %v2554, %v2666
        %v2683 = vadd.f32 %v2555, %v2667
        %v2684 = vadd.f32 %v2556, %v2668
        %2685 = vrot.lane.b32.xlu0 %v2383, 16
        %v2686 = vpop.permute.xlu0 %2685
        %2687 = vrot.lane.b32.xlu0 %v2389, 16
        %v2688 = vpop.permute.xlu0 %2687
        %2689 = vrot.lane.b32.xlu0 %v2395, 16
        %v2690 = vpop.permute.xlu0 %2689
        %2691 = vrot.lane.b32.xlu0 %v2401, 16
        %v2692 = vpop.permute.xlu0 %2691
        %2693 = vrot.lane.b32.xlu0 %v2407, 16
        %v2694 = vpop.permute.xlu0 %2693
        %2695 = vrot.lane.b32.xlu0 %v2413, 16
        %v2696 = vpop.permute.xlu0 %2695
        %2697 = vrot.lane.b32.xlu0 %v2419, 16
        %v2698 = vpop.permute.xlu0 %2697
        %2699 = vrot.lane.b32.xlu0 %v2425, 16
        %v2700 = vpop.permute.xlu0 %2699
        %2701 = vrot.lane.b32.xlu0 %v2385, 16
        %v2702 = vpop.permute.xlu0 %2701
        %2703 = vrot.lane.b32.xlu0 %v2391, 16
        %v2704 = vpop.permute.xlu0 %2703
        %2705 = vrot.lane.b32.xlu0 %v2397, 16
        %v2706 = vpop.permute.xlu0 %2705
        %2707 = vrot.lane.b32.xlu0 %v2403, 16
        %v2708 = vpop.permute.xlu0 %2707
        %2709 = vrot.lane.b32.xlu0 %v2409, 16
        %v2710 = vpop.permute.xlu0 %2709
        %2711 = vrot.lane.b32.xlu0 %v2415, 16
        %v2712 = vpop.permute.xlu0 %2711
        %2713 = vrot.lane.b32.xlu0 %v2421, 16
        %v2714 = vpop.permute.xlu0 %2713
        %2715 = vrot.lane.b32.xlu0 %v2427, 16
        %v2716 = vpop.permute.xlu0 %2715
        %v2717 = vsel %vm1106, %v2686, %v2702
        %v2718 = vsel %vm1106, %v2688, %v2704
        %v2719 = vsel %vm1106, %v2690, %v2706
        %v2720 = vsel %vm1106, %v2692, %v2708
        %v2721 = vsel %vm1106, %v2694, %v2710
        %v2722 = vsel %vm1106, %v2696, %v2712
        %v2723 = vsel %vm1106, %v2698, %v2714
        %v2724 = vsel %vm1106, %v2700, %v2716
        %v2725 = vsel %vm1106, %v2702, %v2686
        %v2726 = vsel %vm1106, %v2704, %v2688
        %v2727 = vsel %vm1106, %v2706, %v2690
        %v2728 = vsel %vm1106, %v2708, %v2692
        %v2729 = vsel %vm1106, %v2710, %v2694
        %v2730 = vsel %vm1106, %v2712, %v2696
        %v2731 = vsel %vm1106, %v2714, %v2698
        %v2732 = vsel %vm1106, %v2716, %v2700
        %v2733 = vmul.f32 %v2725, %v1122
        %v2734 = vmul.f32 %v2717, %v1126
        %v2735 = vmul.f32 %v2726, %v1122
        %v2736 = vmul.f32 %v2718, %v1126
        %v2737 = vmul.f32 %v2727, %v1122
        %v2738 = vmul.f32 %v2719, %v1126
        %v2739 = vmul.f32 %v2728, %v1122
        %v2740 = vmul.f32 %v2720, %v1126
        %v2741 = vmul.f32 %v2729, %v1122
        %v2742 = vmul.f32 %v2721, %v1126
        %v2743 = vmul.f32 %v2730, %v1122
        %v2744 = vmul.f32 %v2722, %v1126
        %v2745 = vmul.f32 %v2731, %v1122
        %v2746 = vmul.f32 %v2723, %v1126
        %v2747 = vmul.f32 %v2732, %v1122
        %v2748 = vmul.f32 %v2724, %v1126
        %2749 = vset.pattern.permute.xlu0 1
        %2750 = vperm.xlu0 %2749, %v2429
        %v2751 = vpop.permute.xlu0 %2750
        %2753 = vset.pattern.permute.xlu0 1
        %2754 = vperm.xlu0 %2753, %v2430
        %v2755 = vpop.permute.xlu0 %2754
        %2757 = vset.pattern.permute.xlu0 1
        %2758 = vperm.xlu0 %2757, %v2431
        %v2759 = vpop.permute.xlu0 %2758
        %2761 = vset.pattern.permute.xlu0 1
        %2762 = vperm.xlu0 %2761, %v2432
        %v2763 = vpop.permute.xlu0 %2762
        %2765 = vset.pattern.permute.xlu0 1
        %2766 = vperm.xlu0 %2765, %v2433
        %v2767 = vpop.permute.xlu0 %2766
        %2769 = vset.pattern.permute.xlu0 1
        %2770 = vperm.xlu0 %2769, %v2434
        %v2771 = vpop.permute.xlu0 %2770
        %2773 = vset.pattern.permute.xlu0 1
        %2774 = vperm.xlu0 %2773, %v2435
        %v2775 = vpop.permute.xlu0 %2774
        %2777 = vset.pattern.permute.xlu0 1
        %2778 = vperm.xlu0 %2777, %v2436
        %v2779 = vpop.permute.xlu0 %2778
        %v2781 = vmul.f32 %v2751, %v2733
        %v2782 = vmul.f32 %v2751, %v2734
        %v2783 = vmul.f32 %v2755, %v2735
        %v2784 = vmul.f32 %v2755, %v2736
        %v2785 = vmul.f32 %v2759, %v2737
        %v2786 = vmul.f32 %v2759, %v2738
        %v2787 = vmul.f32 %v2763, %v2739
        %v2788 = vmul.f32 %v2763, %v2740
        %v2789 = vmul.f32 %v2767, %v2741
        %v2790 = vmul.f32 %v2767, %v2742
        %v2791 = vmul.f32 %v2771, %v2743
        %v2792 = vmul.f32 %v2771, %v2744
        %v2793 = vmul.f32 %v2775, %v2745
        %v2794 = vmul.f32 %v2775, %v2746
        %v2795 = vmul.f32 %v2779, %v2747
        %v2796 = vmul.f32 %v2779, %v2748
        %v2797 = vadd.f32 %v2669, %v2781
        %v2798 = vadd.f32 %v2670, %v2782
        %v2799 = vadd.f32 %v2671, %v2783
        %v2800 = vadd.f32 %v2672, %v2784
        %v2801 = vadd.f32 %v2673, %v2785
        %v2802 = vadd.f32 %v2674, %v2786
        %v2803 = vadd.f32 %v2675, %v2787
        %v2804 = vadd.f32 %v2676, %v2788
        %v2805 = vadd.f32 %v2677, %v2789
        %v2806 = vadd.f32 %v2678, %v2790
        %v2807 = vadd.f32 %v2679, %v2791
        %v2808 = vadd.f32 %v2680, %v2792
        %v2809 = vadd.f32 %v2681, %v2793
        %v2810 = vadd.f32 %v2682, %v2794
        %v2811 = vadd.f32 %v2683, %v2795
        %v2812 = vadd.f32 %v2684, %v2796
        %2813 = vrot.lane.b32.xlu0 %v2383, 15
        %v2814 = vpop.permute.xlu0 %2813
        %2815 = vrot.lane.b32.xlu0 %v2389, 15
        %v2816 = vpop.permute.xlu0 %2815
        %2817 = vrot.lane.b32.xlu0 %v2395, 15
        %v2818 = vpop.permute.xlu0 %2817
        %2819 = vrot.lane.b32.xlu0 %v2401, 15
        %v2820 = vpop.permute.xlu0 %2819
        %2821 = vrot.lane.b32.xlu0 %v2407, 15
        %v2822 = vpop.permute.xlu0 %2821
        %2823 = vrot.lane.b32.xlu0 %v2413, 15
        %v2824 = vpop.permute.xlu0 %2823
        %2825 = vrot.lane.b32.xlu0 %v2419, 15
        %v2826 = vpop.permute.xlu0 %2825
        %2827 = vrot.lane.b32.xlu0 %v2425, 15
        %v2828 = vpop.permute.xlu0 %2827
        %2829 = vrot.lane.b32.xlu0 %v2385, 15
        %v2830 = vpop.permute.xlu0 %2829
        %2831 = vrot.lane.b32.xlu0 %v2391, 15
        %v2832 = vpop.permute.xlu0 %2831
        %2833 = vrot.lane.b32.xlu0 %v2397, 15
        %v2834 = vpop.permute.xlu0 %2833
        %2835 = vrot.lane.b32.xlu0 %v2403, 15
        %v2836 = vpop.permute.xlu0 %2835
        %2837 = vrot.lane.b32.xlu0 %v2409, 15
        %v2838 = vpop.permute.xlu0 %2837
        %2839 = vrot.lane.b32.xlu0 %v2415, 15
        %v2840 = vpop.permute.xlu0 %2839
        %2841 = vrot.lane.b32.xlu0 %v2421, 15
        %v2842 = vpop.permute.xlu0 %2841
        %2843 = vrot.lane.b32.xlu0 %v2427, 15
        %v2844 = vpop.permute.xlu0 %2843
        %v2845 = vsel %vm1211, %v2814, %v2830
        %v2846 = vsel %vm1211, %v2816, %v2832
        %v2847 = vsel %vm1211, %v2818, %v2834
        %v2848 = vsel %vm1211, %v2820, %v2836
        %v2849 = vsel %vm1211, %v2822, %v2838
        %v2850 = vsel %vm1211, %v2824, %v2840
        %v2851 = vsel %vm1211, %v2826, %v2842
        %v2852 = vsel %vm1211, %v2828, %v2844
        %v2853 = vsel %vm1211, %v2830, %v2814
        %v2854 = vsel %vm1211, %v2832, %v2816
        %v2855 = vsel %vm1211, %v2834, %v2818
        %v2856 = vsel %vm1211, %v2836, %v2820
        %v2857 = vsel %vm1211, %v2838, %v2822
        %v2858 = vsel %vm1211, %v2840, %v2824
        %v2859 = vsel %vm1211, %v2842, %v2826
        %v2860 = vsel %vm1211, %v2844, %v2828
        %v2861 = vmul.f32 %v2853, %v1227
        %v2862 = vmul.f32 %v2845, %v1231
        %v2863 = vmul.f32 %v2854, %v1227
        %v2864 = vmul.f32 %v2846, %v1231
        %v2865 = vmul.f32 %v2855, %v1227
        %v2866 = vmul.f32 %v2847, %v1231
        %v2867 = vmul.f32 %v2856, %v1227
        %v2868 = vmul.f32 %v2848, %v1231
        %v2869 = vmul.f32 %v2857, %v1227
        %v2870 = vmul.f32 %v2849, %v1231
        %v2871 = vmul.f32 %v2858, %v1227
        %v2872 = vmul.f32 %v2850, %v1231
        %v2873 = vmul.f32 %v2859, %v1227
        %v2874 = vmul.f32 %v2851, %v1231
        %v2875 = vmul.f32 %v2860, %v1227
        %v2876 = vmul.f32 %v2852, %v1231
        %2877 = vset.pattern.permute.xlu0 2
        %2878 = vperm.xlu0 %2877, %v2429
        %v2879 = vpop.permute.xlu0 %2878
        %2881 = vset.pattern.permute.xlu0 2
        %2882 = vperm.xlu0 %2881, %v2430
        %v2883 = vpop.permute.xlu0 %2882
        %2885 = vset.pattern.permute.xlu0 2
        %2886 = vperm.xlu0 %2885, %v2431
        %v2887 = vpop.permute.xlu0 %2886
        %2889 = vset.pattern.permute.xlu0 2
        %2890 = vperm.xlu0 %2889, %v2432
        %v2891 = vpop.permute.xlu0 %2890
        %2893 = vset.pattern.permute.xlu0 2
        %2894 = vperm.xlu0 %2893, %v2433
        %v2895 = vpop.permute.xlu0 %2894
        %2897 = vset.pattern.permute.xlu0 2
        %2898 = vperm.xlu0 %2897, %v2434
        %v2899 = vpop.permute.xlu0 %2898
        %2901 = vset.pattern.permute.xlu0 2
        %2902 = vperm.xlu0 %2901, %v2435
        %v2903 = vpop.permute.xlu0 %2902
        %2905 = vset.pattern.permute.xlu0 2
        %2906 = vperm.xlu0 %2905, %v2436
        %v2907 = vpop.permute.xlu0 %2906
        %v2909 = vmul.f32 %v2879, %v2861
        %v2910 = vmul.f32 %v2879, %v2862
        %v2911 = vmul.f32 %v2883, %v2863
        %v2912 = vmul.f32 %v2883, %v2864
        %v2913 = vmul.f32 %v2887, %v2865
        %v2914 = vmul.f32 %v2887, %v2866
        %v2915 = vmul.f32 %v2891, %v2867
        %v2916 = vmul.f32 %v2891, %v2868
        %v2917 = vmul.f32 %v2895, %v2869
        %v2918 = vmul.f32 %v2895, %v2870
        %v2919 = vmul.f32 %v2899, %v2871
        %v2920 = vmul.f32 %v2899, %v2872
        %v2921 = vmul.f32 %v2903, %v2873
        %v2922 = vmul.f32 %v2903, %v2874
        %v2923 = vmul.f32 %v2907, %v2875
        %v2924 = vmul.f32 %v2907, %v2876
        %v2925 = vadd.f32 %v2797, %v2909
        %v2926 = vadd.f32 %v2798, %v2910
        %v2927 = vadd.f32 %v2799, %v2911
        %v2928 = vadd.f32 %v2800, %v2912
        %v2929 = vadd.f32 %v2801, %v2913
        %v2930 = vadd.f32 %v2802, %v2914
        %v2931 = vadd.f32 %v2803, %v2915
        %v2932 = vadd.f32 %v2804, %v2916
        %v2933 = vadd.f32 %v2805, %v2917
        %v2934 = vadd.f32 %v2806, %v2918
        %v2935 = vadd.f32 %v2807, %v2919
        %v2936 = vadd.f32 %v2808, %v2920
        %v2937 = vadd.f32 %v2809, %v2921
        %v2938 = vadd.f32 %v2810, %v2922
        %v2939 = vadd.f32 %v2811, %v2923
        %v2940 = vadd.f32 %v2812, %v2924
        %2941 = vrot.lane.b32.xlu0 %v2383, 1
        %v2942 = vpop.permute.xlu0 %2941
        %2943 = vrot.lane.b32.xlu0 %v2389, 1
        %v2944 = vpop.permute.xlu0 %2943
        %2945 = vrot.lane.b32.xlu0 %v2395, 1
        %v2946 = vpop.permute.xlu0 %2945
        %2947 = vrot.lane.b32.xlu0 %v2401, 1
        %v2948 = vpop.permute.xlu0 %2947
        %2949 = vrot.lane.b32.xlu0 %v2407, 1
        %v2950 = vpop.permute.xlu0 %2949
        %2951 = vrot.lane.b32.xlu0 %v2413, 1
        %v2952 = vpop.permute.xlu0 %2951
        %2953 = vrot.lane.b32.xlu0 %v2419, 1
        %v2954 = vpop.permute.xlu0 %2953
        %2955 = vrot.lane.b32.xlu0 %v2425, 1
        %v2956 = vpop.permute.xlu0 %2955
        %2957 = vrot.lane.b32.xlu0 %v2385, 1
        %v2958 = vpop.permute.xlu0 %2957
        %2959 = vrot.lane.b32.xlu0 %v2391, 1
        %v2960 = vpop.permute.xlu0 %2959
        %2961 = vrot.lane.b32.xlu0 %v2397, 1
        %v2962 = vpop.permute.xlu0 %2961
        %2963 = vrot.lane.b32.xlu0 %v2403, 1
        %v2964 = vpop.permute.xlu0 %2963
        %2965 = vrot.lane.b32.xlu0 %v2409, 1
        %v2966 = vpop.permute.xlu0 %2965
        %2967 = vrot.lane.b32.xlu0 %v2415, 1
        %v2968 = vpop.permute.xlu0 %2967
        %2969 = vrot.lane.b32.xlu0 %v2421, 1
        %v2970 = vpop.permute.xlu0 %2969
        %2971 = vrot.lane.b32.xlu0 %v2427, 1
        %v2972 = vpop.permute.xlu0 %2971
        %v2973 = vsel %vm1316, %v2942, %v2958
        %v2974 = vsel %vm1316, %v2944, %v2960
        %v2975 = vsel %vm1316, %v2946, %v2962
        %v2976 = vsel %vm1316, %v2948, %v2964
        %v2977 = vsel %vm1316, %v2950, %v2966
        %v2978 = vsel %vm1316, %v2952, %v2968
        %v2979 = vsel %vm1316, %v2954, %v2970
        %v2980 = vsel %vm1316, %v2956, %v2972
        %v2981 = vsel %vm1316, %v2958, %v2942
        %v2982 = vsel %vm1316, %v2960, %v2944
        %v2983 = vsel %vm1316, %v2962, %v2946
        %v2984 = vsel %vm1316, %v2964, %v2948
        %v2985 = vsel %vm1316, %v2966, %v2950
        %v2986 = vsel %vm1316, %v2968, %v2952
        %v2987 = vsel %vm1316, %v2970, %v2954
        %v2988 = vsel %vm1316, %v2972, %v2956
        %v2989 = vmul.f32 %v2981, %v1332
        %v2990 = vmul.f32 %v2973, %v1336
        %v2991 = vmul.f32 %v2982, %v1332
        %v2992 = vmul.f32 %v2974, %v1336
        %v2993 = vmul.f32 %v2983, %v1332
        %v2994 = vmul.f32 %v2975, %v1336
        %v2995 = vmul.f32 %v2984, %v1332
        %v2996 = vmul.f32 %v2976, %v1336
        %v2997 = vmul.f32 %v2985, %v1332
        %v2998 = vmul.f32 %v2977, %v1336
        %v2999 = vmul.f32 %v2986, %v1332
        %v3000 = vmul.f32 %v2978, %v1336
        %v3001 = vmul.f32 %v2987, %v1332
        %v3002 = vmul.f32 %v2979, %v1336
        %v3003 = vmul.f32 %v2988, %v1332
        %v3004 = vmul.f32 %v2980, %v1336
        %3005 = vset.pattern.permute.xlu0 3
        %3006 = vperm.xlu0 %3005, %v2429
        %v3007 = vpop.permute.xlu0 %3006
        %3009 = vset.pattern.permute.xlu0 3
        %3010 = vperm.xlu0 %3009, %v2430
        %v3011 = vpop.permute.xlu0 %3010
        %3013 = vset.pattern.permute.xlu0 3
        %3014 = vperm.xlu0 %3013, %v2431
        %v3015 = vpop.permute.xlu0 %3014
        %3017 = vset.pattern.permute.xlu0 3
        %3018 = vperm.xlu0 %3017, %v2432
        %v3019 = vpop.permute.xlu0 %3018
        %3021 = vset.pattern.permute.xlu0 3
        %3022 = vperm.xlu0 %3021, %v2433
        %v3023 = vpop.permute.xlu0 %3022
        %3025 = vset.pattern.permute.xlu0 3
        %3026 = vperm.xlu0 %3025, %v2434
        %v3027 = vpop.permute.xlu0 %3026
        %3029 = vset.pattern.permute.xlu0 3
        %3030 = vperm.xlu0 %3029, %v2435
        %v3031 = vpop.permute.xlu0 %3030
        %3033 = vset.pattern.permute.xlu0 3
        %3034 = vperm.xlu0 %3033, %v2436
        %v3035 = vpop.permute.xlu0 %3034
        %v3037 = vmul.f32 %v3007, %v2989
        %v3038 = vmul.f32 %v3007, %v2990
        %v3039 = vmul.f32 %v3011, %v2991
        %v3040 = vmul.f32 %v3011, %v2992
        %v3041 = vmul.f32 %v3015, %v2993
        %v3042 = vmul.f32 %v3015, %v2994
        %v3043 = vmul.f32 %v3019, %v2995
        %v3044 = vmul.f32 %v3019, %v2996
        %v3045 = vmul.f32 %v3023, %v2997
        %v3046 = vmul.f32 %v3023, %v2998
        %v3047 = vmul.f32 %v3027, %v2999
        %v3048 = vmul.f32 %v3027, %v3000
        %v3049 = vmul.f32 %v3031, %v3001
        %v3050 = vmul.f32 %v3031, %v3002
        %v3051 = vmul.f32 %v3035, %v3003
        %v3052 = vmul.f32 %v3035, %v3004
        %v3053 = vadd.f32 %v2925, %v3037
        %v3054 = vadd.f32 %v2926, %v3038
        %v3055 = vadd.f32 %v2927, %v3039
        %v3056 = vadd.f32 %v2928, %v3040
        %v3057 = vadd.f32 %v2929, %v3041
        %v3058 = vadd.f32 %v2930, %v3042
        %v3059 = vadd.f32 %v2931, %v3043
        %v3060 = vadd.f32 %v2932, %v3044
        %v3061 = vadd.f32 %v2933, %v3045
        %v3062 = vadd.f32 %v2934, %v3046
        %v3063 = vadd.f32 %v2935, %v3047
        %v3064 = vadd.f32 %v2936, %v3048
        %v3065 = vadd.f32 %v2937, %v3049
        %v3066 = vadd.f32 %v2938, %v3050
        %v3067 = vadd.f32 %v2939, %v3051
        %v3068 = vadd.f32 %v2940, %v3052
        %3069 = vrot.lane.b32.xlu0 %v2383, 127
        %v3070 = vpop.permute.xlu0 %3069
        %3071 = vrot.lane.b32.xlu0 %v2389, 127
        %v3072 = vpop.permute.xlu0 %3071
        %3073 = vrot.lane.b32.xlu0 %v2395, 127
        %v3074 = vpop.permute.xlu0 %3073
        %3075 = vrot.lane.b32.xlu0 %v2401, 127
        %v3076 = vpop.permute.xlu0 %3075
        %3077 = vrot.lane.b32.xlu0 %v2407, 127
        %v3078 = vpop.permute.xlu0 %3077
        %3079 = vrot.lane.b32.xlu0 %v2413, 127
        %v3080 = vpop.permute.xlu0 %3079
        %3081 = vrot.lane.b32.xlu0 %v2419, 127
        %v3082 = vpop.permute.xlu0 %3081
        %3083 = vrot.lane.b32.xlu0 %v2425, 127
        %v3084 = vpop.permute.xlu0 %3083
        %3085 = vrot.lane.b32.xlu0 %v2385, 127
        %v3086 = vpop.permute.xlu0 %3085
        %3087 = vrot.lane.b32.xlu0 %v2391, 127
        %v3088 = vpop.permute.xlu0 %3087
        %3089 = vrot.lane.b32.xlu0 %v2397, 127
        %v3090 = vpop.permute.xlu0 %3089
        %3091 = vrot.lane.b32.xlu0 %v2403, 127
        %v3092 = vpop.permute.xlu0 %3091
        %3093 = vrot.lane.b32.xlu0 %v2409, 127
        %v3094 = vpop.permute.xlu0 %3093
        %3095 = vrot.lane.b32.xlu0 %v2415, 127
        %v3096 = vpop.permute.xlu0 %3095
        %3097 = vrot.lane.b32.xlu0 %v2421, 127
        %v3098 = vpop.permute.xlu0 %3097
        %3099 = vrot.lane.b32.xlu0 %v2427, 127
        %v3100 = vpop.permute.xlu0 %3099
        %v3101 = vsel %vm1421, %v3070, %v3086
        %v3102 = vsel %vm1421, %v3072, %v3088
        %v3103 = vsel %vm1421, %v3074, %v3090
        %v3104 = vsel %vm1421, %v3076, %v3092
        %v3105 = vsel %vm1421, %v3078, %v3094
        %v3106 = vsel %vm1421, %v3080, %v3096
        %v3107 = vsel %vm1421, %v3082, %v3098
        %v3108 = vsel %vm1421, %v3084, %v3100
        %v3109 = vsel %vm1421, %v3086, %v3070
        %v3110 = vsel %vm1421, %v3088, %v3072
        %v3111 = vsel %vm1421, %v3090, %v3074
        %v3112 = vsel %vm1421, %v3092, %v3076
        %v3113 = vsel %vm1421, %v3094, %v3078
        %v3114 = vsel %vm1421, %v3096, %v3080
        %v3115 = vsel %vm1421, %v3098, %v3082
        %v3116 = vsel %vm1421, %v3100, %v3084
        %v3117 = vmul.f32 %v3101, %v1437
        %v3118 = vmul.f32 %v3109, %v1441
        %v3119 = vmul.f32 %v3102, %v1437
        %v3120 = vmul.f32 %v3110, %v1441
        %v3121 = vmul.f32 %v3103, %v1437
        %v3122 = vmul.f32 %v3111, %v1441
        %v3123 = vmul.f32 %v3104, %v1437
        %v3124 = vmul.f32 %v3112, %v1441
        %v3125 = vmul.f32 %v3105, %v1437
        %v3126 = vmul.f32 %v3113, %v1441
        %v3127 = vmul.f32 %v3106, %v1437
        %v3128 = vmul.f32 %v3114, %v1441
        %v3129 = vmul.f32 %v3107, %v1437
        %v3130 = vmul.f32 %v3115, %v1441
        %v3131 = vmul.f32 %v3108, %v1437
        %v3132 = vmul.f32 %v3116, %v1441
        %3133 = vset.pattern.permute.xlu0 5
        %3134 = vperm.xlu0 %3133, %v2429
        %v3135 = vpop.permute.xlu0 %3134
        %3137 = vset.pattern.permute.xlu0 5
        %3138 = vperm.xlu0 %3137, %v2430
        %v3139 = vpop.permute.xlu0 %3138
        %3141 = vset.pattern.permute.xlu0 5
        %3142 = vperm.xlu0 %3141, %v2431
        %v3143 = vpop.permute.xlu0 %3142
        %3145 = vset.pattern.permute.xlu0 5
        %3146 = vperm.xlu0 %3145, %v2432
        %v3147 = vpop.permute.xlu0 %3146
        %3149 = vset.pattern.permute.xlu0 5
        %3150 = vperm.xlu0 %3149, %v2433
        %v3151 = vpop.permute.xlu0 %3150
        %3153 = vset.pattern.permute.xlu0 5
        %3154 = vperm.xlu0 %3153, %v2434
        %v3155 = vpop.permute.xlu0 %3154
        %3157 = vset.pattern.permute.xlu0 5
        %3158 = vperm.xlu0 %3157, %v2435
        %v3159 = vpop.permute.xlu0 %3158
        %3161 = vset.pattern.permute.xlu0 5
        %3162 = vperm.xlu0 %3161, %v2436
        %v3163 = vpop.permute.xlu0 %3162
        %v3165 = vmul.f32 %v3135, %v3117
        %v3166 = vmul.f32 %v3135, %v3118
        %v3167 = vmul.f32 %v3139, %v3119
        %v3168 = vmul.f32 %v3139, %v3120
        %v3169 = vmul.f32 %v3143, %v3121
        %v3170 = vmul.f32 %v3143, %v3122
        %v3171 = vmul.f32 %v3147, %v3123
        %v3172 = vmul.f32 %v3147, %v3124
        %v3173 = vmul.f32 %v3151, %v3125
        %v3174 = vmul.f32 %v3151, %v3126
        %v3175 = vmul.f32 %v3155, %v3127
        %v3176 = vmul.f32 %v3155, %v3128
        %v3177 = vmul.f32 %v3159, %v3129
        %v3178 = vmul.f32 %v3159, %v3130
        %v3179 = vmul.f32 %v3163, %v3131
        %v3180 = vmul.f32 %v3163, %v3132
        %v3181 = vadd.f32 %v3053, %v3165
        %v3182 = vadd.f32 %v3054, %v3166
        %v3183 = vadd.f32 %v3055, %v3167
        %v3184 = vadd.f32 %v3056, %v3168
        %v3185 = vadd.f32 %v3057, %v3169
        %v3186 = vadd.f32 %v3058, %v3170
        %v3187 = vadd.f32 %v3059, %v3171
        %v3188 = vadd.f32 %v3060, %v3172
        %v3189 = vadd.f32 %v3061, %v3173
        %v3190 = vadd.f32 %v3062, %v3174
        %v3191 = vadd.f32 %v3063, %v3175
        %v3192 = vadd.f32 %v3064, %v3176
        %v3193 = vadd.f32 %v3065, %v3177
        %v3194 = vadd.f32 %v3066, %v3178
        %v3195 = vadd.f32 %v3067, %v3179
        %v3196 = vadd.f32 %v3068, %v3180
        %3197 = vrot.lane.b32.xlu0 %v2383, 113
        %v3198 = vpop.permute.xlu0 %3197
        %3199 = vrot.lane.b32.xlu0 %v2389, 113
        %v3200 = vpop.permute.xlu0 %3199
        %3201 = vrot.lane.b32.xlu0 %v2395, 113
        %v3202 = vpop.permute.xlu0 %3201
        %3203 = vrot.lane.b32.xlu0 %v2401, 113
        %v3204 = vpop.permute.xlu0 %3203
        %3205 = vrot.lane.b32.xlu0 %v2407, 113
        %v3206 = vpop.permute.xlu0 %3205
        %3207 = vrot.lane.b32.xlu0 %v2413, 113
        %v3208 = vpop.permute.xlu0 %3207
        %3209 = vrot.lane.b32.xlu0 %v2419, 113
        %v3210 = vpop.permute.xlu0 %3209
        %3211 = vrot.lane.b32.xlu0 %v2425, 113
        %v3212 = vpop.permute.xlu0 %3211
        %3213 = vrot.lane.b32.xlu0 %v2385, 113
        %v3214 = vpop.permute.xlu0 %3213
        %3215 = vrot.lane.b32.xlu0 %v2391, 113
        %v3216 = vpop.permute.xlu0 %3215
        %3217 = vrot.lane.b32.xlu0 %v2397, 113
        %v3218 = vpop.permute.xlu0 %3217
        %3219 = vrot.lane.b32.xlu0 %v2403, 113
        %v3220 = vpop.permute.xlu0 %3219
        %3221 = vrot.lane.b32.xlu0 %v2409, 113
        %v3222 = vpop.permute.xlu0 %3221
        %3223 = vrot.lane.b32.xlu0 %v2415, 113
        %v3224 = vpop.permute.xlu0 %3223
        %3225 = vrot.lane.b32.xlu0 %v2421, 113
        %v3226 = vpop.permute.xlu0 %3225
        %3227 = vrot.lane.b32.xlu0 %v2427, 113
        %v3228 = vpop.permute.xlu0 %3227
        %v3229 = vsel %vm1526, %v3198, %v3214
        %v3230 = vsel %vm1526, %v3200, %v3216
        %v3231 = vsel %vm1526, %v3202, %v3218
        %v3232 = vsel %vm1526, %v3204, %v3220
        %v3233 = vsel %vm1526, %v3206, %v3222
        %v3234 = vsel %vm1526, %v3208, %v3224
        %v3235 = vsel %vm1526, %v3210, %v3226
        %v3236 = vsel %vm1526, %v3212, %v3228
        %v3237 = vsel %vm1526, %v3214, %v3198
        %v3238 = vsel %vm1526, %v3216, %v3200
        %v3239 = vsel %vm1526, %v3218, %v3202
        %v3240 = vsel %vm1526, %v3220, %v3204
        %v3241 = vsel %vm1526, %v3222, %v3206
        %v3242 = vsel %vm1526, %v3224, %v3208
        %v3243 = vsel %vm1526, %v3226, %v3210
        %v3244 = vsel %vm1526, %v3228, %v3212
        %v3245 = vmul.f32 %v3229, %v1542
        %v3246 = vmul.f32 %v3237, %v1546
        %v3247 = vmul.f32 %v3230, %v1542
        %v3248 = vmul.f32 %v3238, %v1546
        %v3249 = vmul.f32 %v3231, %v1542
        %v3250 = vmul.f32 %v3239, %v1546
        %v3251 = vmul.f32 %v3232, %v1542
        %v3252 = vmul.f32 %v3240, %v1546
        %v3253 = vmul.f32 %v3233, %v1542
        %v3254 = vmul.f32 %v3241, %v1546
        %v3255 = vmul.f32 %v3234, %v1542
        %v3256 = vmul.f32 %v3242, %v1546
        %v3257 = vmul.f32 %v3235, %v1542
        %v3258 = vmul.f32 %v3243, %v1546
        %v3259 = vmul.f32 %v3236, %v1542
        %v3260 = vmul.f32 %v3244, %v1546
        %3261 = vset.pattern.permute.xlu0 6
        %3262 = vperm.xlu0 %3261, %v2429
        %v3263 = vpop.permute.xlu0 %3262
        %3265 = vset.pattern.permute.xlu0 6
        %3266 = vperm.xlu0 %3265, %v2430
        %v3267 = vpop.permute.xlu0 %3266
        %3269 = vset.pattern.permute.xlu0 6
        %3270 = vperm.xlu0 %3269, %v2431
        %v3271 = vpop.permute.xlu0 %3270
        %3273 = vset.pattern.permute.xlu0 6
        %3274 = vperm.xlu0 %3273, %v2432
        %v3275 = vpop.permute.xlu0 %3274
        %3277 = vset.pattern.permute.xlu0 6
        %3278 = vperm.xlu0 %3277, %v2433
        %v3279 = vpop.permute.xlu0 %3278
        %3281 = vset.pattern.permute.xlu0 6
        %3282 = vperm.xlu0 %3281, %v2434
        %v3283 = vpop.permute.xlu0 %3282
        %3285 = vset.pattern.permute.xlu0 6
        %3286 = vperm.xlu0 %3285, %v2435
        %v3287 = vpop.permute.xlu0 %3286
        %3289 = vset.pattern.permute.xlu0 6
        %3290 = vperm.xlu0 %3289, %v2436
        %v3291 = vpop.permute.xlu0 %3290
        %v3293 = vmul.f32 %v3263, %v3245
        %v3294 = vmul.f32 %v3263, %v3246
        %v3295 = vmul.f32 %v3267, %v3247
        %v3296 = vmul.f32 %v3267, %v3248
        %v3297 = vmul.f32 %v3271, %v3249
        %v3298 = vmul.f32 %v3271, %v3250
        %v3299 = vmul.f32 %v3275, %v3251
        %v3300 = vmul.f32 %v3275, %v3252
        %v3301 = vmul.f32 %v3279, %v3253
        %v3302 = vmul.f32 %v3279, %v3254
        %v3303 = vmul.f32 %v3283, %v3255
        %v3304 = vmul.f32 %v3283, %v3256
        %v3305 = vmul.f32 %v3287, %v3257
        %v3306 = vmul.f32 %v3287, %v3258
        %v3307 = vmul.f32 %v3291, %v3259
        %v3308 = vmul.f32 %v3291, %v3260
        %v3309 = vadd.f32 %v3181, %v3293
        %v3310 = vadd.f32 %v3182, %v3294
        %v3311 = vadd.f32 %v3183, %v3295
        %v3312 = vadd.f32 %v3184, %v3296
        %v3313 = vadd.f32 %v3185, %v3297
        %v3314 = vadd.f32 %v3186, %v3298
        %v3315 = vadd.f32 %v3187, %v3299
        %v3316 = vadd.f32 %v3188, %v3300
        %v3317 = vadd.f32 %v3189, %v3301
        %v3318 = vadd.f32 %v3190, %v3302
        %v3319 = vadd.f32 %v3191, %v3303
        %v3320 = vadd.f32 %v3192, %v3304
        %v3321 = vadd.f32 %v3193, %v3305
        %v3322 = vadd.f32 %v3194, %v3306
        %v3323 = vadd.f32 %v3195, %v3307
        %v3324 = vadd.f32 %v3196, %v3308
        %3325 = vrot.lane.b32.xlu0 %v2383, 112
        %v3326 = vpop.permute.xlu0 %3325
        %3327 = vrot.lane.b32.xlu0 %v2389, 112
        %v3328 = vpop.permute.xlu0 %3327
        %3329 = vrot.lane.b32.xlu0 %v2395, 112
        %v3330 = vpop.permute.xlu0 %3329
        %3331 = vrot.lane.b32.xlu0 %v2401, 112
        %v3332 = vpop.permute.xlu0 %3331
        %3333 = vrot.lane.b32.xlu0 %v2407, 112
        %v3334 = vpop.permute.xlu0 %3333
        %3335 = vrot.lane.b32.xlu0 %v2413, 112
        %v3336 = vpop.permute.xlu0 %3335
        %3337 = vrot.lane.b32.xlu0 %v2419, 112
        %v3338 = vpop.permute.xlu0 %3337
        %3339 = vrot.lane.b32.xlu0 %v2425, 112
        %v3340 = vpop.permute.xlu0 %3339
        %3341 = vrot.lane.b32.xlu0 %v2385, 112
        %v3342 = vpop.permute.xlu0 %3341
        %3343 = vrot.lane.b32.xlu0 %v2391, 112
        %v3344 = vpop.permute.xlu0 %3343
        %3345 = vrot.lane.b32.xlu0 %v2397, 112
        %v3346 = vpop.permute.xlu0 %3345
        %3347 = vrot.lane.b32.xlu0 %v2403, 112
        %v3348 = vpop.permute.xlu0 %3347
        %3349 = vrot.lane.b32.xlu0 %v2409, 112
        %v3350 = vpop.permute.xlu0 %3349
        %3351 = vrot.lane.b32.xlu0 %v2415, 112
        %v3352 = vpop.permute.xlu0 %3351
        %3353 = vrot.lane.b32.xlu0 %v2421, 112
        %v3354 = vpop.permute.xlu0 %3353
        %3355 = vrot.lane.b32.xlu0 %v2427, 112
        %v3356 = vpop.permute.xlu0 %3355
        %v3357 = vsel %vm1631, %v3326, %v3342
        %v3358 = vsel %vm1631, %v3328, %v3344
        %v3359 = vsel %vm1631, %v3330, %v3346
        %v3360 = vsel %vm1631, %v3332, %v3348
        %v3361 = vsel %vm1631, %v3334, %v3350
        %v3362 = vsel %vm1631, %v3336, %v3352
        %v3363 = vsel %vm1631, %v3338, %v3354
        %v3364 = vsel %vm1631, %v3340, %v3356
        %v3365 = vsel %vm1631, %v3342, %v3326
        %v3366 = vsel %vm1631, %v3344, %v3328
        %v3367 = vsel %vm1631, %v3346, %v3330
        %v3368 = vsel %vm1631, %v3348, %v3332
        %v3369 = vsel %vm1631, %v3350, %v3334
        %v3370 = vsel %vm1631, %v3352, %v3336
        %v3371 = vsel %vm1631, %v3354, %v3338
        %v3372 = vsel %vm1631, %v3356, %v3340
        %v3373 = vmul.f32 %v3357, %v1647
        %v3374 = vmul.f32 %v3365, %v1651
        %v3375 = vmul.f32 %v3358, %v1647
        %v3376 = vmul.f32 %v3366, %v1651
        %v3377 = vmul.f32 %v3359, %v1647
        %v3378 = vmul.f32 %v3367, %v1651
        %v3379 = vmul.f32 %v3360, %v1647
        %v3380 = vmul.f32 %v3368, %v1651
        %v3381 = vmul.f32 %v3361, %v1647
        %v3382 = vmul.f32 %v3369, %v1651
        %v3383 = vmul.f32 %v3362, %v1647
        %v3384 = vmul.f32 %v3370, %v1651
        %v3385 = vmul.f32 %v3363, %v1647
        %v3386 = vmul.f32 %v3371, %v1651
        %v3387 = vmul.f32 %v3364, %v1647
        %v3388 = vmul.f32 %v3372, %v1651
        %3389 = vset.pattern.permute.xlu0 7
        %3390 = vperm.xlu0 %3389, %v2429
        %v3391 = vpop.permute.xlu0 %3390
        %3393 = vset.pattern.permute.xlu0 7
        %3394 = vperm.xlu0 %3393, %v2430
        %v3395 = vpop.permute.xlu0 %3394
        %3397 = vset.pattern.permute.xlu0 7
        %3398 = vperm.xlu0 %3397, %v2431
        %v3399 = vpop.permute.xlu0 %3398
        %3401 = vset.pattern.permute.xlu0 7
        %3402 = vperm.xlu0 %3401, %v2432
        %v3403 = vpop.permute.xlu0 %3402
        %3405 = vset.pattern.permute.xlu0 7
        %3406 = vperm.xlu0 %3405, %v2433
        %v3407 = vpop.permute.xlu0 %3406
        %3409 = vset.pattern.permute.xlu0 7
        %3410 = vperm.xlu0 %3409, %v2434
        %v3411 = vpop.permute.xlu0 %3410
        %3413 = vset.pattern.permute.xlu0 7
        %3414 = vperm.xlu0 %3413, %v2435
        %v3415 = vpop.permute.xlu0 %3414
        %3417 = vset.pattern.permute.xlu0 7
        %3418 = vperm.xlu0 %3417, %v2436
        %v3419 = vpop.permute.xlu0 %3418
        %v3421 = vmul.f32 %v3391, %v3373
        %v3422 = vmul.f32 %v3391, %v3374
        %v3423 = vmul.f32 %v3395, %v3375
        %v3424 = vmul.f32 %v3395, %v3376
        %v3425 = vmul.f32 %v3399, %v3377
        %v3426 = vmul.f32 %v3399, %v3378
        %v3427 = vmul.f32 %v3403, %v3379
        %v3428 = vmul.f32 %v3403, %v3380
        %v3429 = vmul.f32 %v3407, %v3381
        %v3430 = vmul.f32 %v3407, %v3382
        %v3431 = vmul.f32 %v3411, %v3383
        %v3432 = vmul.f32 %v3411, %v3384
        %v3433 = vmul.f32 %v3415, %v3385
        %v3434 = vmul.f32 %v3415, %v3386
        %v3435 = vmul.f32 %v3419, %v3387
        %v3436 = vmul.f32 %v3419, %v3388
        %v3437 = vadd.f32 %v3309, %v3421
        %v3438 = vadd.f32 %v3310, %v3422
        %v3439 = vadd.f32 %v3311, %v3423
        %v3440 = vadd.f32 %v3312, %v3424
        %v3441 = vadd.f32 %v3313, %v3425
        %v3442 = vadd.f32 %v3314, %v3426
        %v3443 = vadd.f32 %v3315, %v3427
        %v3444 = vadd.f32 %v3316, %v3428
        %v3445 = vadd.f32 %v3317, %v3429
        %v3446 = vadd.f32 %v3318, %v3430
        %v3447 = vadd.f32 %v3319, %v3431
        %v3448 = vadd.f32 %v3320, %v3432
        %v3449 = vadd.f32 %v3321, %v3433
        %v3450 = vadd.f32 %v3322, %v3434
        %v3451 = vadd.f32 %v3323, %v3435
        %v3452 = vadd.f32 %v3324, %v3436
        %3453 = vrot.lane.b32.xlu0 %v2383, 111
        %v3454 = vpop.permute.xlu0 %3453
        %3455 = vrot.lane.b32.xlu0 %v2389, 111
        %v3456 = vpop.permute.xlu0 %3455
        %3457 = vrot.lane.b32.xlu0 %v2395, 111
        %v3458 = vpop.permute.xlu0 %3457
        %3459 = vrot.lane.b32.xlu0 %v2401, 111
        %v3460 = vpop.permute.xlu0 %3459
        %3461 = vrot.lane.b32.xlu0 %v2407, 111
        %v3462 = vpop.permute.xlu0 %3461
        %3463 = vrot.lane.b32.xlu0 %v2413, 111
        %v3464 = vpop.permute.xlu0 %3463
        %3465 = vrot.lane.b32.xlu0 %v2419, 111
        %v3466 = vpop.permute.xlu0 %3465
        %3467 = vrot.lane.b32.xlu0 %v2425, 111
        %v3468 = vpop.permute.xlu0 %3467
        %3469 = vrot.lane.b32.xlu0 %v2385, 111
        %v3470 = vpop.permute.xlu0 %3469
        %3471 = vrot.lane.b32.xlu0 %v2391, 111
        %v3472 = vpop.permute.xlu0 %3471
        %3473 = vrot.lane.b32.xlu0 %v2397, 111
        %v3474 = vpop.permute.xlu0 %3473
        %3475 = vrot.lane.b32.xlu0 %v2403, 111
        %v3476 = vpop.permute.xlu0 %3475
        %3477 = vrot.lane.b32.xlu0 %v2409, 111
        %v3478 = vpop.permute.xlu0 %3477
        %3479 = vrot.lane.b32.xlu0 %v2415, 111
        %v3480 = vpop.permute.xlu0 %3479
        %3481 = vrot.lane.b32.xlu0 %v2421, 111
        %v3482 = vpop.permute.xlu0 %3481
        %3483 = vrot.lane.b32.xlu0 %v2427, 111
        %v3484 = vpop.permute.xlu0 %3483
        %v3485 = vsel %vm1736, %v3454, %v3470
        %v3486 = vsel %vm1736, %v3456, %v3472
        %v3487 = vsel %vm1736, %v3458, %v3474
        %v3488 = vsel %vm1736, %v3460, %v3476
        %v3489 = vsel %vm1736, %v3462, %v3478
        %v3490 = vsel %vm1736, %v3464, %v3480
        %v3491 = vsel %vm1736, %v3466, %v3482
        %v3492 = vsel %vm1736, %v3468, %v3484
        %v3493 = vsel %vm1736, %v3470, %v3454
        %v3494 = vsel %vm1736, %v3472, %v3456
        %v3495 = vsel %vm1736, %v3474, %v3458
        %v3496 = vsel %vm1736, %v3476, %v3460
        %v3497 = vsel %vm1736, %v3478, %v3462
        %v3498 = vsel %vm1736, %v3480, %v3464
        %v3499 = vsel %vm1736, %v3482, %v3466
        %v3500 = vsel %vm1736, %v3484, %v3468
        %v3501 = vmul.f32 %v3485, %v1752
        %v3502 = vmul.f32 %v3493, %v1756
        %v3503 = vmul.f32 %v3486, %v1752
        %v3504 = vmul.f32 %v3494, %v1756
        %v3505 = vmul.f32 %v3487, %v1752
        %v3506 = vmul.f32 %v3495, %v1756
        %v3507 = vmul.f32 %v3488, %v1752
        %v3508 = vmul.f32 %v3496, %v1756
        %v3509 = vmul.f32 %v3489, %v1752
        %v3510 = vmul.f32 %v3497, %v1756
        %v3511 = vmul.f32 %v3490, %v1752
        %v3512 = vmul.f32 %v3498, %v1756
        %v3513 = vmul.f32 %v3491, %v1752
        %v3514 = vmul.f32 %v3499, %v1756
        %v3515 = vmul.f32 %v3492, %v1752
        %v3516 = vmul.f32 %v3500, %v1756
        %3517 = vset.pattern.permute.xlu0 8
        %3518 = vperm.xlu0 %3517, %v2429
        %v3519 = vpop.permute.xlu0 %3518
        %3521 = vset.pattern.permute.xlu0 8
        %3522 = vperm.xlu0 %3521, %v2430
        %v3523 = vpop.permute.xlu0 %3522
        %3525 = vset.pattern.permute.xlu0 8
        %3526 = vperm.xlu0 %3525, %v2431
        %v3527 = vpop.permute.xlu0 %3526
        %3529 = vset.pattern.permute.xlu0 8
        %3530 = vperm.xlu0 %3529, %v2432
        %v3531 = vpop.permute.xlu0 %3530
        %3533 = vset.pattern.permute.xlu0 8
        %3534 = vperm.xlu0 %3533, %v2433
        %v3535 = vpop.permute.xlu0 %3534
        %3537 = vset.pattern.permute.xlu0 8
        %3538 = vperm.xlu0 %3537, %v2434
        %v3539 = vpop.permute.xlu0 %3538
        %3541 = vset.pattern.permute.xlu0 8
        %3542 = vperm.xlu0 %3541, %v2435
        %v3543 = vpop.permute.xlu0 %3542
        %3545 = vset.pattern.permute.xlu0 8
        %3546 = vperm.xlu0 %3545, %v2436
        %v3547 = vpop.permute.xlu0 %3546
        %v3549 = vmul.f32 %v3519, %v3501
        %v3550 = vmul.f32 %v3519, %v3502
        %v3551 = vmul.f32 %v3523, %v3503
        %v3552 = vmul.f32 %v3523, %v3504
        %v3553 = vmul.f32 %v3527, %v3505
        %v3554 = vmul.f32 %v3527, %v3506
        %v3555 = vmul.f32 %v3531, %v3507
        %v3556 = vmul.f32 %v3531, %v3508
        %v3557 = vmul.f32 %v3535, %v3509
        %v3558 = vmul.f32 %v3535, %v3510
        %v3559 = vmul.f32 %v3539, %v3511
        %v3560 = vmul.f32 %v3539, %v3512
        %v3561 = vmul.f32 %v3543, %v3513
        %v3562 = vmul.f32 %v3543, %v3514
        %v3563 = vmul.f32 %v3547, %v3515
        %v3564 = vmul.f32 %v3547, %v3516
        %v3565 = vadd.f32 %v3437, %v3549
        %v3566 = vadd.f32 %v3438, %v3550
        %v3567 = vadd.f32 %v3439, %v3551
        %v3568 = vadd.f32 %v3440, %v3552
        %v3569 = vadd.f32 %v3441, %v3553
        %v3570 = vadd.f32 %v3442, %v3554
        %v3571 = vadd.f32 %v3443, %v3555
        %v3572 = vadd.f32 %v3444, %v3556
        %v3573 = vadd.f32 %v3445, %v3557
        %v3574 = vadd.f32 %v3446, %v3558
        %v3575 = vadd.f32 %v3447, %v3559
        %v3576 = vadd.f32 %v3448, %v3560
        %v3577 = vadd.f32 %v3449, %v3561
        %v3578 = vadd.f32 %v3450, %v3562
        %v3579 = vadd.f32 %v3451, %v3563
        %v3580 = vadd.f32 %v3452, %v3564
        %v3581 = vmul.f32 %v3565, 0.5
        %v3582 = vmul.f32 %v3566, 0.5
        %v3583 = vmul.f32 %v3567, 0.5
        %v3584 = vmul.f32 %v3568, 0.5
        %v3585 = vmul.f32 %v3569, 0.5
        %v3586 = vmul.f32 %v3570, 0.5
        %v3587 = vmul.f32 %v3571, 0.5
        %v3588 = vmul.f32 %v3572, 0.5
        %v3589 = vmul.f32 %v3565, 0.70710677
        %v3590 = vmul.f32 %v3566, 0.70710677
        %v3591 = vmul.f32 %v3567, 0.70710677
        %v3592 = vmul.f32 %v3568, 0.70710677
        %v3593 = vmul.f32 %v3569, 0.70710677
        %v3594 = vmul.f32 %v3570, 0.70710677
        %v3595 = vmul.f32 %v3571, 0.70710677
        %v3596 = vmul.f32 %v3572, 0.70710677
        %v3597 = verf.f32.pop %v3589
        %v3598 = verf.f32.pop %v3590
        %v3599 = verf.f32.pop %v3591
        %v3600 = verf.f32.pop %v3592
        %v3601 = verf.f32.pop %v3593
        %v3602 = verf.f32.pop %v3594
        %v3603 = verf.f32.pop %v3595
        %v3604 = verf.f32.pop %v3596
        %v3605 = vadd.f32 %v3597, 1.0
        %v3606 = vadd.f32 %v3598, 1.0
        %v3607 = vadd.f32 %v3599, 1.0
        %v3608 = vadd.f32 %v3600, 1.0
        %v3609 = vadd.f32 %v3601, 1.0
        %v3610 = vadd.f32 %v3602, 1.0
        %v3611 = vadd.f32 %v3603, 1.0
        %v3612 = vadd.f32 %v3604, 1.0
        %v3613 = vmul.f32 %v3581, %v3605
        %v3614 = vmul.f32 %v3582, %v3606
        %v3615 = vmul.f32 %v3583, %v3607
        %v3616 = vmul.f32 %v3584, %v3608
        %v3617 = vmul.f32 %v3585, %v3609
        %v3618 = vmul.f32 %v3586, %v3610
        %v3619 = vmul.f32 %v3587, %v3611
        %v3620 = vmul.f32 %v3588, %v3612
        %v3621 = vmul.f32 %v3613, %v3573
        %v3622 = vmul.f32 %v3614, %v3574
        %v3623 = vmul.f32 %v3615, %v3575
        %v3624 = vmul.f32 %v3616, %v3576
        %v3625 = vmul.f32 %v3617, %v3577
        %v3626 = vmul.f32 %v3618, %v3578
        %v3627 = vmul.f32 %v3619, %v3579
        %v3628 = vmul.f32 %v3620, %v3580
        %v3629 = vld [vmem:[%s18] sm:$0xff]
        %v3630 = vld [vmem:[%s18 + $0x8] sm:$0xff]
        %v3631 = vld [vmem:[%s19] sm:$0xff]
        %v3632 = vld [vmem:[%s19 + $0x8] sm:$0xff]
        %3634 = vset.pattern.permute.xlu0 0
        %3635 = vperm.xlu0 %3634, %v3631
        %v3636 = vpop.permute.xlu0 %3635
        %3639 = vset.pattern.permute.xlu0 0
        %3640 = vperm.xlu0 %3639, %v3632
        %v3641 = vpop.permute.xlu0 %3640
        %vm3643 = vcmask 261120
        %v3645 = vsel %vm3643, %v3629, 0
        %v3648 = vsel %vm3643, %v3630, 0
        %3650 = vmatprep.subr.mxu0 0.0
        %3651 = vmatpush1.msra.mxu0 0.0
        %3652 = vmatprep.subr.mxu0 0.0
        %3653 = vmatpush1.msra.mxu0 0.0
        %3654 = vmatprep.subr.mxu0 0.0
        %3655 = vmatpush1.msra.mxu0 0.0
        %3656 = vmatprep.subr.mxu0 0.0
        %3657 = vmatpush1.msra.mxu0 0.0
        %3658 = vmatprep.subr.mxu0 0.0
        %3659 = vmatpush1.msra.mxu0 0.0
        %3660 = vmatprep.subr.mxu0 0.0
        %3661 = vmatpush1.msra.mxu0 0.0
        %3662 = vmatprep.subr.mxu0 0.0
        %3663 = vmatpush1.msra.mxu0 0.0
        %3664 = vmatprep.subr.mxu0 0.0
        %3665 = vmatpush1.msra.mxu0 0.0
        %3666 = vmatprep.subr.mxu0 0.0
        %3667 = vmatpush1.msra.mxu0 0.0
        %3668 = vmatprep.subr.mxu0 0.0
        %3669 = vmatpush1.msra.mxu0 0.0
        %3670 = vmatprep.subr.mxu0 0.0
        %3671 = vmatpush1.msra.mxu0 0.0
        %3672 = vmatprep.subr.mxu0 0.0
        %3673 = vmatpush1.msra.mxu0 0.0
        %3674 = vmatprep.subr.mxu0 %v3628
        %3675 = vmatpush1.msra.mxu0 %v3627
        %3676 = vmatprep.subr.mxu0 %v3626
        %3677 = vmatpush1.msra.mxu0 %v3625
        %3678 = vmatprep.subr.mxu0 %v3624
        %3679 = vmatpush1.msra.mxu0 %v3623
        %3680 = vmatprep.subr.mxu0 %v3622
        %3681 = vmatpush1.msra.mxu0 %v3621
        %3682 = vmatprep.subr.mxu0 0.0
        %3683 = vmatpush2.msra.mxu0 0.0
        %3684 = vmatprep.subr.mxu0 0.0
        %3685 = vmatpush2.msra.mxu0 0.0
        %3686 = vmatprep.subr.mxu0 0.0
        %3687 = vmatpush2.msra.mxu0 0.0
        %3688 = vmatprep.subr.mxu0 0.0
        %3689 = vmatpush2.msra.mxu0 0.0
        %3690 = vmatprep.subr.mxu0 0.0
        %3691 = vmatpush2.msra.mxu0 0.0
        %3692 = vmatprep.subr.mxu0 0.0
        %3693 = vmatpush2.msra.mxu0 0.0
        %3694 = vmatprep.subr.mxu0 0.0
        %3695 = vmatpush2.msra.mxu0 0.0
        %3696 = vmatprep.subr.mxu0 0.0
        %3697 = vmatpush2.msra.mxu0 0.0
        %3698 = vmatprep.subr.mxu0 0.0
        %3699 = vmatpush2.msra.mxu0 0.0
        %3700 = vmatprep.subr.mxu0 0.0
        %3701 = vmatpush2.msra.mxu0 0.0
        %3702 = vmatprep.subr.mxu0 0.0
        %3703 = vmatpush2.msra.mxu0 0.0
        %3704 = vmatprep.subr.mxu0 0.0
        %3705 = vmatpush2.msra.mxu0 0.0
        %3706 = vmatprep.subr.mxu0 0.0
        %3707 = vmatpush2.msra.mxu0 0.0
        %3708 = vmatprep.subr.mxu0 0.0
        %3709 = vmatpush2.msra.mxu0 0.0
        %3710 = vmatprep.subr.mxu0 0.0
        %3711 = vmatpush2.msra.mxu0 0.0
        %3712 = vmatprep.subr.mxu0 0.0
        %3713 = vmatpush2.msra.mxu0 0.0
        %3714 = vmatprep.mubr.f32.mxu0 0.0
        %3715 = vmatmul.mubr.f32.gmra.mxu0 %v3645
        %v3716 = vpop.f32.mrf.mxu0
        %v3717 = vadd.f32 %v3636, %v3716
        %v3718 = vpop.f32.mrf.mxu0
        %v3719 = vadd.f32 %v3636, %v3718
        %3720 = vmatprep.mubr.f32.mxu0 0.0
        %3721 = vmatmul.mubr.f32.gmra.mxu0 %v3648
        %v3722 = vpop.f32.mrf.mxu0
        %v3723 = vadd.f32 %v3641, %v3722
        %v3724 = vpop.f32.mrf.mxu0
        %v3725 = vadd.f32 %v3641, %v3724
        %3726 = vdwg.mxu0
        %v3727 = vadd.f32 %v2152, %v3717
        %v3728 = vadd.f32 %v2153, %v3719
        %v3729 = vadd.f32 %v2154, %v3723
        %v3730 = vadd.f32 %v2155, %v3725
        %3731 = vst [vmem:[%s622] sm:$0xff] %v3727
        %3732 = vst [vmem:[%s622 + $0x8] sm:$0xff] %v3728
        %3733 = vst [vmem:[%s622 + $0x10] sm:$0xff] %v3729
        %3734 = vst [vmem:[%s622 + $0x18] sm:$0xff] %v3730
        %s3735 = sand.u32 %s467, 1
        %s3736 = scalar_lea.sflag [#allocation3], %s3735
        %s3737 = sand.u32 %s467, 1
        %s3738 = smul.addr %s3737, 32
        %s3739 = scalar_lea.vmem [#allocation2], %s3738
        // Predicated region
        $region101: #{tpu_custom_call.1} parent=99 // pred_check
          %p3740 = pneg %p477
        $region102: #{tpu_custom_call.1} parent=99 // pred_check_branch
          %3742 = sbr.rel (%p3740) target = $region104
        $region103: #{tpu_custom_call.1} parent=99 // pred_region
          %s3744 = ssub.s32 512, 512
          %3745 = vsyncadd %s3736, %s3744
          %s3746 = smul.addr %s34, 4
          %s3747 = smul.addr %s3746, 128
          %s3748 = scalar_lea.hbm %s20, %s3747
          %s3749 = sshll.u32 %s3739, 4
          %s3750 = int_to_ptr.vmem [resolvable:$true] %s3749
          %3755 = dma.vmem_to_hbm [thread:$0]  %s3750, 512, %s3748, %s3736, 256, 256, 16
        $region104: #{tpu_custom_call.1} parent=99 // pred_fallthru
          _
      $region100: #{tpu_custom_call.1} parent=5 // pred_fallthru
        _
      %p3756 = scmp.le.s32.totalorder 2, %s29
      // Predicated region
      $region105: #{tpu_custom_call.1} parent=5 // pred_check
        %p3757 = pneg %p3756
      $region106: #{tpu_custom_call.1} parent=5 // pred_check_branch
        %3759 = sbr.rel (%p3757) target = $region108
      $region107: #{tpu_custom_call.1} parent=5 // pred_region
        %s3760 = ssub.s32 %s29, 2
        // Predicated region
        $region109: #{tpu_custom_call.1} parent=107 // pred_check
          %p3761 = pneg %p483
        $region110: #{tpu_custom_call.1} parent=107 // pred_check_branch
          %3763 = sbr.rel (%p3761) target = $region112
        $region111: #{tpu_custom_call.1} parent=107 // pred_region
          %s3764 = sand.u32 %s468, 1
          %s3765 = scalar_lea.sflag [#allocation3], %s3764
          %s3766 = sand.u32 %s468, 1
          %s3767 = smul.addr %s3766, 32
          %s3768 = scalar_lea.vmem [#allocation2], %s3767
          %3769 = dma.done %s3765, 512
        $region112: #{tpu_custom_call.1} parent=107 // pred_fallthru
          _
      $region108: #{tpu_custom_call.1} parent=5 // pred_fallthru
        _
    $region6: #{tpu_custom_call.1} parent=1 // loop_footer
      %s33 = sadd.s32 1, %s29
    $region7: #{tpu_custom_call.1} parent=1 // loop_footer_branch
      %28 = sbr.rel target = $region3
    $region8: #{tpu_custom_call.1} parent=1 // loop_exit
      _
    %3770 = vsyncpa [#allocation3], 1
    %s3771 = scalar_lea.sflag [#allocation3], 1
    %3772 = vsyncpa %s3771, 1

</llo_original>
